<compile_context>
chip_gen: v7x
topology: tpu7x:2x2x1
jax: 0.10.0
libtpu: 0.0.40
codegen_flags: <defaults>
</compile_context>

<pallas_src>
import math
import functools

import jax
import jax.numpy as jnp
from jax import lax
from jax.experimental import pallas as pl
from jax.experimental.pallas import tpu as pltpu


_MASK_VALUE = -1e30  # finite mask value: avoids exp(-inf - -inf) = NaN


def _pick_seq_tile(T):
    """Largest preferred LN/MLP sequence tile that divides T; else whole seq."""
    for t in (512, 256, 128):
        if T % t == 0:
            return t
    return T


def _pick_attn_tile(T):
    """Smaller attention tile (cuts spill of the (tq, tk) f32 intermediates)."""
    for t in (256, 128):
        if T % t == 0:
            return t
    return T


def _pick_head_group(num_heads, head_size):
    """Smallest head-group whose lane width is a multiple of 128 (lane-dense
    stores, better MXU N-utilization); fall back to all heads (full C dim)."""
    for hg in range(1, num_heads + 1):
        if num_heads % hg == 0 and (hg * head_size) % 128 == 0:
            return hg
    return num_heads


def _pick_ffn_chunk(ffn):
    """Chunk width for the FFN hidden dim inside kernel 3."""
    for c in (1024, 512):
        if ffn % c == 0:
            return c
    return ffn


def _vmem_limit_bytes():
    """Per-generation scoped-VMEM limit with headroom."""
    cap = None
    try:
        cap = int(pltpu.get_tpu_info().vmem_capacity_bytes)
    except Exception:
        cap = None
    if cap is None:
        try:
            kind = jax.devices()[0].device_kind.lower()
        except Exception:
            kind = ""
        # v7x has 64 MiB VMEM per TC; v5e/v6e have 128 MiB.
        cap = 64 * 1024 * 1024 if "7" in kind else 128 * 1024 * 1024
    return int(min(cap - 16 * 1024 * 1024, 100 * 1024 * 1024))


# --------------------------------------------------------------------------
# Kernel 1: LayerNorm1 + fused QKV projection (scale folded into q)
# --------------------------------------------------------------------------
def _ln1_qkv_kernel(x_ref, g_ref, b_ref, wqkv_ref, bqkv_ref,
                    q_ref, k_ref, v_ref, *, scale, eps):
    x = x_ref[...].astype(jnp.float32)                      # (TQ, C)
    C = x.shape[-1]
    mu = jnp.mean(x, axis=-1, keepdims=True)
    var = jnp.mean((x - mu) * (x - mu), axis=-1, keepdims=True)
    xn = (x - mu) * lax.rsqrt(var + eps) * g_ref[...] + b_ref[...]
    qkv = jnp.dot(xn.astype(jnp.bfloat16), wqkv_ref[...],
                  preferred_element_type=jnp.float32) + bqkv_ref[...]
    q_ref[...] = (qkv[:, 0 * C:1 * C] * scale).astype(q_ref.dtype)
    k_ref[...] = qkv[:, 1 * C:2 * C].astype(k_ref.dtype)
    v_ref[...] = qkv[:, 2 * C:3 * C].astype(v_ref.dtype)


# --------------------------------------------------------------------------
# Kernel 2: causal flash attention on a packed causal grid.
#   grid = (B, num_heads//hg, n_t*(n_t+1)/2); (qi, ki) come from prefetched
#   SMEM tables.  q/k/v/out stay in (B, T, C) layout; the head-group axis
#   indexes the C dimension, so there are no head split/merge transposes.
# --------------------------------------------------------------------------
def _flash_attn_kernel(qi_tbl, ki_tbl, q_ref, k_ref, v_ref, o_ref,
                       m_sc, l_sc, acc_sc, *, head_size, mask_value):
    step = pl.program_id(2)
    qi = qi_tbl[step]
    ki = ki_tbl[step]
    hs = head_size
    hg = acc_sc.shape[-1] // hs                              # heads per group

    @pl.when(ki == 0)
    def _init():
        m_sc[...] = jnp.full_like(m_sc, mask_value)
        l_sc[...] = jnp.zeros_like(l_sc)
        acc_sc[...] = jnp.zeros_like(acc_sc)

    def _update(masked):
        tq, tk = q_ref.shape[0], k_ref.shape[0]
        if masked:
            # diagonal tile: tq == tk, so the causal mask is purely local.
            row = lax.broadcasted_iota(jnp.int32, (tq, tk), 0)
            col = lax.broadcasted_iota(jnp.int32, (tq, tk), 1)
            causal = col <= row
        for h in range(hg):                                  # static unroll
            sl = slice(h * hs, (h + 1) * hs)
            q = q_ref[:, sl]                                 # (tq, hs) bf16
            k = k_ref[:, sl]                                 # (tk, hs) bf16
            s = jnp.einsum('td,sd->ts', q, k,
                           preferred_element_type=jnp.float32)   # (tq, tk)
            if masked:
                s = jnp.where(causal, s, mask_value)
            m_prev = m_sc[h]                                 # (tq, 1)
            m_new = jnp.maximum(m_prev, jnp.max(s, axis=-1, keepdims=True))
            alpha = jnp.exp(m_prev - m_new)
            p = jnp.exp(s - m_new)                           # (tq, tk) f32
            l_sc[h] = alpha * l_sc[h] + jnp.sum(p, axis=-1, keepdims=True)
            acc_sc[:, sl] = alpha * acc_sc[:, sl] + jnp.dot(
                p.astype(v_ref.dtype), v_ref[:, sl],
                preferred_element_type=jnp.float32)
            m_sc[h] = m_new

    # Sub-diagonal tiles: mask-free fast path (saves iota + cmp + select).
    @pl.when(ki < qi)
    def _off_diag():
        _update(masked=False)

    # Diagonal tile: masked update, then finalize (it is the last KV tile
    # for this q tile in the packed causal ordering).
    @pl.when(ki == qi)
    def _diag_and_finalize():
        _update(masked=True)
        outs = []
        for h in range(hg):
            sl = slice(h * hs, (h + 1) * hs)
            inv_l = pl.reciprocal(l_sc[h], approx=True)
            outs.append(acc_sc[:, sl] * inv_l)
        out = outs[0] if hg == 1 else jnp.concatenate(outs, axis=-1)
        o_ref[...] = out.astype(o_ref.dtype)                 # lane-dense store


# --------------------------------------------------------------------------
# Kernel 3: out-projection + residual, LN2 + MLP (tanh GELU) + residual.
#   FFN hidden dim processed in chunks so (tq, 4C) f32 never materializes.
# --------------------------------------------------------------------------
def _proj_mlp_kernel(x_ref, att_ref, wproj_ref, bproj_ref, g2_ref, b2ln_ref,
                     w1_ref, b1_ref, w2_ref, b2_ref, o_ref, *, eps, ffn_chunk):
    x = x_ref[...].astype(jnp.float32)                       # (TQ, C)
    proj = jnp.dot(att_ref[...], wproj_ref[...],
                   preferred_element_type=jnp.float32) + bproj_ref[...]
    x = x + proj                                             # residual 1

    mu = jnp.mean(x, axis=-1, keepdims=True)
    var = jnp.mean((x - mu) * (x - mu), axis=-1, keepdims=True)
    xn = ((x - mu) * lax.rsqrt(var + eps) * g2_ref[...] + b2ln_ref[...]
          ).astype(jnp.bfloat16)

    c0 = 0.7978845608028654  # sqrt(2/pi); matches nn.GELU(approximate='tanh')
    ffn = w1_ref.shape[-1]
    mlp = jnp.zeros_like(x)                                  # (TQ, C) f32
    for c in range(0, ffn, ffn_chunk):                       # static unroll
        h = jnp.dot(xn, w1_ref[:, c:c + ffn_chunk],
                    preferred_element_type=jnp.float32) + b1_ref[:, c:c + ffn_chunk]
        g = 0.5 * h * (1.0 + jnp.tanh(c0 * (h + 0.044715 * h * h * h)))
        mlp = mlp + jnp.dot(g.astype(jnp.bfloat16), w2_ref[c:c + ffn_chunk, :],
                            preferred_element_type=jnp.float32)
    mlp = mlp + b2_ref[...]

    o_ref[...] = (x + mlp).astype(o_ref.dtype)               # residual 2


# --------------------------------------------------------------------------
# Wrapper
# --------------------------------------------------------------------------
def decoder_block(x, params, *, num_heads, eps=1e-5):
    """x: (B, T, C) float32. params: dict of 2-D arrays (see __main__)."""
    B, T, C = x.shape
    assert C % num_heads == 0
    hs = C // num_heads
    scale = 1.0 / math.sqrt(hs)
    bf16 = jnp.bfloat16

    # LN/MLP tile (large) vs attention tile (smaller) are decoupled.
    tq = _pick_seq_tile(T)
    n_t_seq = T // tq
    tq_a = _pick_attn_tile(T)
    n_t = T // tq_a

    hg = _pick_head_group(num_heads, hs)
    gw = hg * hs                                              # group lane width
    n_hgrp = num_heads // hg

    ffn_chunk = _pick_ffn_chunk(4 * C)

    # bf16 weights for the MXU (halves weight VMEM / HBM traffic); constant
    # index_maps so weight blocks are not re-fetched across grid steps.
    wqkv = params["wqkv"].astype(bf16)
    wproj = params["wproj"].astype(bf16)
    w1 = params["w1"].astype(bf16)
    w2 = params["w2"].astype(bf16)

    vmem_limit = _vmem_limit_bytes()

    # ---- kernel 1: LN1 + QKV ------------------------------------------------
    q, k, v = pl.pallas_call(
        functools.partial(_ln1_qkv_kernel, scale=scale, eps=eps),
        out_shape=[jax.ShapeDtypeStruct((B, T, C), bf16)] * 3,
        grid_spec=pltpu.PrefetchScalarGridSpec(
            num_scalar_prefetch=0,
            grid=(B, n_t_seq),
            in_specs=[
                pl.BlockSpec((None, tq, C), lambda b, i: (b, i, 0)),
                pl.BlockSpec((1, C), lambda b, i: (0, 0)),
                pl.BlockSpec((1, C), lambda b, i: (0, 0)),
                pl.BlockSpec((C, 3 * C), lambda b, i: (0, 0)),
                pl.BlockSpec((1, 3 * C), lambda b, i: (0, 0)),
            ],
            out_specs=[pl.BlockSpec((None, tq, C), lambda b, i: (b, i, 0))] * 3,
        ),
        compiler_params=pltpu.CompilerParams(
            dimension_semantics=("parallel", "parallel"),
            vmem_limit_bytes=vmem_limit,
        ),
        cost_estimate=pl.CostEstimate(
            flops=int(6 * B * T * C * C),
            transcendentals=int(B * T),
            bytes_accessed=int(4 * B * T * C + 6 * B * T * C + 6 * C * C),
        ),
    )(x, params["ln1_g"], params["ln1_b"], wqkv, params["bqkv"])

    # ---- kernel 2: causal flash attention (packed causal grid) --------------
    # Packed (qi, ki) lookup tables: only the n_t*(n_t+1)/2 causal tiles exist,
    # so above-diagonal tiles cost neither DMA nor a grid step.
    qi_list, ki_list = [], []
    for qi_ in range(n_t):
        for ki_ in range(qi_ + 1):
            qi_list.append(qi_)
            ki_list.append(ki_)
    qi_tbl = jnp.asarray(qi_list, jnp.int32)
    ki_tbl = jnp.asarray(ki_list, jnp.int32)
    n_packed = len(qi_list)

    att = pl.pallas_call(
        functools.partial(_flash_attn_kernel, head_size=hs,
                          mask_value=_MASK_VALUE),
        out_shape=jax.ShapeDtypeStruct((B, T, C), bf16),
        grid_spec=pltpu.PrefetchScalarGridSpec(
            num_scalar_prefetch=2,
            grid=(B, n_hgrp, n_packed),
            in_specs=[
                pl.BlockSpec((None, tq_a, gw),
                             lambda b, g, s, qt, kt: (b, qt[s], g)),   # q
                pl.BlockSpec((None, tq_a, gw),
                             lambda b, g, s, qt, kt: (b, kt[s], g)),   # k
                pl.BlockSpec((None, tq_a, gw),
                             lambda b, g, s, qt, kt: (b, kt[s], g)),   # v
            ],
            out_specs=pl.BlockSpec((None, tq_a, gw),
                                   lambda b, g, s, qt, kt: (b, qt[s], g)),
            scratch_shapes=[
                pltpu.VMEM((hg, tq_a, 1), jnp.float32),   # running max
                pltpu.VMEM((hg, tq_a, 1), jnp.float32),   # running sum
                pltpu.VMEM((tq_a, gw), jnp.float32),      # accumulator
            ],
        ),
        compiler_params=pltpu.CompilerParams(
            dimension_semantics=("parallel", "parallel", "arbitrary"),
            vmem_limit_bytes=vmem_limit,
        ),
        cost_estimate=pl.CostEstimate(
            flops=int(2 * B * T * T * C),               # causal half of QK+PV
            transcendentals=int(B * num_heads * T * T // 2),
            # q read + out write + K/V re-read once per causal q tile
            bytes_accessed=int(4 * B * T * C + 2 * B * T * C * (n_t + 1)),
        ),
    )(qi_tbl, ki_tbl, q, k, v)

    # ---- kernel 3: out-proj + residual + LN2 + MLP + residual ---------------
    out = pl.pallas_call(
        functools.partial(_proj_mlp_kernel, eps=eps, ffn_chunk=ffn_chunk),
        out_shape=jax.ShapeDtypeStruct((B, T, C), x.dtype),
        grid_spec=pltpu.PrefetchScalarGridSpec(
            num_scalar_prefetch=0,
            grid=(B, n_t_seq),
            in_specs=[
                pl.BlockSpec((None, tq, C), lambda b, i: (b, i, 0)),   # x
                pl.BlockSpec((None, tq, C), lambda b, i: (b, i, 0)),   # att
                pl.BlockSpec((C, C), lambda b, i: (0, 0)),             # wproj
                pl.BlockSpec((1, C), lambda b, i: (0, 0)),             # bproj
                pl.BlockSpec((1, C), lambda b, i: (0, 0)),             # ln2_g
                pl.BlockSpec((1, C), lambda b, i: (0, 0)),             # ln2_b
                pl.BlockSpec((C, 4 * C), lambda b, i: (0, 0)),         # w1
                pl.BlockSpec((1, 4 * C), lambda b, i: (0, 0)),         # b1
                pl.BlockSpec((4 * C, C), lambda b, i: (0, 0)),         # w2
                pl.BlockSpec((1, C), lambda b, i: (0, 0)),             # b2
            ],
            out_specs=pl.BlockSpec((None, tq, C), lambda b, i: (b, i, 0)),
        ),
        compiler_params=pltpu.CompilerParams(
            dimension_semantics=("parallel", "parallel"),
            vmem_limit_bytes=vmem_limit,
        ),
        cost_estimate=pl.CostEstimate(
            flops=int(18 * B * T * C * C),
            transcendentals=int(4 * B * T * C + B * T),
            bytes_accessed=int(10 * B * T * C + 18 * C * C),
        ),
    )(x, att, wproj, params["bproj"], params["ln2_g"], params["ln2_b"],
      w1, params["b1"], w2, params["b2"])

    return out


# --------------------------------------------------------------------------
# Pure-JAX reference for validation
# --------------------------------------------------------------------------
def _reference(x, p, num_heads, eps=1e-5):
    B, T, C = x.shape
    hs = C // num_heads

    def ln(z, g, b):
        mu = jnp.mean(z, axis=-1, keepdims=True)
        var = jnp.mean((z - mu) ** 2, axis=-1, keepdims=True)
        return (z - mu) / jnp.sqrt(var + eps) * g + b

    xn = ln(x, p["ln1_g"], p["ln1_b"])
    qkv = xn @ p["wqkv"] + p["bqkv"]
    q, k, v = jnp.split(qkv, 3, axis=-1)
    q = q.reshape(B, T, num_heads, hs).transpose(0, 2, 1, 3)
    k = k.reshape(B, T, num_heads, hs).transpose(0, 2, 1, 3)
    v = v.reshape(B, T, num_heads, hs).transpose(0, 2, 1, 3)
    s = (q @ k.transpose(0, 1, 3, 2)) / math.sqrt(hs)
    mask = jnp.tril(jnp.ones((T, T), bool))
    s = jnp.where(mask[None, None], s, -jnp.inf)
    a = jax.nn.softmax(s, axis=-1)
    o = (a @ v).transpose(0, 2, 1, 3).reshape(B, T, C)
    o = o @ p["wproj"] + p["bproj"]
    x = x + o
    xn2 = ln(x, p["ln2_g"], p["ln2_b"])
    h = xn2 @ p["w1"] + p["b1"]
    c = 0.7978845608028654
    g = 0.5 * h * (1.0 + jnp.tanh(c * (h + 0.044715 * h ** 3)))
    return x + (g @ p["w2"] + p["b2"])


if __name__ == "__main__":
    # small shapes: batch=2, seq=8, hidden=32, heads=4
    B, T, C, H = 2, 8, 32, 4

    key = jax.random.PRNGKey(0)
    ks = jax.random.split(key, 8)

    params = {
        "ln1_g": jnp.ones((1, C), jnp.float32),
        "ln1_b": jnp.zeros((1, C), jnp.float32),
        "wqkv": 0.02 * jax.random.normal(ks[0], (C, 3 * C), jnp.float32),
        "bqkv": jnp.zeros((1, 3 * C), jnp.float32),
        "wproj": 0.02 * jax.random.normal(ks[1], (C, C), jnp.float32),
        "bproj": jnp.zeros((1, C), jnp.float32),
        "ln2_g": jnp.ones((1, C), jnp.float32),
        "ln2_b": jnp.zeros((1, C), jnp.float32),
        "w1": 0.02 * jax.random.normal(ks[2], (C, 4 * C), jnp.float32),
        "b1": jnp.zeros((1, 4 * C), jnp.float32),
        "w2": 0.02 * jax.random.normal(ks[3], (4 * C, C), jnp.float32),
        "b2": jnp.zeros((1, C), jnp.float32),
    }

    x = jax.random.normal(ks[4], (B, T, C), jnp.float32)

    run = jax.jit(lambda xx, pp: decoder_block(xx, pp, num_heads=H))
    out = run(x, params)
    out = jax.block_until_ready(out)

    ref = _reference(x, params, H)
    assert out.shape == (B, T, C)
    max_err = jnp.max(jnp.abs(out - ref))
    # bf16 MXU inputs with f32 accumulation -> bf16-level tolerance
    assert jnp.allclose(out, ref, atol=1e-2, rtol=1e-2), (
        f"max abs err = {max_err}"
    )
    print("KERNEL_OK")
</pallas_src>

<mosaic_0001>
module attributes {stable_mosaic.version = 11 : i64} {
  func.func @_ln1_qkv_kernel(%arg0: i32, %arg1: i32, %arg2: memref<1x8x32xf32, #tpu.memory_space<vmem>>, %arg3: memref<1x32xf32, #tpu.memory_space<vmem>>, %arg4: memref<1x32xf32, #tpu.memory_space<vmem>>, %arg5: memref<32x96xbf16, #tpu.memory_space<vmem>>, %arg6: memref<1x96xf32, #tpu.memory_space<vmem>>, %arg7: memref<1x8x32xbf16, #tpu.memory_space<vmem>>, %arg8: memref<1x8x32xbf16, #tpu.memory_space<vmem>>, %arg9: memref<1x8x32xbf16, #tpu.memory_space<vmem>>) attributes {dimension_semantics = [#tpu.dimension_semantics<parallel>, #tpu.dimension_semantics<parallel>], iteration_bounds = array<i64: 2, 1>, scalar_prefetch = 0 : i64, scratch_operands = 0 : i64, tpu.core_type = #tpu.core_type<tc>, window_params = [{transform_indices = @transform_0, window_bounds = array<i64: 1, 8, 32>}, {pipeline_mode = #tpu.pipeline_mode<synchronous>, transform_indices = @transform_1, window_bounds = array<i64: 1, 32>}, {pipeline_mode = #tpu.pipeline_mode<synchronous>, transform_indices = @transform_2, window_bounds = array<i64: 1, 32>}, {pipeline_mode = #tpu.pipeline_mode<synchronous>, transform_indices = @transform_3, window_bounds = array<i64: 32, 96>}, {pipeline_mode = #tpu.pipeline_mode<synchronous>, transform_indices = @transform_4, window_bounds = array<i64: 1, 96>}, {transform_indices = @transform_5, window_bounds = array<i64: 1, 8, 32>}, {transform_indices = @transform_6, window_bounds = array<i64: 1, 8, 32>}, {transform_indices = @transform_7, window_bounds = array<i64: 1, 8, 32>}]} {
    %c0 = arith.constant 0 : index
    %c0_0 = arith.constant 0 : index
    %c0_1 = arith.constant 0 : index
    %0 = vector.load %arg2[%c0, %c0_0, %c0_1] : memref<1x8x32xf32, #tpu.memory_space<vmem>>, vector<1x8x32xf32>
    %1 = vector.shape_cast %0 : vector<1x8x32xf32> to vector<8x32xf32>
    %cst = arith.constant dense<0.000000e+00> : vector<8xf32>
    %2 = vector.multi_reduction <add>, %1, %cst [1] : vector<8x32xf32> to vector<8xf32>
    %3 = vector.shape_cast %2 : vector<8xf32> to vector<8x1xf32>
    %cst_2 = arith.constant 3.200000e+01 : f32
    %4 = vector.broadcast %cst_2 : f32 to vector<8x1xf32>
    %5 = arith.divf %3, %4 : vector<8x1xf32>
    %6 = vector.broadcast %5 : vector<8x1xf32> to vector<8x32xf32>
    %7 = arith.subf %1, %6 : vector<8x32xf32>
    %8 = vector.broadcast %5 : vector<8x1xf32> to vector<8x32xf32>
    %9 = arith.subf %1, %8 : vector<8x32xf32>
    %10 = arith.mulf %7, %9 : vector<8x32xf32>
    %cst_3 = arith.constant dense<0.000000e+00> : vector<8xf32>
    %11 = vector.multi_reduction <add>, %10, %cst_3 [1] : vector<8x32xf32> to vector<8xf32>
    %12 = vector.shape_cast %11 : vector<8xf32> to vector<8x1xf32>
    %cst_4 = arith.constant 3.200000e+01 : f32
    %13 = vector.broadcast %cst_4 : f32 to vector<8x1xf32>
    %14 = arith.divf %12, %13 : vector<8x1xf32>
    %15 = vector.broadcast %5 : vector<8x1xf32> to vector<8x32xf32>
    %16 = arith.subf %1, %15 : vector<8x32xf32>
    %cst_5 = arith.constant 9.99999974E-6 : f32
    %17 = vector.broadcast %cst_5 : f32 to vector<8x1xf32>
    %18 = arith.addf %14, %17 : vector<8x1xf32>
    %19 = math.rsqrt %18 : vector<8x1xf32>
    %20 = vector.broadcast %19 : vector<8x1xf32> to vector<8x32xf32>
    %21 = arith.mulf %16, %20 : vector<8x32xf32>
    %c0_6 = arith.constant 0 : index
    %c0_7 = arith.constant 0 : index
    %22 = vector.load %arg3[%c0_6, %c0_7] : memref<1x32xf32, #tpu.memory_space<vmem>>, vector<1x32xf32>
    %23 = vector.broadcast %22 : vector<1x32xf32> to vector<8x32xf32>
    %24 = arith.mulf %21, %23 : vector<8x32xf32>
    %c0_8 = arith.constant 0 : index
    %c0_9 = arith.constant 0 : index
    %25 = vector.load %arg4[%c0_8, %c0_9] : memref<1x32xf32, #tpu.memory_space<vmem>>, vector<1x32xf32>
    %26 = vector.broadcast %25 : vector<1x32xf32> to vector<8x32xf32>
    %27 = arith.addf %24, %26 : vector<8x32xf32>
    %28 = arith.truncf %27 : vector<8x32xf32> to vector<8x32xbf16>
    %c0_10 = arith.constant 0 : index
    %c0_11 = arith.constant 0 : index
    %29 = vector.load %arg5[%c0_10, %c0_11] : memref<32x96xbf16, #tpu.memory_space<vmem>>, vector<32x96xbf16>
    %cst_12 = arith.constant dense<0.000000e+00> : vector<8x96xf32>
    %30 = tpu.matmul %28, %29, %cst_12 {dimension_numbers = #tpu.dot_dimension_numbers<[1], [0], [0], [1], [0, 0, 1, 1], [], []>} : vector<8x32xbf16>, vector<32x96xbf16>, vector<8x96xf32> -> vector<8x96xf32>
    %c0_13 = arith.constant 0 : index
    %c0_14 = arith.constant 0 : index
    %31 = vector.load %arg6[%c0_13, %c0_14] : memref<1x96xf32, #tpu.memory_space<vmem>>, vector<1x96xf32>
    %32 = vector.broadcast %31 : vector<1x96xf32> to vector<8x96xf32>
    %33 = arith.addf %30, %32 : vector<8x96xf32>
    %34 = vector.extract_strided_slice %33 {offsets = [0, 0], sizes = [8, 32], strides = [1, 1]} : vector<8x96xf32> to vector<8x32xf32>
    %cst_15 = arith.constant 0.353553385 : f32
    %35 = vector.broadcast %cst_15 : f32 to vector<8x32xf32>
    %36 = arith.mulf %34, %35 : vector<8x32xf32>
    %37 = arith.truncf %36 : vector<8x32xf32> to vector<8x32xbf16>
    %c0_16 = arith.constant 0 : index
    %c0_17 = arith.constant 0 : index
    %c0_18 = arith.constant 0 : index
    %38 = vector.load %arg7[%c0_16, %c0_17, %c0_18] : memref<1x8x32xbf16, #tpu.memory_space<vmem>>, vector<1x8x32xbf16>
    %39 = vector.shape_cast %38 : vector<1x8x32xbf16> to vector<8x32xbf16>
    %40 = vector.shape_cast %37 : vector<8x32xbf16> to vector<1x8x32xbf16>
    tpu.vector_store %arg7[%c0_16, %c0_17, %c0_18], %40 {strides = array<i32>} : memref<1x8x32xbf16, #tpu.memory_space<vmem>>, vector<1x8x32xbf16>,
    %41 = vector.extract_strided_slice %33 {offsets = [0, 32], sizes = [8, 32], strides = [1, 1]} : vector<8x96xf32> to vector<8x32xf32>
    %42 = arith.truncf %41 : vector<8x32xf32> to vector<8x32xbf16>
    %c0_19 = arith.constant 0 : index
    %c0_20 = arith.constant 0 : index
    %c0_21 = arith.constant 0 : index
    %43 = vector.load %arg8[%c0_19, %c0_20, %c0_21] : memref<1x8x32xbf16, #tpu.memory_space<vmem>>, vector<1x8x32xbf16>
    %44 = vector.shape_cast %43 : vector<1x8x32xbf16> to vector<8x32xbf16>
    %45 = vector.shape_cast %42 : vector<8x32xbf16> to vector<1x8x32xbf16>
    tpu.vector_store %arg8[%c0_19, %c0_20, %c0_21], %45 {strides = array<i32>} : memref<1x8x32xbf16, #tpu.memory_space<vmem>>, vector<1x8x32xbf16>,
    %46 = vector.extract_strided_slice %33 {offsets = [0, 64], sizes = [8, 32], strides = [1, 1]} : vector<8x96xf32> to vector<8x32xf32>
    %47 = arith.truncf %46 : vector<8x32xf32> to vector<8x32xbf16>
    %c0_22 = arith.constant 0 : index
    %c0_23 = arith.constant 0 : index
    %c0_24 = arith.constant 0 : index
    %48 = vector.load %arg9[%c0_22, %c0_23, %c0_24] : memref<1x8x32xbf16, #tpu.memory_space<vmem>>, vector<1x8x32xbf16>
    %49 = vector.shape_cast %48 : vector<1x8x32xbf16> to vector<8x32xbf16>
    %50 = vector.shape_cast %47 : vector<8x32xbf16> to vector<1x8x32xbf16>
    tpu.vector_store %arg9[%c0_22, %c0_23, %c0_24], %50 {strides = array<i32>} : memref<1x8x32xbf16, #tpu.memory_space<vmem>>, vector<1x8x32xbf16>,
    return
  }
  func.func @transform_0(%arg0: i32, %arg1: i32) -> (i32, i32, i32) {
    %c0_i32 = arith.constant 0 : i32
    %c0_i32_0 = arith.constant 0 : i32
    return %arg0, %arg1, %c0_i32 : i32, i32, i32
  }
  func.func @transform_1(%arg0: i32, %arg1: i32) -> (i32, i32) {
    %c0_i32 = arith.constant 0 : i32
    %c0_i32_0 = arith.constant 0 : i32
    %c0_i32_1 = arith.constant 0 : i32
    return %c0_i32, %c0_i32_0 : i32, i32
  }
  func.func @transform_2(%arg0: i32, %arg1: i32) -> (i32, i32) {
    %c0_i32 = arith.constant 0 : i32
    %c0_i32_0 = arith.constant 0 : i32
    %c0_i32_1 = arith.constant 0 : i32
    return %c0_i32, %c0_i32_0 : i32, i32
  }
  func.func @transform_3(%arg0: i32, %arg1: i32) -> (i32, i32) {
    %c0_i32 = arith.constant 0 : i32
    %c0_i32_0 = arith.constant 0 : i32
    %c0_i32_1 = arith.constant 0 : i32
    return %c0_i32, %c0_i32_0 : i32, i32
  }
  func.func @transform_4(%arg0: i32, %arg1: i32) -> (i32, i32) {
    %c0_i32 = arith.constant 0 : i32
    %c0_i32_0 = arith.constant 0 : i32
    %c0_i32_1 = arith.constant 0 : i32
    return %c0_i32, %c0_i32_0 : i32, i32
  }
  func.func @transform_5(%arg0: i32, %arg1: i32) -> (i32, i32, i32) {
    %c0_i32 = arith.constant 0 : i32
    %c0_i32_0 = arith.constant 0 : i32
    return %arg0, %arg1, %c0_i32 : i32, i32, i32
  }
  func.func @transform_6(%arg0: i32, %arg1: i32) -> (i32, i32, i32) {
    %c0_i32 = arith.constant 0 : i32
    %c0_i32_0 = arith.constant 0 : i32
    return %arg0, %arg1, %c0_i32 : i32, i32, i32
  }
  func.func @transform_7(%arg0: i32, %arg1: i32) -> (i32, i32, i32) {
    %c0_i32 = arith.constant 0 : i32
    %c0_i32_0 = arith.constant 0 : i32
    return %arg0, %arg1, %c0_i32 : i32, i32, i32
  }
}

module attributes {stable_mosaic.version = 11 : i64} {
  func.func @_flash_attn_kernel(%arg0: i32, %arg1: i32, %arg2: i32, %arg3: memref<1xi32, #tpu.memory_space<smem>>, %arg4: memref<1xi32, #tpu.memory_space<smem>>, %arg5: memref<1x8x32xbf16, #tpu.memory_space<vmem>>, %arg6: memref<1x8x32xbf16, #tpu.memory_space<vmem>>, %arg7: memref<1x8x32xbf16, #tpu.memory_space<vmem>>, %arg8: memref<1x8x32xbf16, #tpu.memory_space<vmem>>, %arg9: memref<4x8x1xf32, #tpu.memory_space<vmem>>, %arg10: memref<4x8x1xf32, #tpu.memory_space<vmem>>, %arg11: memref<8x32xf32, #tpu.memory_space<vmem>>) attributes {dimension_semantics = [#tpu.dimension_semantics<parallel>, #tpu.dimension_semantics<parallel>, #tpu.dimension_semantics<arbitrary>], iteration_bounds = array<i64: 2, 1, 1>, scalar_prefetch = 2 : i64, scratch_operands = 3 : i64, tpu.core_type = #tpu.core_type<tc>, window_params = [{transform_indices = @transform_0, window_bounds = array<i64: 1, 8, 32>}, {transform_indices = @transform_1, window_bounds = array<i64: 1, 8, 32>}, {transform_indices = @transform_2, window_bounds = array<i64: 1, 8, 32>}, {transform_indices = @transform_3, window_bounds = array<i64: 1, 8, 32>}]} {
    %0 = arith.index_cast %arg2 : i32 to index
    %1 = memref.load %arg3[%0] : memref<1xi32, #tpu.memory_space<smem>>
    %2 = arith.index_cast %arg2 : i32 to index
    %3 = memref.load %arg4[%2] : memref<1xi32, #tpu.memory_space<smem>>
    %c0_i32 = arith.constant 0 : i32
    %4 = arith.cmpi eq, %3, %c0_i32 : i32
    %5 = arith.extui %4 : i1 to i32
    %c0_i32_0 = arith.constant 0 : i32
    %6 = arith.cmpi ne, %5, %c0_i32_0 : i32
    scf.if %6 {
      %cst = arith.constant -1.000000e+30 : f32
      %13 = vector.broadcast %cst : f32 to vector<4x8x1xf32>
      %c0 = arith.constant 0 : index
      %c0_3 = arith.constant 0 : index
      %c0_4 = arith.constant 0 : index
      %14 = vector.load %arg9[%c0, %c0_3, %c0_4] : memref<4x8x1xf32, #tpu.memory_space<vmem>>, vector<4x8x1xf32>
      tpu.vector_store %arg9[%c0, %c0_3, %c0_4], %13 {strides = array<i32>} : memref<4x8x1xf32, #tpu.memory_space<vmem>>, vector<4x8x1xf32>,
      %cst_5 = arith.constant 0.000000e+00 : f32
      %15 = vector.broadcast %cst_5 : f32 to vector<4x8x1xf32>
      %c0_6 = arith.constant 0 : index
      %c0_7 = arith.constant 0 : index
      %c0_8 = arith.constant 0 : index
      %16 = vector.load %arg10[%c0_6, %c0_7, %c0_8] : memref<4x8x1xf32, #tpu.memory_space<vmem>>, vector<4x8x1xf32>
      tpu.vector_store %arg10[%c0_6, %c0_7, %c0_8], %15 {strides = array<i32>} : memref<4x8x1xf32, #tpu.memory_space<vmem>>, vector<4x8x1xf32>,
      %cst_9 = arith.constant 0.000000e+00 : f32
      %17 = vector.broadcast %cst_9 : f32 to vector<8x32xf32>
      %c0_10 = arith.constant 0 : index
      %c0_11 = arith.constant 0 : index
      %18 = vector.load %arg11[%c0_10, %c0_11] : memref<8x32xf32, #tpu.memory_space<vmem>>, vector<8x32xf32>
      tpu.vector_store %arg11[%c0_10, %c0_11], %17 {strides = array<i32>} : memref<8x32xf32, #tpu.memory_space<vmem>>, vector<8x32xf32>,
    } else {
    }
    %7 = arith.cmpi slt, %3, %1 : i32
    %8 = arith.extui %7 : i1 to i32
    %c0_i32_1 = arith.constant 0 : i32
    %9 = arith.cmpi ne, %8, %c0_i32_1 : i32
    scf.if %9 {
      %c0 = arith.constant 0 : index
      %c0_3 = arith.constant 0 : index
      %c0_4 = arith.constant 0 : index
      %13 = vector.load %arg5[%c0, %c0_3, %c0_4] : memref<1x8x32xbf16, #tpu.memory_space<vmem>>, vector<1x8x8xbf16>
      %14 = vector.shape_cast %13 : vector<1x8x8xbf16> to vector<8x8xbf16>
      %c0_5 = arith.constant 0 : index
      %c0_6 = arith.constant 0 : index
      %c0_7 = arith.constant 0 : index
      %15 = vector.load %arg6[%c0_5, %c0_6, %c0_7] : memref<1x8x32xbf16, #tpu.memory_space<vmem>>, vector<1x8x8xbf16>
      %16 = vector.shape_cast %15 : vector<1x8x8xbf16> to vector<8x8xbf16>
      "tpu.trace_start"() <{level = 10 : i32, message = "td,sd->ts"}> : () -> ()
      %cst = arith.constant dense<0.000000e+00> : vector<8x8xf32>
      %17 = tpu.matmul %14, %16, %cst {dimension_numbers = #tpu.dot_dimension_numbers<[1], [1], [0], [0], [0, 0, 1, 0], [], []>} : vector<8x8xbf16>, vector<8x8xbf16>, vector<8x8xf32> -> vector<8x8xf32>
      "tpu.trace_stop"() : () -> ()
      %c0_8 = arith.constant 0 : index
      %c0_9 = arith.constant 0 : index
      %c0_10 = arith.constant 0 : index
      %18 = vector.load %arg9[%c0_8, %c0_9, %c0_10] : memref<4x8x1xf32, #tpu.memory_space<vmem>>, vector<1x8x1xf32>
      %19 = vector.shape_cast %18 : vector<1x8x1xf32> to vector<8x1xf32>
      %cst_11 = arith.constant dense<0xFF800000> : vector<8xf32>
      %20 = vector.multi_reduction <maximumf>, %17, %cst_11 [1] : vector<8x8xf32> to vector<8xf32>
      %21 = vector.shape_cast %20 : vector<8xf32> to vector<8x1xf32>
      %22 = arith.maximumf %19, %21 : vector<8x1xf32>
      %23 = arith.subf %19, %22 : vector<8x1xf32>
      %24 = math.exp %23 : vector<8x1xf32>
      %25 = vector.broadcast %22 : vector<8x1xf32> to vector<8x8xf32>
      %26 = arith.subf %17, %25 : vector<8x8xf32>
      %27 = math.exp %26 : vector<8x8xf32>
      %c0_12 = arith.constant 0 : index
      %c0_13 = arith.constant 0 : index
      %c0_14 = arith.constant 0 : index
      %28 = vector.load %arg10[%c0_12, %c0_13, %c0_14] : memref<4x8x1xf32, #tpu.memory_space<vmem>>, vector<1x8x1xf32>
      %29 = vector.shape_cast %28 : vector<1x8x1xf32> to vector<8x1xf32>
      %30 = arith.mulf %24, %29 : vector<8x1xf32>
      %cst_15 = arith.constant dense<0.000000e+00> : vector<8xf32>
      %31 = vector.multi_reduction <add>, %27, %cst_15 [1] : vector<8x8xf32> to vector<8xf32>
      %32 = vector.shape_cast %31 : vector<8xf32> to vector<8x1xf32>
      %33 = arith.addf %30, %32 : vector<8x1xf32>
      %c0_16 = arith.constant 0 : index
      %c0_17 = arith.constant 0 : index
      %c0_18 = arith.constant 0 : index
      %34 = vector.load %arg10[%c0_16, %c0_17, %c0_18] : memref<4x8x1xf32, #tpu.memory_space<vmem>>, vector<1x8x1xf32>
      %35 = vector.shape_cast %34 : vector<1x8x1xf32> to vector<8x1xf32>
      %36 = vector.shape_cast %33 : vector<8x1xf32> to vector<1x8x1xf32>
      tpu.vector_store %arg10[%c0_16, %c0_17, %c0_18], %36 {strides = array<i32>} : memref<4x8x1xf32, #tpu.memory_space<vmem>>, vector<1x8x1xf32>,
      %c0_19 = arith.constant 0 : index
      %c0_20 = arith.constant 0 : index
      %37 = vector.load %arg11[%c0_19, %c0_20] : memref<8x32xf32, #tpu.memory_space<vmem>>, vector<8x8xf32>
      %38 = vector.broadcast %24 : vector<8x1xf32> to vector<8x8xf32>
      %39 = arith.mulf %38, %37 : vector<8x8xf32>
      %40 = arith.truncf %27 : vector<8x8xf32> to vector<8x8xbf16>
      %c0_21 = arith.constant 0 : index
      %c0_22 = arith.constant 0 : index
      %c0_23 = arith.constant 0 : index
      %41 = vector.load %arg7[%c0_21, %c0_22, %c0_23] : memref<1x8x32xbf16, #tpu.memory_space<vmem>>, vector<1x8x8xbf16>
      %42 = vector.shape_cast %41 : vector<1x8x8xbf16> to vector<8x8xbf16>
      %cst_24 = arith.constant dense<0.000000e+00> : vector<8x8xf32>
      %43 = tpu.matmul %40, %42, %cst_24 {dimension_numbers = #tpu.dot_dimension_numbers<[1], [0], [0], [1], [0, 0, 1, 1], [], []>} : vector<8x8xbf16>, vector<8x8xbf16>, vector<8x8xf32> -> vector<8x8xf32>
      %44 = arith.addf %39, %43 : vector<8x8xf32>
      %c0_25 = arith.constant 0 : index
      %c0_26 = arith.constant 0 : index
      %45 = vector.load %arg11[%c0_25, %c0_26] : memref<8x32xf32, #tpu.memory_space<vmem>>, vector<8x8xf32>
      tpu.vector_store %arg11[%c0_25, %c0_26], %44 {strides = array<i32>} : memref<8x32xf32, #tpu.memory_space<vmem>>, vector<8x8xf32>,
      %c0_27 = arith.constant 0 : index
      %c0_28 = arith.constant 0 : index
      %c0_29 = arith.constant 0 : index
      %46 = vector.load %arg9[%c0_27, %c0_28, %c0_29] : memref<4x8x1xf32, #tpu.memory_space<vmem>>, vector<1x8x1xf32>
      %47 = vector.shape_cast %46 : vector<1x8x1xf32> to vector<8x1xf32>
      %48 = vector.shape_cast %22 : vector<8x1xf32> to vector<1x8x1xf32>
      tpu.vector_store %arg9[%c0_27, %c0_28, %c0_29], %48 {strides = array<i32>} : memref<4x8x1xf32, #tpu.memory_space<vmem>>, vector<1x8x1xf32>,
      %c0_30 = arith.constant 0 : index
      %c0_31 = arith.constant 0 : index
      %c8 = arith.constant 8 : index
      %49 = vector.load %arg5[%c0_30, %c0_31, %c8] : memref<1x8x32xbf16, #tpu.memory_space<vmem>>, vector<1x8x8xbf16>
      %50 = vector.shape_cast %49 : vector<1x8x8xbf16> to vector<8x8xbf16>
      %c0_32 = arith.constant 0 : index
      %c0_33 = arith.constant 0 : index
      %c8_34 = arith.constant 8 : index
      %51 = vector.load %arg6[%c0_32, %c0_33, %c8_34] : memref<1x8x32xbf16, #tpu.memory_space<vmem>>, vector<1x8x8xbf16>
      %52 = vector.shape_cast %51 : vector<1x8x8xbf16> to vector<8x8xbf16>
      "tpu.trace_start"() <{level = 10 : i32, message = "td,sd->ts"}> : () -> ()
      %cst_35 = arith.constant dense<0.000000e+00> : vector<8x8xf32>
      %53 = tpu.matmul %50, %52, %cst_35 {dimension_numbers = #tpu.dot_dimension_numbers<[1], [1], [0], [0], [0, 0, 1, 0], [], []>} : vector<8x8xbf16>, vector<8x8xbf16>, vector<8x8xf32> -> vector<8x8xf32>
      "tpu.trace_stop"() : () -> ()
      %c1 = arith.constant 1 : index
      %c0_36 = arith.constant 0 : index
      %c0_37 = arith.constant 0 : index
      %54 = vector.load %arg9[%c1, %c0_36, %c0_37] : memref<4x8x1xf32, #tpu.memory_space<vmem>>, vector<1x8x1xf32>
      %55 = vector.shape_cast %54 : vector<1x8x1xf32> to vector<8x1xf32>
      %cst_38 = arith.constant dense<0xFF800000> : vector<8xf32>
      %56 = vector.multi_reduction <maximumf>, %53, %cst_38 [1] : vector<8x8xf32> to vector<8xf32>
      %57 = vector.shape_cast %56 : vector<8xf32> to vector<8x1xf32>
      %58 = arith.maximumf %55, %57 : vector<8x1xf32>
      %59 = arith.subf %55, %58 : vector<8x1xf32>
      %60 = math.exp %59 : vector<8x1xf32>
      %61 = vector.broadcast %58 : vector<8x1xf32> to vector<8x8xf32>
      %62 = arith.subf %53, %61 : vector<8x8xf32>
      %63 = math.exp %62 : vector<8x8xf32>
      %c1_39 = arith.constant 1 : index
      %c0_40 = arith.constant 0 : index
      %c0_41 = arith.constant 0 : index
      %64 = vector.load %arg10[%c1_39, %c0_40, %c0_41] : memref<4x8x1xf32, #tpu.memory_space<vmem>>, vector<1x8x1xf32>
      %65 = vector.shape_cast %64 : vector<1x8x1xf32> to vector<8x1xf32>
      %66 = arith.mulf %60, %65 : vector<8x1xf32>
      %cst_42 = arith.constant dense<0.000000e+00> : vector<8xf32>
      %67 = vector.multi_reduction <add>, %63, %cst_42 [1] : vector<8x8xf32> to vector<8xf32>
      %68 = vector.shape_cast %67 : vector<8xf32> to vector<8x1xf32>
      %69 = arith.addf %66, %68 : vector<8x1xf32>
      %c1_43 = arith.constant 1 : index
      %c0_44 = arith.constant 0 : index
      %c0_45 = arith.constant 0 : index
      %70 = vector.load %arg10[%c1_43, %c0_44, %c0_45] : memref<4x8x1xf32, #tpu.memory_space<vmem>>, vector<1x8x1xf32>
      %71 = vector.shape_cast %70 : vector<1x8x1xf32> to vector<8x1xf32>
      %72 = vector.shape_cast %69 : vector<8x1xf32> to vector<1x8x1xf32>
      tpu.vector_store %arg10[%c1_43, %c0_44, %c0_45], %72 {strides = array<i32>} : memref<4x8x1xf32, #tpu.memory_space<vmem>>, vector<1x8x1xf32>,
      %c0_46 = arith.constant 0 : index
      %c8_47 = arith.constant 8 : index
      %73 = vector.load %arg11[%c0_46, %c8_47] : memref<8x32xf32, #tpu.memory_space<vmem>>, vector<8x8xf32>
      %74 = vector.broadcast %60 : vector<8x1xf32> to vector<8x8xf32>
      %75 = arith.mulf %74, %73 : vector<8x8xf32>
      %76 = arith.truncf %63 : vector<8x8xf32> to vector<8x8xbf16>
      %c0_48 = arith.constant 0 : index
      %c0_49 = arith.constant 0 : index
      %c8_50 = arith.constant 8 : index
      %77 = vector.load %arg7[%c0_48, %c0_49, %c8_50] : memref<1x8x32xbf16, #tpu.memory_space<vmem>>, vector<1x8x8xbf16>
      %78 = vector.shape_cast %77 : vector<1x8x8xbf16> to vector<8x8xbf16>
      %cst_51 = arith.constant dense<0.000000e+00> : vector<8x8xf32>
      %79 = tpu.matmul %76, %78, %cst_51 {dimension_numbers = #tpu.dot_dimension_numbers<[1], [0], [0], [1], [0, 0, 1, 1], [], []>} : vector<8x8xbf16>, vector<8x8xbf16>, vector<8x8xf32> -> vector<8x8xf32>
      %80 = arith.addf %75, %79 : vector<8x8xf32>
      %c0_52 = arith.constant 0 : index
      %c8_53 = arith.constant 8 : index
      %81 = vector.load %arg11[%c0_52, %c8_53] : memref<8x32xf32, #tpu.memory_space<vmem>>, vector<8x8xf32>
      tpu.vector_store %arg11[%c0_52, %c8_53], %80 {strides = array<i32>} : memref<8x32xf32, #tpu.memory_space<vmem>>, vector<8x8xf32>,
      %c1_54 = arith.constant 1 : index
      %c0_55 = arith.constant 0 : index
      %c0_56 = arith.constant 0 : index
      %82 = vector.load %arg9[%c1_54, %c0_55, %c0_56] : memref<4x8x1xf32, #tpu.memory_space<vmem>>, vector<1x8x1xf32>
      %83 = vector.shape_cast %82 : vector<1x8x1xf32> to vector<8x1xf32>
      %84 = vector.shape_cast %58 : vector<8x1xf32> to vector<1x8x1xf32>
      tpu.vector_store %arg9[%c1_54, %c0_55, %c0_56], %84 {strides = array<i32>} : memref<4x8x1xf32, #tpu.memory_space<vmem>>, vector<1x8x1xf32>,
      %c0_57 = arith.constant 0 : index
      %c0_58 = arith.constant 0 : index
      %c16 = arith.constant 16 : index
      %85 = vector.load %arg5[%c0_57, %c0_58, %c16] : memref<1x8x32xbf16, #tpu.memory_space<vmem>>, vector<1x8x8xbf16>
      %86 = vector.shape_cast %85 : vector<1x8x8xbf16> to vector<8x8xbf16>
      %c0_59 = arith.constant 0 : index
      %c0_60 = arith.constant 0 : index
      %c16_61 = arith.constant 16 : index
      %87 = vector.load %arg6[%c0_59, %c0_60, %c16_61] : memref<1x8x32xbf16, #tpu.memory_space<vmem>>, vector<1x8x8xbf16>
      %88 = vector.shape_cast %87 : vector<1x8x8xbf16> to vector<8x8xbf16>
      "tpu.trace_start"() <{level = 10 : i32, message = "td,sd->ts"}> : () -> ()
      %cst_62 = arith.constant dense<0.000000e+00> : vector<8x8xf32>
      %89 = tpu.matmul %86, %88, %cst_62 {dimension_numbers = #tpu.dot_dimension_numbers<[1], [1], [0], [0], [0, 0, 1, 0], [], []>} : vector<8x8xbf16>, vector<8x8xbf16>, vector<8x8xf32> -> vector<8x8xf32>
      "tpu.trace_stop"() : () -> ()
      %c2 = arith.constant 2 : index
      %c0_63 = arith.constant 0 : index
      %c0_64 = arith.constant 0 : index
      %90 = vector.load %arg9[%c2, %c0_63, %c0_64] : memref<4x8x1xf32, #tpu.memory_space<vmem>>, vector<1x8x1xf32>
      %91 = vector.shape_cast %90 : vector<1x8x1xf32> to vector<8x1xf32>
      %cst_65 = arith.constant dense<0xFF800000> : vector<8xf32>
      %92 = vector.multi_reduction <maximumf>, %89, %cst_65 [1] : vector<8x8xf32> to vector<8xf32>
      %93 = vector.shape_cast %92 : vector<8xf32> to vector<8x1xf32>
      %94 = arith.maximumf %91, %93 : vector<8x1xf32>
      %95 = arith.subf %91, %94 : vector<8x1xf32>
      %96 = math.exp %95 : vector<8x1xf32>
      %97 = vector.broadcast %94 : vector<8x1xf32> to vector<8x8xf32>
      %98 = arith.subf %89, %97 : vector<8x8xf32>
      %99 = math.exp %98 : vector<8x8xf32>
      %c2_66 = arith.constant 2 : index
      %c0_67 = arith.constant 0 : index
      %c0_68 = arith.constant 0 : index
      %100 = vector.load %arg10[%c2_66, %c0_67, %c0_68] : memref<4x8x1xf32, #tpu.memory_space<vmem>>, vector<1x8x1xf32>
      %101 = vector.shape_cast %100 : vector<1x8x1xf32> to vector<8x1xf32>
      %102 = arith.mulf %96, %101 : vector<8x1xf32>
      %cst_69 = arith.constant dense<0.000000e+00> : vector<8xf32>
      %103 = vector.multi_reduction <add>, %99, %cst_69 [1] : vector<8x8xf32> to vector<8xf32>
      %104 = vector.shape_cast %103 : vector<8xf32> to vector<8x1xf32>
      %105 = arith.addf %102, %104 : vector<8x1xf32>
      %c2_70 = arith.constant 2 : index
      %c0_71 = arith.constant 0 : index
      %c0_72 = arith.constant 0 : index
      %106 = vector.load %arg10[%c2_70, %c0_71, %c0_72] : memref<4x8x1xf32, #tpu.memory_space<vmem>>, vector<1x8x1xf32>
      %107 = vector.shape_cast %106 : vector<1x8x1xf32> to vector<8x1xf32>
      %108 = vector.shape_cast %105 : vector<8x1xf32> to vector<1x8x1xf32>
      tpu.vector_store %arg10[%c2_70, %c0_71, %c0_72], %108 {strides = array<i32>} : memref<4x8x1xf32, #tpu.memory_space<vmem>>, vector<1x8x1xf32>,
      %c0_73 = arith.constant 0 : index
      %c16_74 = arith.constant 16 : index
      %109 = vector.load %arg11[%c0_73, %c16_74] : memref<8x32xf32, #tpu.memory_space<vmem>>, vector<8x8xf32>
      %110 = vector.broadcast %96 : vector<8x1xf32> to vector<8x8xf32>
      %111 = arith.mulf %110, %109 : vector<8x8xf32>
      %112 = arith.truncf %99 : vector<8x8xf32> to vector<8x8xbf16>
      %c0_75 = arith.constant 0 : index
      %c0_76 = arith.constant 0 : index
      %c16_77 = arith.constant 16 : index
      %113 = vector.load %arg7[%c0_75, %c0_76, %c16_77] : memref<1x8x32xbf16, #tpu.memory_space<vmem>>, vector<1x8x8xbf16>
      %114 = vector.shape_cast %113 : vector<1x8x8xbf16> to vector<8x8xbf16>
      %cst_78 = arith.constant dense<0.000000e+00> : vector<8x8xf32>
      %115 = tpu.matmul %112, %114, %cst_78 {dimension_numbers = #tpu.dot_dimension_numbers<[1], [0], [0], [1], [0, 0, 1, 1], [], []>} : vector<8x8xbf16>, vector<8x8xbf16>, vector<8x8xf32> -> vector<8x8xf32>
      %116 = arith.addf %111, %115 : vector<8x8xf32>
      %c0_79 = arith.constant 0 : index
      %c16_80 = arith.constant 16 : index
      %117 = vector.load %arg11[%c0_79, %c16_80] : memref<8x32xf32, #tpu.memory_space<vmem>>, vector<8x8xf32>
      tpu.vector_store %arg11[%c0_79, %c16_80], %116 {strides = array<i32>} : memref<8x32xf32, #tpu.memory_space<vmem>>, vector<8x8xf32>,
      %c2_81 = arith.constant 2 : index
      %c0_82 = arith.constant 0 : index
      %c0_83 = arith.constant 0 : index
      %118 = vector.load %arg9[%c2_81, %c0_82, %c0_83] : memref<4x8x1xf32, #tpu.memory_space<vmem>>, vector<1x8x1xf32>
      %119 = vector.shape_cast %118 : vector<1x8x1xf32> to vector<8x1xf32>
      %120 = vector.shape_cast %94 : vector<8x1xf32> to vector<1x8x1xf32>
      tpu.vector_store %arg9[%c2_81, %c0_82, %c0_83], %120 {strides = array<i32>} : memref<4x8x1xf32, #tpu.memory_space<vmem>>, vector<1x8x1xf32>,
      %c0_84 = arith.constant 0 : index
      %c0_85 = arith.constant 0 : index
      %c24 = arith.constant 24 : index
      %121 = vector.load %arg5[%c0_84, %c0_85, %c24] : memref<1x8x32xbf16, #tpu.memory_space<vmem>>, vector<1x8x8xbf16>
      %122 = vector.shape_cast %121 : vector<1x8x8xbf16> to vector<8x8xbf16>
      %c0_86 = arith.constant 0 : index
      %c0_87 = arith.constant 0 : index
      %c24_88 = arith.constant 24 : index
      %123 = vector.load %arg6[%c0_86, %c0_87, %c24_88] : memref<1x8x32xbf16, #tpu.memory_space<vmem>>, vector<1x8x8xbf16>
      %124 = vector.shape_cast %123 : vector<1x8x8xbf16> to vector<8x8xbf16>
      "tpu.trace_start"() <{level = 10 : i32, message = "td,sd->ts"}> : () -> ()
      %cst_89 = arith.constant dense<0.000000e+00> : vector<8x8xf32>
      %125 = tpu.matmul %122, %124, %cst_89 {dimension_numbers = #tpu.dot_dimension_numbers<[1], [1], [0], [0], [0, 0, 1, 0], [], []>} : vector<8x8xbf16>, vector<8x8xbf16>, vector<8x8xf32> -> vector<8x8xf32>
      "tpu.trace_stop"() : () -> ()
      %c3 = arith.constant 3 : index
      %c0_90 = arith.constant 0 : index
      %c0_91 = arith.constant 0 : index
      %126 = vector.load %arg9[%c3, %c0_90, %c0_91] : memref<4x8x1xf32, #tpu.memory_space<vmem>>, vector<1x8x1xf32>
      %127 = vector.shape_cast %126 : vector<1x8x1xf32> to vector<8x1xf32>
      %cst_92 = arith.constant dense<0xFF800000> : vector<8xf32>
      %128 = vector.multi_reduction <maximumf>, %125, %cst_92 [1] : vector<8x8xf32> to vector<8xf32>
      %129 = vector.shape_cast %128 : vector<8xf32> to vector<8x1xf32>
      %130 = arith.maximumf %127, %129 : vector<8x1xf32>
      %131 = arith.subf %127, %130 : vector<8x1xf32>
      %132 = math.exp %131 : vector<8x1xf32>
      %133 = vector.broadcast %130 : vector<8x1xf32> to vector<8x8xf32>
      %134 = arith.subf %125, %133 : vector<8x8xf32>
      %135 = math.exp %134 : vector<8x8xf32>
      %c3_93 = arith.constant 3 : index
      %c0_94 = arith.constant 0 : index
      %c0_95 = arith.constant 0 : index
      %136 = vector.load %arg10[%c3_93, %c0_94, %c0_95] : memref<4x8x1xf32, #tpu.memory_space<vmem>>, vector<1x8x1xf32>
      %137 = vector.shape_cast %136 : vector<1x8x1xf32> to vector<8x1xf32>
      %138 = arith.mulf %132, %137 : vector<8x1xf32>
      %cst_96 = arith.constant dense<0.000000e+00> : vector<8xf32>
      %139 = vector.multi_reduction <add>, %135, %cst_96 [1] : vector<8x8xf32> to vector<8xf32>
      %140 = vector.shape_cast %139 : vector<8xf32> to vector<8x1xf32>
      %141 = arith.addf %138, %140 : vector<8x1xf32>
      %c3_97 = arith.constant 3 : index
      %c0_98 = arith.constant 0 : index
      %c0_99 = arith.constant 0 : index
      %142 = vector.load %arg10[%c3_97, %c0_98, %c0_99] : memref<4x8x1xf32, #tpu.memory_space<vmem>>, vector<1x8x1xf32>
      %143 = vector.shape_cast %142 : vector<1x8x1xf32> to vector<8x1xf32>
      %144 = vector.shape_cast %141 : vector<8x1xf32> to vector<1x8x1xf32>
      tpu.vector_store %arg10[%c3_97, %c0_98, %c0_99], %144 {strides = array<i32>} : memref<4x8x1xf32, #tpu.memory_space<vmem>>, vector<1x8x1xf32>,
      %c0_100 = arith.constant 0 : index
      %c24_101 = arith.constant 24 : index
      %145 = vector.load %arg11[%c0_100, %c24_101] : memref<8x32xf32, #tpu.memory_space<vmem>>, vector<8x8xf32>
      %146 = vector.broadcast %132 : vector<8x1xf32> to vector<8x8xf32>
      %147 = arith.mulf %146, %145 : vector<8x8xf32>
      %148 = arith.truncf %135 : vector<8x8xf32> to vector<8x8xbf16>
      %c0_102 = arith.constant 0 : index
      %c0_103 = arith.constant 0 : index
      %c24_104 = arith.constant 24 : index
      %149 = vector.load %arg7[%c0_102, %c0_103, %c24_104] : memref<1x8x32xbf16, #tpu.memory_space<vmem>>, vector<1x8x8xbf16>
      %150 = vector.shape_cast %149 : vector<1x8x8xbf16> to vector<8x8xbf16>
      %cst_105 = arith.constant dense<0.000000e+00> : vector<8x8xf32>
      %151 = tpu.matmul %148, %150, %cst_105 {dimension_numbers = #tpu.dot_dimension_numbers<[1], [0], [0], [1], [0, 0, 1, 1], [], []>} : vector<8x8xbf16>, vector<8x8xbf16>, vector<8x8xf32> -> vector<8x8xf32>
      %152 = arith.addf %147, %151 : vector<8x8xf32>
      %c0_106 = arith.constant 0 : index
      %c24_107 = arith.constant 24 : index
      %153 = vector.load %arg11[%c0_106, %c24_107] : memref<8x32xf32, #tpu.memory_space<vmem>>, vector<8x8xf32>
      tpu.vector_store %arg11[%c0_106, %c24_107], %152 {strides = array<i32>} : memref<8x32xf32, #tpu.memory_space<vmem>>, vector<8x8xf32>,
      %c3_108 = arith.constant 3 : index
      %c0_109 = arith.constant 0 : index
      %c0_110 = arith.constant 0 : index
      %154 = vector.load %arg9[%c3_108, %c0_109, %c0_110] : memref<4x8x1xf32, #tpu.memory_space<vmem>>, vector<1x8x1xf32>
      %155 = vector.shape_cast %154 : vector<1x8x1xf32> to vector<8x1xf32>
      %156 = vector.shape_cast %130 : vector<8x1xf32> to vector<1x8x1xf32>
      tpu.vector_store %arg9[%c3_108, %c0_109, %c0_110], %156 {strides = array<i32>} : memref<4x8x1xf32, #tpu.memory_space<vmem>>, vector<1x8x1xf32>,
    } else {
    }
    %10 = arith.cmpi eq, %3, %1 : i32
    %11 = arith.extui %10 : i1 to i32
    %c0_i32_2 = arith.constant 0 : i32
    %12 = arith.cmpi ne, %11, %c0_i32_2 : i32
    scf.if %12 {
      %13 = tpu.iota {dimensions = array<i32: 0>} : vector<8x8xi32>
      %14 = tpu.iota {dimensions = array<i32: 1>} : vector<8x8xi32>
      %15 = arith.cmpi sle, %14, %13 : vector<8x8xi32>
      %c0 = arith.constant 0 : index
      %c0_3 = arith.constant 0 : index
      %c0_4 = arith.constant 0 : index
      %16 = vector.load %arg5[%c0, %c0_3, %c0_4] : memref<1x8x32xbf16, #tpu.memory_space<vmem>>, vector<1x8x8xbf16>
      %17 = vector.shape_cast %16 : vector<1x8x8xbf16> to vector<8x8xbf16>
      %c0_5 = arith.constant 0 : index
      %c0_6 = arith.constant 0 : index
      %c0_7 = arith.constant 0 : index
      %18 = vector.load %arg6[%c0_5, %c0_6, %c0_7] : memref<1x8x32xbf16, #tpu.memory_space<vmem>>, vector<1x8x8xbf16>
      %19 = vector.shape_cast %18 : vector<1x8x8xbf16> to vector<8x8xbf16>
      "tpu.trace_start"() <{level = 10 : i32, message = "td,sd->ts"}> : () -> ()
      %cst = arith.constant dense<0.000000e+00> : vector<8x8xf32>
      %20 = tpu.matmul %17, %19, %cst {dimension_numbers = #tpu.dot_dimension_numbers<[1], [1], [0], [0], [0, 0, 1, 0], [], []>} : vector<8x8xbf16>, vector<8x8xbf16>, vector<8x8xf32> -> vector<8x8xf32>
      %cst_8 = arith.constant -1.000000e+30 : f32
      "tpu.trace_stop"() : () -> ()
      %21 = vector.broadcast %cst_8 : f32 to vector<8x8xf32>
      %22 = arith.select %15, %20, %21 : vector<8x8xi1>, vector<8x8xf32>
      %c0_9 = arith.constant 0 : index
      %c0_10 = arith.constant 0 : index
      %c0_11 = arith.constant 0 : index
      %23 = vector.load %arg9[%c0_9, %c0_10, %c0_11] : memref<4x8x1xf32, #tpu.memory_space<vmem>>, vector<1x8x1xf32>
      %24 = vector.shape_cast %23 : vector<1x8x1xf32> to vector<8x1xf32>
      %cst_12 = arith.constant dense<0xFF800000> : vector<8xf32>
      %25 = vector.multi_reduction <maximumf>, %22, %cst_12 [1] : vector<8x8xf32> to vector<8xf32>
      %26 = vector.shape_cast %25 : vector<8xf32> to vector<8x1xf32>
      %27 = arith.maximumf %24, %26 : vector<8x1xf32>
      %28 = arith.subf %24, %27 : vector<8x1xf32>
      %29 = math.exp %28 : vector<8x1xf32>
      %30 = vector.broadcast %27 : vector<8x1xf32> to vector<8x8xf32>
      %31 = arith.subf %22, %30 : vector<8x8xf32>
      %32 = math.exp %31 : vector<8x8xf32>
      %c0_13 = arith.constant 0 : index
      %c0_14 = arith.constant 0 : index
      %c0_15 = arith.constant 0 : index
      %33 = vector.load %arg10[%c0_13, %c0_14, %c0_15] : memref<4x8x1xf32, #tpu.memory_space<vmem>>, vector<1x8x1xf32>
      %34 = vector.shape_cast %33 : vector<1x8x1xf32> to vector<8x1xf32>
      %35 = arith.mulf %29, %34 : vector<8x1xf32>
      %cst_16 = arith.constant dense<0.000000e+00> : vector<8xf32>
      %36 = vector.multi_reduction <add>, %32, %cst_16 [1] : vector<8x8xf32> to vector<8xf32>
      %37 = vector.shape_cast %36 : vector<8xf32> to vector<8x1xf32>
      %38 = arith.addf %35, %37 : vector<8x1xf32>
      %c0_17 = arith.constant 0 : index
      %c0_18 = arith.constant 0 : index
      %c0_19 = arith.constant 0 : index
      %39 = vector.load %arg10[%c0_17, %c0_18, %c0_19] : memref<4x8x1xf32, #tpu.memory_space<vmem>>, vector<1x8x1xf32>
      %40 = vector.shape_cast %39 : vector<1x8x1xf32> to vector<8x1xf32>
      %41 = vector.shape_cast %38 : vector<8x1xf32> to vector<1x8x1xf32>
      tpu.vector_store %arg10[%c0_17, %c0_18, %c0_19], %41 {strides = array<i32>} : memref<4x8x1xf32, #tpu.memory_space<vmem>>, vector<1x8x1xf32>,
      %c0_20 = arith.constant 0 : index
      %c0_21 = arith.constant 0 : index
      %42 = vector.load %arg11[%c0_20, %c0_21] : memref<8x32xf32, #tpu.memory_space<vmem>>, vector<8x8xf32>
      %43 = vector.broadcast %29 : vector<8x1xf32> to vector<8x8xf32>
      %44 = arith.mulf %43, %42 : vector<8x8xf32>
      %45 = arith.truncf %32 : vector<8x8xf32> to vector<8x8xbf16>
      %c0_22 = arith.constant 0 : index
      %c0_23 = arith.constant 0 : index
      %c0_24 = arith.constant 0 : index
      %46 = vector.load %arg7[%c0_22, %c0_23, %c0_24] : memref<1x8x32xbf16, #tpu.memory_space<vmem>>, vector<1x8x8xbf16>
      %47 = vector.shape_cast %46 : vector<1x8x8xbf16> to vector<8x8xbf16>
      %cst_25 = arith.constant dense<0.000000e+00> : vector<8x8xf32>
      %48 = tpu.matmul %45, %47, %cst_25 {dimension_numbers = #tpu.dot_dimension_numbers<[1], [0], [0], [1], [0, 0, 1, 1], [], []>} : vector<8x8xbf16>, vector<8x8xbf16>, vector<8x8xf32> -> vector<8x8xf32>
      %49 = arith.addf %44, %48 : vector<8x8xf32>
      %c0_26 = arith.constant 0 : index
      %c0_27 = arith.constant 0 : index
      %50 = vector.load %arg11[%c0_26, %c0_27] : memref<8x32xf32, #tpu.memory_space<vmem>>, vector<8x8xf32>
      tpu.vector_store %arg11[%c0_26, %c0_27], %49 {strides = array<i32>} : memref<8x32xf32, #tpu.memory_space<vmem>>, vector<8x8xf32>,
      %c0_28 = arith.constant 0 : index
      %c0_29 = arith.constant 0 : index
      %c0_30 = arith.constant 0 : index
      %51 = vector.load %arg9[%c0_28, %c0_29, %c0_30] : memref<4x8x1xf32, #tpu.memory_space<vmem>>, vector<1x8x1xf32>
      %52 = vector.shape_cast %51 : vector<1x8x1xf32> to vector<8x1xf32>
      %53 = vector.shape_cast %27 : vector<8x1xf32> to vector<1x8x1xf32>
      tpu.vector_store %arg9[%c0_28, %c0_29, %c0_30], %53 {strides = array<i32>} : memref<4x8x1xf32, #tpu.memory_space<vmem>>, vector<1x8x1xf32>,
      %c0_31 = arith.constant 0 : index
      %c0_32 = arith.constant 0 : index
      %c8 = arith.constant 8 : index
      %54 = vector.load %arg5[%c0_31, %c0_32, %c8] : memref<1x8x32xbf16, #tpu.memory_space<vmem>>, vector<1x8x8xbf16>
      %55 = vector.shape_cast %54 : vector<1x8x8xbf16> to vector<8x8xbf16>
      %c0_33 = arith.constant 0 : index
      %c0_34 = arith.constant 0 : index
      %c8_35 = arith.constant 8 : index
      %56 = vector.load %arg6[%c0_33, %c0_34, %c8_35] : memref<1x8x32xbf16, #tpu.memory_space<vmem>>, vector<1x8x8xbf16>
      %57 = vector.shape_cast %56 : vector<1x8x8xbf16> to vector<8x8xbf16>
      "tpu.trace_start"() <{level = 10 : i32, message = "td,sd->ts"}> : () -> ()
      %cst_36 = arith.constant dense<0.000000e+00> : vector<8x8xf32>
      %58 = tpu.matmul %55, %57, %cst_36 {dimension_numbers = #tpu.dot_dimension_numbers<[1], [1], [0], [0], [0, 0, 1, 0], [], []>} : vector<8x8xbf16>, vector<8x8xbf16>, vector<8x8xf32> -> vector<8x8xf32>
      %cst_37 = arith.constant -1.000000e+30 : f32
      "tpu.trace_stop"() : () -> ()
      %59 = vector.broadcast %cst_37 : f32 to vector<8x8xf32>
      %60 = arith.select %15, %58, %59 : vector<8x8xi1>, vector<8x8xf32>
      %c1 = arith.constant 1 : index
      %c0_38 = arith.constant 0 : index
      %c0_39 = arith.constant 0 : index
      %61 = vector.load %arg9[%c1, %c0_38, %c0_39] : memref<4x8x1xf32, #tpu.memory_space<vmem>>, vector<1x8x1xf32>
      %62 = vector.shape_cast %61 : vector<1x8x1xf32> to vector<8x1xf32>
      %cst_40 = arith.constant dense<0xFF800000> : vector<8xf32>
      %63 = vector.multi_reduction <maximumf>, %60, %cst_40 [1] : vector<8x8xf32> to vector<8xf32>
      %64 = vector.shape_cast %63 : vector<8xf32> to vector<8x1xf32>
      %65 = arith.maximumf %62, %64 : vector<8x1xf32>
      %66 = arith.subf %62, %65 : vector<8x1xf32>
      %67 = math.exp %66 : vector<8x1xf32>
      %68 = vector.broadcast %65 : vector<8x1xf32> to vector<8x8xf32>
      %69 = arith.subf %60, %68 : vector<8x8xf32>
      %70 = math.exp %69 : vector<8x8xf32>
      %c1_41 = arith.constant 1 : index
      %c0_42 = arith.constant 0 : index
      %c0_43 = arith.constant 0 : index
      %71 = vector.load %arg10[%c1_41, %c0_42, %c0_43] : memref<4x8x1xf32, #tpu.memory_space<vmem>>, vector<1x8x1xf32>
      %72 = vector.shape_cast %71 : vector<1x8x1xf32> to vector<8x1xf32>
      %73 = arith.mulf %67, %72 : vector<8x1xf32>
      %cst_44 = arith.constant dense<0.000000e+00> : vector<8xf32>
      %74 = vector.multi_reduction <add>, %70, %cst_44 [1] : vector<8x8xf32> to vector<8xf32>
      %75 = vector.shape_cast %74 : vector<8xf32> to vector<8x1xf32>
      %76 = arith.addf %73, %75 : vector<8x1xf32>
      %c1_45 = arith.constant 1 : index
      %c0_46 = arith.constant 0 : index
      %c0_47 = arith.constant 0 : index
      %77 = vector.load %arg10[%c1_45, %c0_46, %c0_47] : memref<4x8x1xf32, #tpu.memory_space<vmem>>, vector<1x8x1xf32>
      %78 = vector.shape_cast %77 : vector<1x8x1xf32> to vector<8x1xf32>
      %79 = vector.shape_cast %76 : vector<8x1xf32> to vector<1x8x1xf32>
      tpu.vector_store %arg10[%c1_45, %c0_46, %c0_47], %79 {strides = array<i32>} : memref<4x8x1xf32, #tpu.memory_space<vmem>>, vector<1x8x1xf32>,
      %c0_48 = arith.constant 0 : index
      %c8_49 = arith.constant 8 : index
      %80 = vector.load %arg11[%c0_48, %c8_49] : memref<8x32xf32, #tpu.memory_space<vmem>>, vector<8x8xf32>
      %81 = vector.broadcast %67 : vector<8x1xf32> to vector<8x8xf32>
      %82 = arith.mulf %81, %80 : vector<8x8xf32>
      %83 = arith.truncf %70 : vector<8x8xf32> to vector<8x8xbf16>
      %c0_50 = arith.constant 0 : index
      %c0_51 = arith.constant 0 : index
      %c8_52 = arith.constant 8 : index
      %84 = vector.load %arg7[%c0_50, %c0_51, %c8_52] : memref<1x8x32xbf16, #tpu.memory_space<vmem>>, vector<1x8x8xbf16>
      %85 = vector.shape_cast %84 : vector<1x8x8xbf16> to vector<8x8xbf16>
      %cst_53 = arith.constant dense<0.000000e+00> : vector<8x8xf32>
      %86 = tpu.matmul %83, %85, %cst_53 {dimension_numbers = #tpu.dot_dimension_numbers<[1], [0], [0], [1], [0, 0, 1, 1], [], []>} : vector<8x8xbf16>, vector<8x8xbf16>, vector<8x8xf32> -> vector<8x8xf32>
      %87 = arith.addf %82, %86 : vector<8x8xf32>
      %c0_54 = arith.constant 0 : index
      %c8_55 = arith.constant 8 : index
      %88 = vector.load %arg11[%c0_54, %c8_55] : memref<8x32xf32, #tpu.memory_space<vmem>>, vector<8x8xf32>
      tpu.vector_store %arg11[%c0_54, %c8_55], %87 {strides = array<i32>} : memref<8x32xf32, #tpu.memory_space<vmem>>, vector<8x8xf32>,
      %c1_56 = arith.constant 1 : index
      %c0_57 = arith.constant 0 : index
      %c0_58 = arith.constant 0 : index
      %89 = vector.load %arg9[%c1_56, %c0_57, %c0_58] : memref<4x8x1xf32, #tpu.memory_space<vmem>>, vector<1x8x1xf32>
      %90 = vector.shape_cast %89 : vector<1x8x1xf32> to vector<8x1xf32>
      %91 = vector.shape_cast %65 : vector<8x1xf32> to vector<1x8x1xf32>
      tpu.vector_store %arg9[%c1_56, %c0_57, %c0_58], %91 {strides = array<i32>} : memref<4x8x1xf32, #tpu.memory_space<vmem>>, vector<1x8x1xf32>,
      %c0_59 = arith.constant 0 : index
      %c0_60 = arith.constant 0 : index
      %c16 = arith.constant 16 : index
      %92 = vector.load %arg5[%c0_59, %c0_60, %c16] : memref<1x8x32xbf16, #tpu.memory_space<vmem>>, vector<1x8x8xbf16>
      %93 = vector.shape_cast %92 : vector<1x8x8xbf16> to vector<8x8xbf16>
      %c0_61 = arith.constant 0 : index
      %c0_62 = arith.constant 0 : index
      %c16_63 = arith.constant 16 : index
      %94 = vector.load %arg6[%c0_61, %c0_62, %c16_63] : memref<1x8x32xbf16, #tpu.memory_space<vmem>>, vector<1x8x8xbf16>
      %95 = vector.shape_cast %94 : vector<1x8x8xbf16> to vector<8x8xbf16>
      "tpu.trace_start"() <{level = 10 : i32, message = "td,sd->ts"}> : () -> ()
      %cst_64 = arith.constant dense<0.000000e+00> : vector<8x8xf32>
      %96 = tpu.matmul %93, %95, %cst_64 {dimension_numbers = #tpu.dot_dimension_numbers<[1], [1], [0], [0], [0, 0, 1, 0], [], []>} : vector<8x8xbf16>, vector<8x8xbf16>, vector<8x8xf32> -> vector<8x8xf32>
      %cst_65 = arith.constant -1.000000e+30 : f32
      "tpu.trace_stop"() : () -> ()
      %97 = vector.broadcast %cst_65 : f32 to vector<8x8xf32>
      %98 = arith.select %15, %96, %97 : vector<8x8xi1>, vector<8x8xf32>
      %c2 = arith.constant 2 : index
      %c0_66 = arith.constant 0 : index
      %c0_67 = arith.constant 0 : index
      %99 = vector.load %arg9[%c2, %c0_66, %c0_67] : memref<4x8x1xf32, #tpu.memory_space<vmem>>, vector<1x8x1xf32>
      %100 = vector.shape_cast %99 : vector<1x8x1xf32> to vector<8x1xf32>
      %cst_68 = arith.constant dense<0xFF800000> : vector<8xf32>
      %101 = vector.multi_reduction <maximumf>, %98, %cst_68 [1] : vector<8x8xf32> to vector<8xf32>
      %102 = vector.shape_cast %101 : vector<8xf32> to vector<8x1xf32>
      %103 = arith.maximumf %100, %102 : vector<8x1xf32>
      %104 = arith.subf %100, %103 : vector<8x1xf32>
      %105 = math.exp %104 : vector<8x1xf32>
      %106 = vector.broadcast %103 : vector<8x1xf32> to vector<8x8xf32>
      %107 = arith.subf %98, %106 : vector<8x8xf32>
      %108 = math.exp %107 : vector<8x8xf32>
      %c2_69 = arith.constant 2 : index
      %c0_70 = arith.constant 0 : index
      %c0_71 = arith.constant 0 : index
      %109 = vector.load %arg10[%c2_69, %c0_70, %c0_71] : memref<4x8x1xf32, #tpu.memory_space<vmem>>, vector<1x8x1xf32>
      %110 = vector.shape_cast %109 : vector<1x8x1xf32> to vector<8x1xf32>
      %111 = arith.mulf %105, %110 : vector<8x1xf32>
      %cst_72 = arith.constant dense<0.000000e+00> : vector<8xf32>
      %112 = vector.multi_reduction <add>, %108, %cst_72 [1] : vector<8x8xf32> to vector<8xf32>
      %113 = vector.shape_cast %112 : vector<8xf32> to vector<8x1xf32>
      %114 = arith.addf %111, %113 : vector<8x1xf32>
      %c2_73 = arith.constant 2 : index
      %c0_74 = arith.constant 0 : index
      %c0_75 = arith.constant 0 : index
      %115 = vector.load %arg10[%c2_73, %c0_74, %c0_75] : memref<4x8x1xf32, #tpu.memory_space<vmem>>, vector<1x8x1xf32>
      %116 = vector.shape_cast %115 : vector<1x8x1xf32> to vector<8x1xf32>
      %117 = vector.shape_cast %114 : vector<8x1xf32> to vector<1x8x1xf32>
      tpu.vector_store %arg10[%c2_73, %c0_74, %c0_75], %117 {strides = array<i32>} : memref<4x8x1xf32, #tpu.memory_space<vmem>>, vector<1x8x1xf32>,
      %c0_76 = arith.constant 0 : index
      %c16_77 = arith.constant 16 : index
      %118 = vector.load %arg11[%c0_76, %c16_77] : memref<8x32xf32, #tpu.memory_space<vmem>>, vector<8x8xf32>
      %119 = vector.broadcast %105 : vector<8x1xf32> to vector<8x8xf32>
      %120 = arith.mulf %119, %118 : vector<8x8xf32>
      %121 = arith.truncf %108 : vector<8x8xf32> to vector<8x8xbf16>
      %c0_78 = arith.constant 0 : index
      %c0_79 = arith.constant 0 : index
      %c16_80 = arith.constant 16 : index
      %122 = vector.load %arg7[%c0_78, %c0_79, %c16_80] : memref<1x8x32xbf16, #tpu.memory_space<vmem>>, vector<1x8x8xbf16>
      %123 = vector.shape_cast %122 : vector<1x8x8xbf16> to vector<8x8xbf16>
      %cst_81 = arith.constant dense<0.000000e+00> : vector<8x8xf32>
      %124 = tpu.matmul %121, %123, %cst_81 {dimension_numbers = #tpu.dot_dimension_numbers<[1], [0], [0], [1], [0, 0, 1, 1], [], []>} : vector<8x8xbf16>, vector<8x8xbf16>, vector<8x8xf32> -> vector<8x8xf32>
      %125 = arith.addf %120, %124 : vector<8x8xf32>
      %c0_82 = arith.constant 0 : index
      %c16_83 = arith.constant 16 : index
      %126 = vector.load %arg11[%c0_82, %c16_83] : memref<8x32xf32, #tpu.memory_space<vmem>>, vector<8x8xf32>
      tpu.vector_store %arg11[%c0_82, %c16_83], %125 {strides = array<i32>} : memref<8x32xf32, #tpu.memory_space<vmem>>, vector<8x8xf32>,
      %c2_84 = arith.constant 2 : index
      %c0_85 = arith.constant 0 : index
      %c0_86 = arith.constant 0 : index
      %127 = vector.load %arg9[%c2_84, %c0_85, %c0_86] : memref<4x8x1xf32, #tpu.memory_space<vmem>>, vector<1x8x1xf32>
      %128 = vector.shape_cast %127 : vector<1x8x1xf32> to vector<8x1xf32>
      %129 = vector.shape_cast %103 : vector<8x1xf32> to vector<1x8x1xf32>
      tpu.vector_store %arg9[%c2_84, %c0_85, %c0_86], %129 {strides = array<i32>} : memref<4x8x1xf32, #tpu.memory_space<vmem>>, vector<1x8x1xf32>,
      %c0_87 = arith.constant 0 : index
      %c0_88 = arith.constant 0 : index
      %c24 = arith.constant 24 : index
      %130 = vector.load %arg5[%c0_87, %c0_88, %c24] : memref<1x8x32xbf16, #tpu.memory_space<vmem>>, vector<1x8x8xbf16>
      %131 = vector.shape_cast %130 : vector<1x8x8xbf16> to vector<8x8xbf16>
      %c0_89 = arith.constant 0 : index
      %c0_90 = arith.constant 0 : index
      %c24_91 = arith.constant 24 : index
      %132 = vector.load %arg6[%c0_89, %c0_90, %c24_91] : memref<1x8x32xbf16, #tpu.memory_space<vmem>>, vector<1x8x8xbf16>
      %133 = vector.shape_cast %132 : vector<1x8x8xbf16> to vector<8x8xbf16>
      "tpu.trace_start"() <{level = 10 : i32, message = "td,sd->ts"}> : () -> ()
      %cst_92 = arith.constant dense<0.000000e+00> : vector<8x8xf32>
      %134 = tpu.matmul %131, %133, %cst_92 {dimension_numbers = #tpu.dot_dimension_numbers<[1], [1], [0], [0], [0, 0, 1, 0], [], []>} : vector<8x8xbf16>, vector<8x8xbf16>, vector<8x8xf32> -> vector<8x8xf32>
      %cst_93 = arith.constant -1.000000e+30 : f32
      "tpu.trace_stop"() : () -> ()
      %135 = vector.broadcast %cst_93 : f32 to vector<8x8xf32>
      %136 = arith.select %15, %134, %135 : vector<8x8xi1>, vector<8x8xf32>
      %c3 = arith.constant 3 : index
      %c0_94 = arith.constant 0 : index
      %c0_95 = arith.constant 0 : index
      %137 = vector.load %arg9[%c3, %c0_94, %c0_95] : memref<4x8x1xf32, #tpu.memory_space<vmem>>, vector<1x8x1xf32>
      %138 = vector.shape_cast %137 : vector<1x8x1xf32> to vector<8x1xf32>
      %cst_96 = arith.constant dense<0xFF800000> : vector<8xf32>
      %139 = vector.multi_reduction <maximumf>, %136, %cst_96 [1] : vector<8x8xf32> to vector<8xf32>
      %140 = vector.shape_cast %139 : vector<8xf32> to vector<8x1xf32>
      %141 = arith.maximumf %138, %140 : vector<8x1xf32>
      %142 = arith.subf %138, %141 : vector<8x1xf32>
      %143 = math.exp %142 : vector<8x1xf32>
      %144 = vector.broadcast %141 : vector<8x1xf32> to vector<8x8xf32>
      %145 = arith.subf %136, %144 : vector<8x8xf32>
      %146 = math.exp %145 : vector<8x8xf32>
      %c3_97 = arith.constant 3 : index
      %c0_98 = arith.constant 0 : index
      %c0_99 = arith.constant 0 : index
      %147 = vector.load %arg10[%c3_97, %c0_98, %c0_99] : memref<4x8x1xf32, #tpu.memory_space<vmem>>, vector<1x8x1xf32>
      %148 = vector.shape_cast %147 : vector<1x8x1xf32> to vector<8x1xf32>
      %149 = arith.mulf %143, %148 : vector<8x1xf32>
      %cst_100 = arith.constant dense<0.000000e+00> : vector<8xf32>
      %150 = vector.multi_reduction <add>, %146, %cst_100 [1] : vector<8x8xf32> to vector<8xf32>
      %151 = vector.shape_cast %150 : vector<8xf32> to vector<8x1xf32>
      %152 = arith.addf %149, %151 : vector<8x1xf32>
      %c3_101 = arith.constant 3 : index
      %c0_102 = arith.constant 0 : index
      %c0_103 = arith.constant 0 : index
      %153 = vector.load %arg10[%c3_101, %c0_102, %c0_103] : memref<4x8x1xf32, #tpu.memory_space<vmem>>, vector<1x8x1xf32>
      %154 = vector.shape_cast %153 : vector<1x8x1xf32> to vector<8x1xf32>
      %155 = vector.shape_cast %152 : vector<8x1xf32> to vector<1x8x1xf32>
      tpu.vector_store %arg10[%c3_101, %c0_102, %c0_103], %155 {strides = array<i32>} : memref<4x8x1xf32, #tpu.memory_space<vmem>>, vector<1x8x1xf32>,
      %c0_104 = arith.constant 0 : index
      %c24_105 = arith.constant 24 : index
      %156 = vector.load %arg11[%c0_104, %c24_105] : memref<8x32xf32, #tpu.memory_space<vmem>>, vector<8x8xf32>
      %157 = vector.broadcast %143 : vector<8x1xf32> to vector<8x8xf32>
      %158 = arith.mulf %157, %156 : vector<8x8xf32>
      %159 = arith.truncf %146 : vector<8x8xf32> to vector<8x8xbf16>
      %c0_106 = arith.constant 0 : index
      %c0_107 = arith.constant 0 : index
      %c24_108 = arith.constant 24 : index
      %160 = vector.load %arg7[%c0_106, %c0_107, %c24_108] : memref<1x8x32xbf16, #tpu.memory_space<vmem>>, vector<1x8x8xbf16>
      %161 = vector.shape_cast %160 : vector<1x8x8xbf16> to vector<8x8xbf16>
      %cst_109 = arith.constant dense<0.000000e+00> : vector<8x8xf32>
      %162 = tpu.matmul %159, %161, %cst_109 {dimension_numbers = #tpu.dot_dimension_numbers<[1], [0], [0], [1], [0, 0, 1, 1], [], []>} : vector<8x8xbf16>, vector<8x8xbf16>, vector<8x8xf32> -> vector<8x8xf32>
      %163 = arith.addf %158, %162 : vector<8x8xf32>
      %c0_110 = arith.constant 0 : index
      %c24_111 = arith.constant 24 : index
      %164 = vector.load %arg11[%c0_110, %c24_111] : memref<8x32xf32, #tpu.memory_space<vmem>>, vector<8x8xf32>
      tpu.vector_store %arg11[%c0_110, %c24_111], %163 {strides = array<i32>} : memref<8x32xf32, #tpu.memory_space<vmem>>, vector<8x8xf32>,
      %c3_112 = arith.constant 3 : index
      %c0_113 = arith.constant 0 : index
      %c0_114 = arith.constant 0 : index
      %165 = vector.load %arg9[%c3_112, %c0_113, %c0_114] : memref<4x8x1xf32, #tpu.memory_space<vmem>>, vector<1x8x1xf32>
      %166 = vector.shape_cast %165 : vector<1x8x1xf32> to vector<8x1xf32>
      %167 = vector.shape_cast %141 : vector<8x1xf32> to vector<1x8x1xf32>
      tpu.vector_store %arg9[%c3_112, %c0_113, %c0_114], %167 {strides = array<i32>} : memref<4x8x1xf32, #tpu.memory_space<vmem>>, vector<1x8x1xf32>,
      %c0_115 = arith.constant 0 : index
      %c0_116 = arith.constant 0 : index
      %c0_117 = arith.constant 0 : index
      %168 = vector.load %arg10[%c0_115, %c0_116, %c0_117] : memref<4x8x1xf32, #tpu.memory_space<vmem>>, vector<1x8x1xf32>
      %169 = vector.shape_cast %168 : vector<1x8x1xf32> to vector<8x1xf32>
      %170 = tpu.reciprocal %169 {approx = true} : vector<8x1xf32> -> vector<8x1xf32>
      %c0_118 = arith.constant 0 : index
      %c0_119 = arith.constant 0 : index
      %171 = vector.load %arg11[%c0_118, %c0_119] : memref<8x32xf32, #tpu.memory_space<vmem>>, vector<8x8xf32>
      %172 = vector.broadcast %170 : vector<8x1xf32> to vector<8x8xf32>
      %173 = arith.mulf %171, %172 : vector<8x8xf32>
      %c1_120 = arith.constant 1 : index
      %c0_121 = arith.constant 0 : index
      %c0_122 = arith.constant 0 : index
      %174 = vector.load %arg10[%c1_120, %c0_121, %c0_122] : memref<4x8x1xf32, #tpu.memory_space<vmem>>, vector<1x8x1xf32>
      %175 = vector.shape_cast %174 : vector<1x8x1xf32> to vector<8x1xf32>
      %176 = tpu.reciprocal %175 {approx = true} : vector<8x1xf32> -> vector<8x1xf32>
      %c0_123 = arith.constant 0 : index
      %c8_124 = arith.constant 8 : index
      %177 = vector.load %arg11[%c0_123, %c8_124] : memref<8x32xf32, #tpu.memory_space<vmem>>, vector<8x8xf32>
      %178 = vector.broadcast %176 : vector<8x1xf32> to vector<8x8xf32>
      %179 = arith.mulf %177, %178 : vector<8x8xf32>
      %c2_125 = arith.constant 2 : index
      %c0_126 = arith.constant 0 : index
      %c0_127 = arith.constant 0 : index
      %180 = vector.load %arg10[%c2_125, %c0_126, %c0_127] : memref<4x8x1xf32, #tpu.memory_space<vmem>>, vector<1x8x1xf32>
      %181 = vector.shape_cast %180 : vector<1x8x1xf32> to vector<8x1xf32>
      %182 = tpu.reciprocal %181 {approx = true} : vector<8x1xf32> -> vector<8x1xf32>
      %c0_128 = arith.constant 0 : index
      %c16_129 = arith.constant 16 : index
      %183 = vector.load %arg11[%c0_128, %c16_129] : memref<8x32xf32, #tpu.memory_space<vmem>>, vector<8x8xf32>
      %184 = vector.broadcast %182 : vector<8x1xf32> to vector<8x8xf32>
      %185 = arith.mulf %183, %184 : vector<8x8xf32>
      %c3_130 = arith.constant 3 : index
      %c0_131 = arith.constant 0 : index
      %c0_132 = arith.constant 0 : index
      %186 = vector.load %arg10[%c3_130, %c0_131, %c0_132] : memref<4x8x1xf32, #tpu.memory_space<vmem>>, vector<1x8x1xf32>
      %187 = vector.shape_cast %186 : vector<1x8x1xf32> to vector<8x1xf32>
      %188 = tpu.reciprocal %187 {approx = true} : vector<8x1xf32> -> vector<8x1xf32>
      %c0_133 = arith.constant 0 : index
      %c24_134 = arith.constant 24 : index
      %189 = vector.load %arg11[%c0_133, %c24_134] : memref<8x32xf32, #tpu.memory_space<vmem>>, vector<8x8xf32>
      %190 = vector.broadcast %188 : vector<8x1xf32> to vector<8x8xf32>
      %191 = arith.mulf %189, %190 : vector<8x8xf32>
      %192 = tpu.concatenate %173, %179, %185, %191 in 1 : vector<8x8xf32>, vector<8x8xf32>, vector<8x8xf32>, vector<8x8xf32> -> vector<8x32xf32>
      %193 = arith.truncf %192 : vector<8x32xf32> to vector<8x32xbf16>
      %c0_135 = arith.constant 0 : index
      %c0_136 = arith.constant 0 : index
      %c0_137 = arith.constant 0 : index
      %194 = vector.load %arg8[%c0_135, %c0_136, %c0_137] : memref<1x8x32xbf16, #tpu.memory_space<vmem>>, vector<1x8x32xbf16>
      %195 = vector.shape_cast %194 : vector<1x8x32xbf16> to vector<8x32xbf16>
      %196 = vector.shape_cast %193 : vector<8x32xbf16> to vector<1x8x32xbf16>
      tpu.vector_store %arg8[%c0_135, %c0_136, %c0_137], %196 {strides = array<i32>} : memref<1x8x32xbf16, #tpu.memory_space<vmem>>, vector<1x8x32xbf16>,
    } else {
    }
    return
  }
  func.func @transform_0(%arg0: i32, %arg1: i32, %arg2: i32, %arg3: memref<1xi32, #tpu.memory_space<smem>>, %arg4: memref<1xi32, #tpu.memory_space<smem>>) -> (i32, i32, i32) {
    %0 = arith.index_cast %arg2 : i32 to index
    %1 = memref.load %arg3[%0] : memref<1xi32, #tpu.memory_space<smem>>
    %c0_i32 = arith.constant 0 : i32
    return %arg0, %1, %arg1 : i32, i32, i32
  }
  func.func @transform_1(%arg0: i32, %arg1: i32, %arg2: i32, %arg3: memref<1xi32, #tpu.memory_space<smem>>, %arg4: memref<1xi32, #tpu.memory_space<smem>>) -> (i32, i32, i32) {
    %0 = arith.index_cast %arg2 : i32 to index
    %1 = memref.load %arg4[%0] : memref<1xi32, #tpu.memory_space<smem>>
    %c0_i32 = arith.constant 0 : i32
    return %arg0, %1, %arg1 : i32, i32, i32
  }
  func.func @transform_2(%arg0: i32, %arg1: i32, %arg2: i32, %arg3: memref<1xi32, #tpu.memory_space<smem>>, %arg4: memref<1xi32, #tpu.memory_space<smem>>) -> (i32, i32, i32) {
    %0 = arith.index_cast %arg2 : i32 to index
    %1 = memref.load %arg4[%0] : memref<1xi32, #tpu.memory_space<smem>>
    %c0_i32 = arith.constant 0 : i32
    return %arg0, %1, %arg1 : i32, i32, i32
  }
  func.func @transform_3(%arg0: i32, %arg1: i32, %arg2: i32, %arg3: memref<1xi32, #tpu.memory_space<smem>>, %arg4: memref<1xi32, #tpu.memory_space<smem>>) -> (i32, i32, i32) {
    %0 = arith.index_cast %arg2 : i32 to index
    %1 = memref.load %arg3[%0] : memref<1xi32, #tpu.memory_space<smem>>
    %c0_i32 = arith.constant 0 : i32
    return %arg0, %1, %arg1 : i32, i32, i32
  }
}

module attributes {stable_mosaic.version = 11 : i64} {
  func.func @_proj_mlp_kernel(%arg0: i32, %arg1: i32, %arg2: memref<1x8x32xf32, #tpu.memory_space<vmem>>, %arg3: memref<1x8x32xbf16, #tpu.memory_space<vmem>>, %arg4: memref<32x32xbf16, #tpu.memory_space<vmem>>, %arg5: memref<1x32xf32, #tpu.memory_space<vmem>>, %arg6: memref<1x32xf32, #tpu.memory_space<vmem>>, %arg7: memref<1x32xf32, #tpu.memory_space<vmem>>, %arg8: memref<32x128xbf16, #tpu.memory_space<vmem>>, %arg9: memref<1x128xf32, #tpu.memory_space<vmem>>, %arg10: memref<128x32xbf16, #tpu.memory_space<vmem>>, %arg11: memref<1x32xf32, #tpu.memory_space<vmem>>, %arg12: memref<1x8x32xf32, #tpu.memory_space<vmem>>) attributes {dimension_semantics = [#tpu.dimension_semantics<parallel>, #tpu.dimension_semantics<parallel>], iteration_bounds = array<i64: 2, 1>, scalar_prefetch = 0 : i64, scratch_operands = 0 : i64, tpu.core_type = #tpu.core_type<tc>, window_params = [{transform_indices = @transform_0, window_bounds = array<i64: 1, 8, 32>}, {transform_indices = @transform_1, window_bounds = array<i64: 1, 8, 32>}, {pipeline_mode = #tpu.pipeline_mode<synchronous>, transform_indices = @transform_2, window_bounds = array<i64: 32, 32>}, {pipeline_mode = #tpu.pipeline_mode<synchronous>, transform_indices = @transform_3, window_bounds = array<i64: 1, 32>}, {pipeline_mode = #tpu.pipeline_mode<synchronous>, transform_indices = @transform_4, window_bounds = array<i64: 1, 32>}, {pipeline_mode = #tpu.pipeline_mode<synchronous>, transform_indices = @transform_5, window_bounds = array<i64: 1, 32>}, {pipeline_mode = #tpu.pipeline_mode<synchronous>, transform_indices = @transform_6, window_bounds = array<i64: 32, 128>}, {pipeline_mode = #tpu.pipeline_mode<synchronous>, transform_indices = @transform_7, window_bounds = array<i64: 1, 128>}, {pipeline_mode = #tpu.pipeline_mode<synchronous>, transform_indices = @transform_8, window_bounds = array<i64: 128, 32>}, {pipeline_mode = #tpu.pipeline_mode<synchronous>, transform_indices = @transform_9, window_bounds = array<i64: 1, 32>}, {transform_indices = @transform_10, window_bounds = array<i64: 1, 8, 32>}]} {
    %c0 = arith.constant 0 : index
    %c0_0 = arith.constant 0 : index
    %c0_1 = arith.constant 0 : index
    %0 = vector.load %arg2[%c0, %c0_0, %c0_1] : memref<1x8x32xf32, #tpu.memory_space<vmem>>, vector<1x8x32xf32>
    %1 = vector.shape_cast %0 : vector<1x8x32xf32> to vector<8x32xf32>
    %c0_2 = arith.constant 0 : index
    %c0_3 = arith.constant 0 : index
    %c0_4 = arith.constant 0 : index
    %2 = vector.load %arg3[%c0_2, %c0_3, %c0_4] : memref<1x8x32xbf16, #tpu.memory_space<vmem>>, vector<1x8x32xbf16>
    %3 = vector.shape_cast %2 : vector<1x8x32xbf16> to vector<8x32xbf16>
    %c0_5 = arith.constant 0 : index
    %c0_6 = arith.constant 0 : index
    %4 = vector.load %arg4[%c0_5, %c0_6] : memref<32x32xbf16, #tpu.memory_space<vmem>>, vector<32x32xbf16>
    %cst = arith.constant dense<0.000000e+00> : vector<8x32xf32>
    %5 = tpu.matmul %3, %4, %cst {dimension_numbers = #tpu.dot_dimension_numbers<[1], [0], [0], [1], [0, 0, 1, 1], [], []>} : vector<8x32xbf16>, vector<32x32xbf16>, vector<8x32xf32> -> vector<8x32xf32>
    %c0_7 = arith.constant 0 : index
    %c0_8 = arith.constant 0 : index
    %6 = vector.load %arg5[%c0_7, %c0_8] : memref<1x32xf32, #tpu.memory_space<vmem>>, vector<1x32xf32>
    %7 = vector.broadcast %6 : vector<1x32xf32> to vector<8x32xf32>
    %8 = arith.addf %5, %7 : vector<8x32xf32>
    %9 = arith.addf %1, %8 : vector<8x32xf32>
    %cst_9 = arith.constant dense<0.000000e+00> : vector<8xf32>
    %10 = vector.multi_reduction <add>, %9, %cst_9 [1] : vector<8x32xf32> to vector<8xf32>
    %11 = vector.shape_cast %10 : vector<8xf32> to vector<8x1xf32>
    %cst_10 = arith.constant 3.200000e+01 : f32
    %12 = vector.broadcast %cst_10 : f32 to vector<8x1xf32>
    %13 = arith.divf %11, %12 : vector<8x1xf32>
    %14 = vector.broadcast %13 : vector<8x1xf32> to vector<8x32xf32>
    %15 = arith.subf %9, %14 : vector<8x32xf32>
    %16 = vector.broadcast %13 : vector<8x1xf32> to vector<8x32xf32>
    %17 = arith.subf %9, %16 : vector<8x32xf32>
    %18 = arith.mulf %15, %17 : vector<8x32xf32>
    %cst_11 = arith.constant dense<0.000000e+00> : vector<8xf32>
    %19 = vector.multi_reduction <add>, %18, %cst_11 [1] : vector<8x32xf32> to vector<8xf32>
    %20 = vector.shape_cast %19 : vector<8xf32> to vector<8x1xf32>
    %cst_12 = arith.constant 3.200000e+01 : f32
    %21 = vector.broadcast %cst_12 : f32 to vector<8x1xf32>
    %22 = arith.divf %20, %21 : vector<8x1xf32>
    %23 = vector.broadcast %13 : vector<8x1xf32> to vector<8x32xf32>
    %24 = arith.subf %9, %23 : vector<8x32xf32>
    %cst_13 = arith.constant 9.99999974E-6 : f32
    %25 = vector.broadcast %cst_13 : f32 to vector<8x1xf32>
    %26 = arith.addf %22, %25 : vector<8x1xf32>
    %27 = math.rsqrt %26 : vector<8x1xf32>
    %28 = vector.broadcast %27 : vector<8x1xf32> to vector<8x32xf32>
    %29 = arith.mulf %24, %28 : vector<8x32xf32>
    %c0_14 = arith.constant 0 : index
    %c0_15 = arith.constant 0 : index
    %30 = vector.load %arg6[%c0_14, %c0_15] : memref<1x32xf32, #tpu.memory_space<vmem>>, vector<1x32xf32>
    %31 = vector.broadcast %30 : vector<1x32xf32> to vector<8x32xf32>
    %32 = arith.mulf %29, %31 : vector<8x32xf32>
    %c0_16 = arith.constant 0 : index
    %c0_17 = arith.constant 0 : index
    %33 = vector.load %arg7[%c0_16, %c0_17] : memref<1x32xf32, #tpu.memory_space<vmem>>, vector<1x32xf32>
    %34 = vector.broadcast %33 : vector<1x32xf32> to vector<8x32xf32>
    %35 = arith.addf %32, %34 : vector<8x32xf32>
    %36 = arith.truncf %35 : vector<8x32xf32> to vector<8x32xbf16>
    %cst_18 = arith.constant 0.000000e+00 : f32
    %37 = vector.broadcast %cst_18 : f32 to vector<8x32xf32>
    %c0_19 = arith.constant 0 : index
    %c0_20 = arith.constant 0 : index
    %38 = vector.load %arg8[%c0_19, %c0_20] : memref<32x128xbf16, #tpu.memory_space<vmem>>, vector<32x128xbf16>
    %cst_21 = arith.constant dense<0.000000e+00> : vector<8x128xf32>
    %39 = tpu.matmul %36, %38, %cst_21 {dimension_numbers = #tpu.dot_dimension_numbers<[1], [0], [0], [1], [0, 0, 1, 1], [], []>} : vector<8x32xbf16>, vector<32x128xbf16>, vector<8x128xf32> -> vector<8x128xf32>
    %c0_22 = arith.constant 0 : index
    %c0_23 = arith.constant 0 : index
    %40 = vector.load %arg9[%c0_22, %c0_23] : memref<1x128xf32, #tpu.memory_space<vmem>>, vector<1x128xf32>
    %41 = vector.broadcast %40 : vector<1x128xf32> to vector<8x128xf32>
    %42 = arith.addf %39, %41 : vector<8x128xf32>
    %cst_24 = arith.constant 5.000000e-01 : f32
    %43 = vector.broadcast %cst_24 : f32 to vector<8x128xf32>
    %44 = arith.mulf %43, %42 : vector<8x128xf32>
    %cst_25 = arith.constant 4.471500e-02 : f32
    %45 = vector.broadcast %cst_25 : f32 to vector<8x128xf32>
    %46 = arith.mulf %45, %42 : vector<8x128xf32>
    %47 = arith.mulf %46, %42 : vector<8x128xf32>
    %48 = arith.mulf %47, %42 : vector<8x128xf32>
    %49 = arith.addf %42, %48 : vector<8x128xf32>
    %cst_26 = arith.constant 0.797884583 : f32
    %50 = vector.broadcast %cst_26 : f32 to vector<8x128xf32>
    %51 = arith.mulf %50, %49 : vector<8x128xf32>
    %52 = math.tanh %51 : vector<8x128xf32>
    %cst_27 = arith.constant 1.000000e+00 : f32
    %53 = vector.broadcast %cst_27 : f32 to vector<8x128xf32>
    %54 = arith.addf %53, %52 : vector<8x128xf32>
    %55 = arith.mulf %44, %54 : vector<8x128xf32>
    %56 = arith.truncf %55 : vector<8x128xf32> to vector<8x128xbf16>
    %c0_28 = arith.constant 0 : index
    %c0_29 = arith.constant 0 : index
    %57 = vector.load %arg10[%c0_28, %c0_29] : memref<128x32xbf16, #tpu.memory_space<vmem>>, vector<128x32xbf16>
    %cst_30 = arith.constant dense<0.000000e+00> : vector<8x32xf32>
    %58 = tpu.matmul %56, %57, %cst_30 {dimension_numbers = #tpu.dot_dimension_numbers<[1], [0], [0], [1], [0, 0, 1, 1], [], []>} : vector<8x128xbf16>, vector<128x32xbf16>, vector<8x32xf32> -> vector<8x32xf32>
    %59 = arith.addf %37, %58 : vector<8x32xf32>
    %c0_31 = arith.constant 0 : index
    %c0_32 = arith.constant 0 : index
    %60 = vector.load %arg11[%c0_31, %c0_32] : memref<1x32xf32, #tpu.memory_space<vmem>>, vector<1x32xf32>
    %61 = vector.broadcast %60 : vector<1x32xf32> to vector<8x32xf32>
    %62 = arith.addf %59, %61 : vector<8x32xf32>
    %63 = arith.addf %9, %62 : vector<8x32xf32>
    %c0_33 = arith.constant 0 : index
    %c0_34 = arith.constant 0 : index
    %c0_35 = arith.constant 0 : index
    %64 = vector.load %arg12[%c0_33, %c0_34, %c0_35] : memref<1x8x32xf32, #tpu.memory_space<vmem>>, vector<1x8x32xf32>
    %65 = vector.shape_cast %64 : vector<1x8x32xf32> to vector<8x32xf32>
    %66 = vector.shape_cast %63 : vector<8x32xf32> to vector<1x8x32xf32>
    tpu.vector_store %arg12[%c0_33, %c0_34, %c0_35], %66 {strides = array<i32>} : memref<1x8x32xf32, #tpu.memory_space<vmem>>, vector<1x8x32xf32>,
    return
  }
  func.func @transform_0(%arg0: i32, %arg1: i32) -> (i32, i32, i32) {
    %c0_i32 = arith.constant 0 : i32
    %c0_i32_0 = arith.constant 0 : i32
    return %arg0, %arg1, %c0_i32 : i32, i32, i32
  }
  func.func @transform_1(%arg0: i32, %arg1: i32) -> (i32, i32, i32) {
    %c0_i32 = arith.constant 0 : i32
    %c0_i32_0 = arith.constant 0 : i32
    return %arg0, %arg1, %c0_i32 : i32, i32, i32
  }
  func.func @transform_2(%arg0: i32, %arg1: i32) -> (i32, i32) {
    %c0_i32 = arith.constant 0 : i32
    %c0_i32_0 = arith.constant 0 : i32
    %c0_i32_1 = arith.constant 0 : i32
    return %c0_i32, %c0_i32_0 : i32, i32
  }
  func.func @transform_3(%arg0: i32, %arg1: i32) -> (i32, i32) {
    %c0_i32 = arith.constant 0 : i32
    %c0_i32_0 = arith.constant 0 : i32
    %c0_i32_1 = arith.constant 0 : i32
    return %c0_i32, %c0_i32_0 : i32, i32
  }
  func.func @transform_4(%arg0: i32, %arg1: i32) -> (i32, i32) {
    %c0_i32 = arith.constant 0 : i32
    %c0_i32_0 = arith.constant 0 : i32
    %c0_i32_1 = arith.constant 0 : i32
    return %c0_i32, %c0_i32_0 : i32, i32
  }
  func.func @transform_5(%arg0: i32, %arg1: i32) -> (i32, i32) {
    %c0_i32 = arith.constant 0 : i32
    %c0_i32_0 = arith.constant 0 : i32
    %c0_i32_1 = arith.constant 0 : i32
    return %c0_i32, %c0_i32_0 : i32, i32
  }
  func.func @transform_6(%arg0: i32, %arg1: i32) -> (i32, i32) {
    %c0_i32 = arith.constant 0 : i32
    %c0_i32_0 = arith.constant 0 : i32
    %c0_i32_1 = arith.constant 0 : i32
    return %c0_i32, %c0_i32_0 : i32, i32
  }
  func.func @transform_7(%arg0: i32, %arg1: i32) -> (i32, i32) {
    %c0_i32 = arith.constant 0 : i32
    %c0_i32_0 = arith.constant 0 : i32
    %c0_i32_1 = arith.constant 0 : i32
    return %c0_i32, %c0_i32_0 : i32, i32
  }
  func.func @transform_8(%arg0: i32, %arg1: i32) -> (i32, i32) {
    %c0_i32 = arith.constant 0 : i32
    %c0_i32_0 = arith.constant 0 : i32
    %c0_i32_1 = arith.constant 0 : i32
    return %c0_i32, %c0_i32_0 : i32, i32
  }
  func.func @transform_9(%arg0: i32, %arg1: i32) -> (i32, i32) {
    %c0_i32 = arith.constant 0 : i32
    %c0_i32_0 = arith.constant 0 : i32
    %c0_i32_1 = arith.constant 0 : i32
    return %c0_i32, %c0_i32_0 : i32, i32
  }
  func.func @transform_10(%arg0: i32, %arg1: i32) -> (i32, i32, i32) {
    %c0_i32 = arith.constant 0 : i32
    %c0_i32_0 = arith.constant 0 : i32
    return %arg0, %arg1, %c0_i32 : i32, i32, i32
  }
}

</mosaic_0001>

<llo_original>
// kernel: _lambda_.3
$region0: #{_lambda_.3}
  #allocation0 [shape = 'u32[]', space=smem, size = 0x4, offset = 0x4, fixed_abs, tag = 'smem constant byte address 0x4 - core index']
  #allocation1 [shape = 'u32[144,128]{1,0:T(1,128)}', space=vmem, size = 0x12000, scoped, tag = 'internal scratch']
  %s0 = inlined_call_operand.hbm [shape: f32[2,8,32], index: 0, kind: input, shape index: {}]
  %s1 = inlined_call_operand.hbm [shape: f32[1,32], index: 1, kind: input, shape index: {}]
  %s2 = inlined_call_operand.hbm [shape: f32[1,32], index: 2, kind: input, shape index: {}]
  %s3 = inlined_call_operand.hbm [shape: bf16[32,96], index: 3, kind: input, shape index: {}]
  %s4 = inlined_call_operand.hbm [shape: f32[1,96], index: 4, kind: input, shape index: {}]
  %s5 = inlined_call_operand.hbm [shape: bf16[2,8,32], index: 5, kind: output, shape index: {0}]
  %s6 = inlined_call_operand.hbm [shape: bf16[2,8,32], index: 6, kind: output, shape index: {1}]
  %s7 = inlined_call_operand.hbm [shape: bf16[2,8,32], index: 7, kind: output, shape index: {2}]
  %8 = xla_tuple %s5, %s6, %s7
  %s9 = sld [smem:[#allocation0]]
  $region89: #{_lambda_.3} parent=0
    _
  %s11 = ssub.s32 1, %s9
  %s12 = scalar_select 0, %s11, %s9
  $region1: #{_lambda_.3} parent=0
    #allocation2 [shape = 'u8[8192]{0}', space=vmem, size = 0x2000, scoped, tag = 'input window, operand 0']
    #allocation3 [shape = 's32[2]{0}', space=sflag, size = 0x8, scoped, tag = 'scoped memory for _lambda_.3']
    #allocation4 [shape = 's32[2]{0}', space=sflag, size = 0x8, scoped, tag = 'scoped memory for _lambda_.3']
    #allocation5 [shape = 'u8[512]{0}', space=vmem, size = 0x400, scoped, tag = 'input window, operand 1, single buffered']
    #allocation6 [shape = 's32[1]{0}', space=sflag, size = 0x4, scoped, tag = 'scoped memory for _lambda_.3']
    #allocation7 [shape = 'u8[512]{0}', space=vmem, size = 0x400, scoped, tag = 'input window, operand 2, single buffered']
    #allocation8 [shape = 'u8[8192]{0}', space=vmem, size = 0x2000, scoped, tag = 'input window, operand 3, single buffered']
    #allocation9 [shape = 's32[1]{0}', space=sflag, size = 0x4, scoped, tag = 'scoped memory for _lambda_.3']
    #allocation10 [shape = 'u8[512]{0}', space=vmem, size = 0x400, scoped, tag = 'input window, operand 4, single buffered']
    #allocation11 [shape = 'u8[4096]{0}', space=vmem, size = 0x1000, scoped, tag = 'output window, operand 0']
    #allocation12 [shape = 'u8[4096]{0}', space=vmem, size = 0x1000, scoped, tag = 'output window, operand 1']
    #allocation13 [shape = 's32[2]{0}', space=sflag, size = 0x8, scoped, tag = 'scoped memory for _lambda_.3']
    #allocation14 [shape = 'u8[4096]{0}', space=vmem, size = 0x1000, scoped, tag = 'output window, operand 2']
    %13 = vsyncpa [#allocation3], 0
    %s14 = scalar_lea.sflag [#allocation3], 1
    %15 = vsyncpa %s14, 0
    %16 = vsyncpa [#allocation6], 0
    %17 = vsyncpa [#allocation9], 0
    %18 = vsyncpa [#allocation4], 0
    %s19 = scalar_lea.sflag [#allocation4], 1
    %20 = vsyncpa %s19, 0
    %21 = vsyncpa [#allocation13], 0
    %s22 = scalar_lea.sflag [#allocation13], 1
    %23 = vsyncpa %s22, 0
    loop: start=0, step=1, limit=4
    $region2: #{_lambda_.3} parent=1 // loop_pre_header
      _
    $region3: #{_lambda_.3} parent=1 // loop_header
      %s25 = sphi 0, %s29
      %p26 = scmp.ge.s32.totalorder %s25, 4
      %s32 = sphi 0, %s44
      %s33 = sphi 0, %s40
      %s34 = sphi 0, %s32
      %s35 = sphi 0, %s33
      %s36 = sphi 0, %s34
      %s37 = sphi 0, %s35
      %s49 = sphi 0, %s51
      %s52 = sphi 0, %s49
      %s53 = sphi 0, %s52
      %s69 = sphi 0, %s53
      %s73 = sphi 0, %s73
      %s75 = sphi 0, %s73
      %s76 = sphi 0, %s75
      %s90 = sphi 0, %s76
      %s94 = sphi 0, %s94
      %s96 = sphi 0, %s94
      %s97 = sphi 0, %s96
      %s111 = sphi 0, %s97
      %s115 = sphi 0, %s115
      %s117 = sphi 0, %s115
      %s118 = sphi 0, %s117
      %s132 = sphi 0, %s118
      %s136 = sphi 0, %s136
      %s138 = sphi 0, %s136
      %s139 = sphi 0, %s138
      %s153 = sphi 0, %s139
      %s161 = sphi 0, %s163
      %s164 = sphi 0, %s161
      %s165 = sphi 0, %s164
      %s181 = sphi 0, %s165
      %s189 = sphi 0, %s191
      %s192 = sphi 0, %s189
      %s193 = sphi 0, %s192
      %s209 = sphi 0, %s193
      %s217 = sphi 0, %s219
      %s220 = sphi 0, %s217
      %s221 = sphi 0, %s220
      %s237 = sphi 0, %s221
    $region4: #{_lambda_.3} parent=1 // loop_header_branch
      %28 = sbr.rel (%p26) target = $region8
    $region5: #{_lambda_.3} parent=1 // loop_body
      %s30 = ssub.s32 %s25, 1
      %s31 = ssub.s32 %s25, 2
      %s38 = sadd.s32 1, %s33
      %p39 = scmp.ge.s32.totalorder %s38, 1
      %s40 = scalar_select %p39, 0, %s38
      %s41 = sadd.s32 1, %s32
      %s42 = scalar_select %p39, %s41, %s32
      %p43 = scmp.ge.s32.totalorder %s42, 2
      %s44 = scalar_select %p43, 0, %s42
      %s45 = ssub.s32 %s32, %s44
      %s46 = ssub.s32 %s33, %s40
      %s47 = sor.u32 %s45, %s46
      %p48 = scmp.eq.s32.totalorder %s47, 0
      %s50 = sadd.s32 %s49, 1
      %s51 = scalar_select %p48, %s49, %s50
      %p54 = pneg %p48
      %p55 = scmp.eq.s32.totalorder %s25, 1
      %p56 = por %p54, %p55
      %p57 = scmp.ne.s32.totalorder %s49, %s52
      %p58 = scmp.eq.s32.totalorder %s25, 0
      %p59 = por %p57, %p58
      %p60 = scmp.ne.s32.totalorder %s49, %s52
      %p61 = scmp.eq.s32.totalorder %s30, 1
      %p62 = por %p60, %p61
      %p63 = scmp.ne.s32.totalorder %s52, %s53
      %p64 = scmp.eq.s32.totalorder %s30, 0
      %p65 = por %p63, %p64
      %p66 = scmp.ne.s32.totalorder %s52, %s53
      %p67 = scmp.eq.s32.totalorder %s31, 1
      %p68 = por %p66, %p67
      %p70 = scmp.ne.s32.totalorder %s53, %s69
      %p71 = scmp.eq.s32.totalorder %s31, 0
      %p72 = por %p70, %p71
      %s74 = sadd.s32 %s73, 1
      %p77 = scmp.eq.s32.totalorder %s25, 1
      %p78 = scmp.ne.s32.totalorder %s73, %s75
      %p79 = scmp.eq.s32.totalorder %s25, 0
      %p80 = por %p78, %p79
      %p81 = scmp.ne.s32.totalorder %s73, %s75
      %p82 = scmp.eq.s32.totalorder %s30, 1
      %p83 = por %p81, %p82
      %p84 = scmp.ne.s32.totalorder %s75, %s76
      %p85 = scmp.eq.s32.totalorder %s30, 0
      %p86 = por %p84, %p85
      %p87 = scmp.ne.s32.totalorder %s75, %s76
      %p88 = scmp.eq.s32.totalorder %s31, 1
      %p89 = por %p87, %p88
      %p91 = scmp.ne.s32.totalorder %s76, %s90
      %p92 = scmp.eq.s32.totalorder %s31, 0
      %p93 = por %p91, %p92
      %s95 = sadd.s32 %s94, 1
      %p98 = scmp.eq.s32.totalorder %s25, 1
      %p99 = scmp.ne.s32.totalorder %s94, %s96
      %p100 = scmp.eq.s32.totalorder %s25, 0
      %p101 = por %p99, %p100
      %p102 = scmp.ne.s32.totalorder %s94, %s96
      %p103 = scmp.eq.s32.totalorder %s30, 1
      %p104 = por %p102, %p103
      %p105 = scmp.ne.s32.totalorder %s96, %s97
      %p106 = scmp.eq.s32.totalorder %s30, 0
      %p107 = por %p105, %p106
      %p108 = scmp.ne.s32.totalorder %s96, %s97
      %p109 = scmp.eq.s32.totalorder %s31, 1
      %p110 = por %p108, %p109
      %p112 = scmp.ne.s32.totalorder %s97, %s111
      %p113 = scmp.eq.s32.totalorder %s31, 0
      %p114 = por %p112, %p113
      %s116 = sadd.s32 %s115, 1
      %p119 = scmp.eq.s32.totalorder %s25, 1
      %p120 = scmp.ne.s32.totalorder %s115, %s117
      %p121 = scmp.eq.s32.totalorder %s25, 0
      %p122 = por %p120, %p121
      %p123 = scmp.ne.s32.totalorder %s115, %s117
      %p124 = scmp.eq.s32.totalorder %s30, 1
      %p125 = por %p123, %p124
      %p126 = scmp.ne.s32.totalorder %s117, %s118
      %p127 = scmp.eq.s32.totalorder %s30, 0
      %p128 = por %p126, %p127
      %p129 = scmp.ne.s32.totalorder %s117, %s118
      %p130 = scmp.eq.s32.totalorder %s31, 1
      %p131 = por %p129, %p130
      %p133 = scmp.ne.s32.totalorder %s118, %s132
      %p134 = scmp.eq.s32.totalorder %s31, 0
      %p135 = por %p133, %p134
      %s137 = sadd.s32 %s136, 1
      %p140 = scmp.eq.s32.totalorder %s25, 1
      %p141 = scmp.ne.s32.totalorder %s136, %s138
      %p142 = scmp.eq.s32.totalorder %s25, 0
      %p143 = por %p141, %p142
      %p144 = scmp.ne.s32.totalorder %s136, %s138
      %p145 = scmp.eq.s32.totalorder %s30, 1
      %p146 = por %p144, %p145
      %p147 = scmp.ne.s32.totalorder %s138, %s139
      %p148 = scmp.eq.s32.totalorder %s30, 0
      %p149 = por %p147, %p148
      %p150 = scmp.ne.s32.totalorder %s138, %s139
      %p151 = scmp.eq.s32.totalorder %s31, 1
      %p152 = por %p150, %p151
      %p154 = scmp.ne.s32.totalorder %s139, %s153
      %p155 = scmp.eq.s32.totalorder %s31, 0
      %p156 = por %p154, %p155
      %s157 = ssub.s32 %s32, %s44
      %s158 = ssub.s32 %s33, %s40
      %s159 = sor.u32 %s157, %s158
      %p160 = scmp.eq.s32.totalorder %s159, 0
      %s162 = sadd.s32 %s161, 1
      %s163 = scalar_select %p160, %s161, %s162
      %p166 = pneg %p160
      %p167 = scmp.eq.s32.totalorder %s25, 1
      %p168 = por %p166, %p167
      %p169 = scmp.ne.s32.totalorder %s161, %s164
      %p170 = scmp.eq.s32.totalorder %s25, 0
      %p171 = por %p169, %p170
      %p172 = scmp.ne.s32.totalorder %s161, %s164
      %p173 = scmp.eq.s32.totalorder %s30, 1
      %p174 = por %p172, %p173
      %p175 = scmp.ne.s32.totalorder %s164, %s165
      %p176 = scmp.eq.s32.totalorder %s30, 0
      %p177 = por %p175, %p176
      %p178 = scmp.ne.s32.totalorder %s164, %s165
      %p179 = scmp.eq.s32.totalorder %s31, 1
      %p180 = por %p178, %p179
      %p182 = scmp.ne.s32.totalorder %s165, %s181
      %p183 = scmp.eq.s32.totalorder %s31, 0
      %p184 = por %p182, %p183
      %s185 = ssub.s32 %s32, %s44
      %s186 = ssub.s32 %s33, %s40
      %s187 = sor.u32 %s185, %s186
      %p188 = scmp.eq.s32.totalorder %s187, 0
      %s190 = sadd.s32 %s189, 1
      %s191 = scalar_select %p188, %s189, %s190
      %p194 = pneg %p188
      %p195 = scmp.eq.s32.totalorder %s25, 1
      %p196 = por %p194, %p195
      %p197 = scmp.ne.s32.totalorder %s189, %s192
      %p198 = scmp.eq.s32.totalorder %s25, 0
      %p199 = por %p197, %p198
      %p200 = scmp.ne.s32.totalorder %s189, %s192
      %p201 = scmp.eq.s32.totalorder %s30, 1
      %p202 = por %p200, %p201
      %p203 = scmp.ne.s32.totalorder %s192, %s193
      %p204 = scmp.eq.s32.totalorder %s30, 0
      %p205 = por %p203, %p204
      %p206 = scmp.ne.s32.totalorder %s192, %s193
      %p207 = scmp.eq.s32.totalorder %s31, 1
      %p208 = por %p206, %p207
      %p210 = scmp.ne.s32.totalorder %s193, %s209
      %p211 = scmp.eq.s32.totalorder %s31, 0
      %p212 = por %p210, %p211
      %s213 = ssub.s32 %s32, %s44
      %s214 = ssub.s32 %s33, %s40
      %s215 = sor.u32 %s213, %s214
      %p216 = scmp.eq.s32.totalorder %s215, 0
      %s218 = sadd.s32 %s217, 1
      %s219 = scalar_select %p216, %s217, %s218
      %p222 = pneg %p216
      %p223 = scmp.eq.s32.totalorder %s25, 1
      %p224 = por %p222, %p223
      %p225 = scmp.ne.s32.totalorder %s217, %s220
      %p226 = scmp.eq.s32.totalorder %s25, 0
      %p227 = por %p225, %p226
      %p228 = scmp.ne.s32.totalorder %s217, %s220
      %p229 = scmp.eq.s32.totalorder %s30, 1
      %p230 = por %p228, %p229
      %p231 = scmp.ne.s32.totalorder %s220, %s221
      %p232 = scmp.eq.s32.totalorder %s30, 0
      %p233 = por %p231, %p232
      %p234 = scmp.ne.s32.totalorder %s220, %s221
      %p235 = scmp.eq.s32.totalorder %s31, 1
      %p236 = por %p234, %p235
      %p238 = scmp.ne.s32.totalorder %s221, %s237
      %p239 = scmp.eq.s32.totalorder %s31, 0
      %p240 = por %p238, %p239
      %p241 = scmp.le.s32.totalorder 1, %s25
      %p242 = scmp.lt.s32.totalorder %s25, 3
      %p243 = pnand %p241, %p242
      %p244 = pneg %p243
      // Predicated region
      $region9: #{_lambda_.3} parent=5 // pred_check
        _
      $region10: #{_lambda_.3} parent=5 // pred_check_branch
        %246 = sbr.rel (%p243) target = $region12
      $region11: #{_lambda_.3} parent=5 // pred_region
        %s247 = ssub.s32 %s25, 1
        // Predicated region
        $region13: #{_lambda_.3} parent=11 // pred_check
          %p248 = pneg %p86
        $region14: #{_lambda_.3} parent=11 // pred_check_branch
          %250 = sbr.rel (%p248) target = $region16
        $region15: #{_lambda_.3} parent=11 // pred_region
          %s252 = ssub.s32 16, 16
          %253 = vsyncadd [#allocation6], %s252
          %s255 = sshll.u32 [#allocation5], 4
          %s256 = int_to_ptr.vmem [resolvable:$true] %s255
          %258 = dma.hbm_to_vmem [thread:$0]  %s1, 16, %s256, [#allocation6]
        $region16: #{_lambda_.3} parent=11 // pred_fallthru
          _
        // Predicated region
        $region17: #{_lambda_.3} parent=11 // pred_check
          %p259 = pneg %p107
        $region18: #{_lambda_.3} parent=11 // pred_check_branch
          %261 = sbr.rel (%p259) target = $region20
        $region19: #{_lambda_.3} parent=11 // pred_region
          %s263 = ssub.s32 16, 16
          %264 = vsyncadd [#allocation6], %s263
          %s266 = sshll.u32 [#allocation7], 4
          %s267 = int_to_ptr.vmem [resolvable:$true] %s266
          %269 = dma.hbm_to_vmem [thread:$0]  %s2, 16, %s267, [#allocation6]
        $region20: #{_lambda_.3} parent=11 // pred_fallthru
          _
        // Predicated region
        $region21: #{_lambda_.3} parent=11 // pred_check
          %p270 = pneg %p128
        $region22: #{_lambda_.3} parent=11 // pred_check_branch
          %272 = sbr.rel (%p270) target = $region24
        $region23: #{_lambda_.3} parent=11 // pred_region
          %s274 = ssub.s32 256, 256
          %275 = vsyncadd [#allocation9], %s274
          %s276 = sshll.u32 [#allocation8], 4
          %s277 = int_to_ptr.vmem [resolvable:$true] %s276
          %282 = dma.hbm_to_vmem [thread:$0]  %s3, 256, %s277, [#allocation9], 64, 64, 4
        $region24: #{_lambda_.3} parent=11 // pred_fallthru
          _
        // Predicated region
        $region25: #{_lambda_.3} parent=11 // pred_check
          %p283 = pneg %p149
        $region26: #{_lambda_.3} parent=11 // pred_check_branch
          %285 = sbr.rel (%p283) target = $region28
        $region27: #{_lambda_.3} parent=11 // pred_region
          %s287 = ssub.s32 16, 16
          %288 = vsyncadd [#allocation9], %s287
          %s290 = sshll.u32 [#allocation10], 4
          %s291 = int_to_ptr.vmem [resolvable:$true] %s290
          %293 = dma.hbm_to_vmem [thread:$0]  %s4, 16, %s291, [#allocation9]
        $region28: #{_lambda_.3} parent=11 // pred_fallthru
          _
      $region12: #{_lambda_.3} parent=5 // pred_fallthru
        _
      %p294 = scmp.lt.s32.totalorder %s25, 2
      // Predicated region
      $region29: #{_lambda_.3} parent=5 // pred_check
        %p295 = pneg %p294
      $region30: #{_lambda_.3} parent=5 // pred_check_branch
        %297 = sbr.rel (%p295) target = $region32
      $region31: #{_lambda_.3} parent=5 // pred_region
        // Predicated region
        $region33: #{_lambda_.3} parent=31 // pred_check
          %p298 = pneg %p59
        $region34: #{_lambda_.3} parent=31 // pred_check_branch
          %300 = sbr.rel (%p298) target = $region36
        $region35: #{_lambda_.3} parent=31 // pred_region
          %s301 = sand.u32 %s49, 1
          %s302 = scalar_lea.sflag [#allocation3], %s301
          %s303 = sand.u32 %s49, 1
          %s304 = smul.addr %s303, 8
          %s305 = scalar_lea.vmem [#allocation2], %s304
          %s307 = ssub.s32 128, 128
          %308 = vsyncadd %s302, %s307
          %s309 = sadd.s32 %s33, %s32
          %s310 = smul.addr %s309, 128
          %s311 = scalar_lea.hbm %s0, %s310
          %s313 = sshll.u32 %s305, 4
          %s314 = int_to_ptr.vmem [resolvable:$true] %s313
          %316 = dma.hbm_to_vmem [thread:$0]  %s311, 128, %s314, %s302
        $region36: #{_lambda_.3} parent=31 // pred_fallthru
          _
      $region32: #{_lambda_.3} parent=5 // pred_fallthru
        _
      %p317 = scmp.le.s32.totalorder 1, %s25
      %p318 = scmp.lt.s32.totalorder %s25, 3
      %p319 = pnand %p317, %p318
      %p320 = pneg %p319
      // Predicated region
      $region37: #{_lambda_.3} parent=5 // pred_check
        _
      $region38: #{_lambda_.3} parent=5 // pred_check_branch
        %322 = sbr.rel (%p319) target = $region40
      $region39: #{_lambda_.3} parent=5 // pred_region
        %s323 = ssub.s32 %s25, 1
        %s324 = sand.u32 %s52, 1
        %s325 = scalar_lea.sflag [#allocation3], %s324
        %s326 = sand.u32 %s52, 1
        %s327 = smul.addr %s326, 8
        %s328 = scalar_lea.vmem [#allocation2], %s327
        // Predicated region
        $region41: #{_lambda_.3} parent=39 // pred_check
          %p329 = pneg %p65
        $region42: #{_lambda_.3} parent=39 // pred_check_branch
          %331 = sbr.rel (%p329) target = $region44
        $region43: #{_lambda_.3} parent=39 // pred_region
          %332 = dma.done %s325, 128
        $region44: #{_lambda_.3} parent=39 // pred_fallthru
          _
        // Predicated region
        $region45: #{_lambda_.3} parent=39 // pred_check
          %p333 = pneg %p86
        $region46: #{_lambda_.3} parent=39 // pred_check_branch
          %335 = sbr.rel (%p333) target = $region48
        $region47: #{_lambda_.3} parent=39 // pred_region
          %336 = dma.done [#allocation6], 16
        $region48: #{_lambda_.3} parent=39 // pred_fallthru
          _
        // Predicated region
        $region49: #{_lambda_.3} parent=39 // pred_check
          %p337 = pneg %p107
        $region50: #{_lambda_.3} parent=39 // pred_check_branch
          %339 = sbr.rel (%p337) target = $region52
        $region51: #{_lambda_.3} parent=39 // pred_region
          %340 = dma.done [#allocation6], 16
        $region52: #{_lambda_.3} parent=39 // pred_fallthru
          _
        // Predicated region
        $region53: #{_lambda_.3} parent=39 // pred_check
          %p341 = pneg %p128
        $region54: #{_lambda_.3} parent=39 // pred_check_branch
          %343 = sbr.rel (%p341) target = $region56
        $region55: #{_lambda_.3} parent=39 // pred_region
          %344 = dma.done [#allocation9], 256
        $region56: #{_lambda_.3} parent=39 // pred_fallthru
          _
        // Predicated region
        $region57: #{_lambda_.3} parent=39 // pred_check
          %p345 = pneg %p149
        $region58: #{_lambda_.3} parent=39 // pred_check_branch
          %347 = sbr.rel (%p345) target = $region60
        $region59: #{_lambda_.3} parent=39 // pred_region
          %348 = dma.done [#allocation9], 16
        $region60: #{_lambda_.3} parent=39 // pred_fallthru
          _
        %s349 = sand.u32 %s52, 1
        %s350 = scalar_lea.sflag [#allocation3], %s349
        %s351 = sand.u32 %s52, 1
        %s352 = smul.addr %s351, 8
        %s353 = scalar_lea.vmem [#allocation2], %s352
        %p354 = pneg %p65
        %p355 = pneg %p62
        %p356 = pneg %p86
        %p357 = pneg %p83
        %p358 = pneg %p107
        %p359 = pneg %p104
        %p360 = pneg %p128
        %p361 = pneg %p125
        %p362 = pneg %p149
        %p363 = pneg %p146
        %p364 = pneg %p177
        %p365 = pneg %p174
        %s366 = sand.u32 %s164, 1
        %s367 = scalar_lea.sflag [#allocation4], %s366
        %s368 = sand.u32 %s164, 1
        %s369 = smul.addr %s368, 4
        %s370 = scalar_lea.vmem [#allocation11], %s369
        %p371 = pneg %p205
        %p372 = pneg %p202
        %s373 = sand.u32 %s30, 1
        %s374 = scalar_lea.sflag [#allocation13], %s373
        %s375 = sand.u32 %s192, 1
        %s376 = smul.addr %s375, 4
        %s377 = scalar_lea.vmem [#allocation12], %s376
        %p378 = pneg %p233
        %p379 = pneg %p230
        %s380 = sand.u32 %s30, 1
        %s381 = scalar_lea.sflag [#allocation13], %s380
        %s382 = sand.u32 %s220, 1
        %s383 = smul.addr %s382, 4
        %s384 = scalar_lea.vmem [#allocation14], %s383
        %v386 = vld [vmem:[%s328] sm:$0xff]
        %vm387 = vcmask 261120
        %v388 = vsel %vm387, %v386, 0.0
        %389 = vadd.xlane.f32.xlu0 %v388
        %v390 = vpop.xlane.xlu0 %389
        %v391 = vrcp.pop 32.0
        %v392 = vmul.f32 %v390, %v391
        %v393 = vsub.f32 %v386, %v392
        %v394 = vmul.f32 %v393, %v393
        %v395 = vsel %vm387, %v394, 0.0
        %396 = vadd.xlane.f32.xlu0 %v395
        %v397 = vpop.xlane.xlu0 %396
        %v398 = vmul.f32 %v397, %v391
        %v399 = vadd.f32 %v398, 1e-05
        %v400 = vrsqrt.pop %v399
        %v401 = vmul.f32 %v393, %v400
        %v402 = vld [vmem:[#allocation5] sm:$0x1]
        %v404 = vlaneseq
        %v405 = vshrl.u32 %v404, 7
        %v406 = vsub.s32 0, %v405
        %v407 = vrot.slane %v402, %v406
        %v409 = vmul.f32 %v401, %v407
        %v410 = vld [vmem:[#allocation7] sm:$0x1]
        %v412 = vlaneseq
        %v413 = vshrl.u32 %v412, 7
        %v414 = vsub.s32 0, %v413
        %v415 = vrot.slane %v410, %v414
        %v417 = vadd.f32 %v409, %v415
        %v418 = vpack.c.bf16 %v417, %v417
        %v419 = vld [vmem:[#allocation8] sm:$0xf]
        %v420 = vld [vmem:[#allocation8 + $0x4] sm:$0xf]
        %v421 = vld [vmem:[#allocation8 + $0x8] sm:$0xf]
        %v422 = vld [vmem:[#allocation8 + $0xc] sm:$0xf]
        %v423 = vld [vmem:[#allocation10] sm:$0x1]
        %v425 = vlaneseq
        %v426 = vshrl.u32 %v425, 7
        %v427 = vsub.s32 0, %v426
        %v428 = vrot.slane %v423, %v427
        %v434 = vunpack.c.l.b16 %v419
        %v435 = vunpack.c.l.b16 %v420
        %v436 = vunpack.c.l.b16 %v421
        %v437 = vunpack.c.l.b16 %v422
        %v438 = vpack.c.b16 %v435, %v434
        %v439 = vpack.c.b16 %v437, %v436
        %v443 = vsel %vm387, %v418, 0
        %445 = vmatprep.subr.bf16.mxu0 0
        %446 = vmatpush1.bf16.msra.mxu0 %v438
        %447 = vmatprep.subr.bf16.mxu0 0
        %448 = vmatpush1.bf16.msra.mxu0 %v439
        %449 = vmatprep.subr.bf16.mxu0 0
        %450 = vmatpush1.bf16.msra.mxu0 0
        %451 = vmatprep.subr.bf16.mxu0 0
        %452 = vmatpush1.bf16.msra.mxu0 0
        %453 = vmatprep.subr.bf16.mxu0 0
        %454 = vmatpush1.bf16.msra.mxu0 0
        %455 = vmatprep.subr.bf16.mxu0 0
        %456 = vmatpush1.bf16.msra.mxu0 0
        %457 = vmatprep.subr.bf16.mxu0 0
        %458 = vmatpush1.bf16.msra.mxu0 0
        %459 = vmatprep.subr.bf16.mxu0 0
        %460 = vmatpush1.bf16.msra.mxu0 0
        %461 = vmatprep.subr.bf16.mxu0 0
        %462 = vmatpush1.bf16.msra.mxu0 0
        %463 = vmatprep.subr.bf16.mxu0 0
        %464 = vmatpush1.bf16.msra.mxu0 0
        %465 = vmatprep.subr.bf16.mxu0 0
        %466 = vmatpush1.bf16.msra.mxu0 0
        %467 = vmatprep.subr.bf16.mxu0 0
        %468 = vmatpush1.bf16.msra.mxu0 0
        %469 = vmatprep.subr.bf16.mxu0 0
        %470 = vmatpush1.bf16.msra.mxu0 0
        %471 = vmatprep.subr.bf16.mxu0 0
        %472 = vmatpush1.bf16.msra.mxu0 0
        %473 = vmatprep.subr.bf16.mxu0 0
        %474 = vmatpush1.bf16.msra.mxu0 0
        %475 = vmatprep.subr.bf16.mxu0 0
        %476 = vmatpush1.bf16.msra.mxu0 0
        %477 = vmatprep.mubr.bf16.mxu0 0
        %478 = vmatmul.mubr.bf16.gmra.mrb[0].mxu0 %v443
        %v479 = vpop.f32.mrb[0].mxu0
        %v480 = vadd.f32 %v428, %v479
        %v481 = vpop.f32.mrb[0].mxu0
        %v482 = vpop.f32.mrb[0].mxu0
        %v483 = vpop.f32.mrb[0].mxu0
        %484 = vdwg.mxu0
        %v485 = vmul.f32 %v480, 0.35355338
        %v486 = vpack.c.bf16 %v485, %v485
        %vm487 = vcmask 257024
        %488 = vst.msk [vmem:[%s370] sm:$0xf] %vm487, %v486
        %v489 = vpack.c.bf16 %v480, %v480
        %v491 = vunpack.c.l.b16 %v489
        %v492 = vpack.c.b16 %v491, %v491
        %493 = vrot.lane.b32.xlu0 %v492, 96
        %v494 = vpop.permute.xlu0 %493
        %496 = vst.msk [vmem:[%s377] sm:$0xf] %vm487, %v494
        %497 = vrot.lane.b32.xlu0 %v492, 64
        %v498 = vpop.permute.xlu0 %497
        %500 = vst.msk [vmem:[%s384] sm:$0xf] %vm487, %v498
        %s501 = sand.u32 %s164, 1
        %s502 = scalar_lea.sflag [#allocation4], %s501
        %s503 = sand.u32 %s164, 1
        %s504 = smul.addr %s503, 4
        %s505 = scalar_lea.vmem [#allocation11], %s504
        %s506 = sand.u32 %s30, 1
        %s507 = scalar_lea.sflag [#allocation13], %s506
        %s508 = sand.u32 %s192, 1
        %s509 = smul.addr %s508, 4
        %s510 = scalar_lea.vmem [#allocation12], %s509
        %s511 = sand.u32 %s30, 1
        %s512 = scalar_lea.sflag [#allocation13], %s511
        %s513 = sand.u32 %s220, 1
        %s514 = smul.addr %s513, 4
        %s515 = scalar_lea.vmem [#allocation14], %s514
        // Predicated region
        $region61: #{_lambda_.3} parent=39 // pred_check
          %p516 = pneg %p174
        $region62: #{_lambda_.3} parent=39 // pred_check_branch
          %518 = sbr.rel (%p516) target = $region64
        $region63: #{_lambda_.3} parent=39 // pred_region
          %s520 = ssub.s32 64, 64
          %521 = vsyncadd %s502, %s520
          %s522 = sadd.s32 %s35, %s34
          %s523 = smul.addr %s522, 64
          %s524 = scalar_lea.hbm %s5, %s523
          %s526 = sshll.u32 %s505, 4
          %s527 = int_to_ptr.vmem [resolvable:$true] %s526
          %529 = dma.vmem_to_hbm [thread:$0]  %s527, 64, %s524, %s502
        $region64: #{_lambda_.3} parent=39 // pred_fallthru
          _
        // Predicated region
        $region65: #{_lambda_.3} parent=39 // pred_check
          %p530 = pneg %p202
        $region66: #{_lambda_.3} parent=39 // pred_check_branch
          %532 = sbr.rel (%p530) target = $region68
        $region67: #{_lambda_.3} parent=39 // pred_region
          %s534 = ssub.s32 64, 64
          %535 = vsyncadd %s507, %s534
          %s536 = sadd.s32 %s35, %s34
          %s537 = smul.addr %s536, 64
          %s538 = scalar_lea.hbm %s6, %s537
          %s540 = sshll.u32 %s510, 4
          %s541 = int_to_ptr.vmem [resolvable:$true] %s540
          %543 = dma.vmem_to_hbm [thread:$0]  %s541, 64, %s538, %s507
        $region68: #{_lambda_.3} parent=39 // pred_fallthru
          _
        // Predicated region
        $region69: #{_lambda_.3} parent=39 // pred_check
          %p544 = pneg %p230
        $region70: #{_lambda_.3} parent=39 // pred_check_branch
          %546 = sbr.rel (%p544) target = $region72
        $region71: #{_lambda_.3} parent=39 // pred_region
          %s548 = ssub.s32 64, 64
          %549 = vsyncadd %s512, %s548
          %s550 = sadd.s32 %s35, %s34
          %s551 = smul.addr %s550, 64
          %s552 = scalar_lea.hbm %s7, %s551
          %s554 = sshll.u32 %s515, 4
          %s555 = int_to_ptr.vmem [resolvable:$true] %s554
          %557 = dma.vmem_to_hbm [thread:$0]  %s555, 64, %s552, %s512
        $region72: #{_lambda_.3} parent=39 // pred_fallthru
          _
      $region40: #{_lambda_.3} parent=5 // pred_fallthru
        _
      %p558 = scmp.le.s32.totalorder 2, %s25
      // Predicated region
      $region73: #{_lambda_.3} parent=5 // pred_check
        %p559 = pneg %p558
      $region74: #{_lambda_.3} parent=5 // pred_check_branch
        %561 = sbr.rel (%p559) target = $region76
      $region75: #{_lambda_.3} parent=5 // pred_region
        %s562 = ssub.s32 %s25, 2
        // Predicated region
        $region77: #{_lambda_.3} parent=75 // pred_check
          %p563 = pneg %p180
        $region78: #{_lambda_.3} parent=75 // pred_check_branch
          %565 = sbr.rel (%p563) target = $region80
        $region79: #{_lambda_.3} parent=75 // pred_region
          %s566 = sand.u32 %s165, 1
          %s567 = scalar_lea.sflag [#allocation4], %s566
          %s568 = sand.u32 %s165, 1
          %s569 = smul.addr %s568, 4
          %s570 = scalar_lea.vmem [#allocation11], %s569
          %571 = dma.done %s567, 64
        $region80: #{_lambda_.3} parent=75 // pred_fallthru
          _
        // Predicated region
        $region81: #{_lambda_.3} parent=75 // pred_check
          %p572 = pneg %p208
        $region82: #{_lambda_.3} parent=75 // pred_check_branch
          %574 = sbr.rel (%p572) target = $region84
        $region83: #{_lambda_.3} parent=75 // pred_region
          %s575 = sand.u32 %s31, 1
          %s576 = scalar_lea.sflag [#allocation13], %s575
          %s577 = sand.u32 %s193, 1
          %s578 = smul.addr %s577, 4
          %s579 = scalar_lea.vmem [#allocation12], %s578
          %580 = dma.done %s576, 64
        $region84: #{_lambda_.3} parent=75 // pred_fallthru
          _
        // Predicated region
        $region85: #{_lambda_.3} parent=75 // pred_check
          %p581 = pneg %p236
        $region86: #{_lambda_.3} parent=75 // pred_check_branch
          %583 = sbr.rel (%p581) target = $region88
        $region87: #{_lambda_.3} parent=75 // pred_region
          %s584 = sand.u32 %s31, 1
          %s585 = scalar_lea.sflag [#allocation13], %s584
          %s586 = sand.u32 %s221, 1
          %s587 = smul.addr %s586, 4
          %s588 = scalar_lea.vmem [#allocation14], %s587
          %589 = dma.done %s585, 64
        $region88: #{_lambda_.3} parent=75 // pred_fallthru
          _
      $region76: #{_lambda_.3} parent=5 // pred_fallthru
        _
    $region6: #{_lambda_.3} parent=1 // loop_footer
      %s29 = sadd.s32 1, %s25
    $region7: #{_lambda_.3} parent=1 // loop_footer_branch
      %24 = sbr.rel target = $region3
    $region8: #{_lambda_.3} parent=1 // loop_exit
      _
    %590 = vsyncpa [#allocation3], 1
    %s591 = scalar_lea.sflag [#allocation3], 1
    %592 = vsyncpa %s591, 1
    %593 = vsyncpa [#allocation6], 1
    %594 = vsyncpa [#allocation9], 1
    %595 = vsyncpa [#allocation4], 1
    %s596 = scalar_lea.sflag [#allocation4], 1
    %597 = vsyncpa %s596, 1
    %598 = vsyncpa [#allocation13], 1
    %s599 = scalar_lea.sflag [#allocation13], 1
    %600 = vsyncpa %s599, 1

// kernel: _lambda_.5
$region0: #{_lambda_.5}
  #allocation0 [shape = 'u32[]', space=smem, size = 0x4, offset = 0x4, fixed_abs, tag = 'smem constant byte address 0x4 - core index']
  #allocation1 [shape = 'u32[144,128]{1,0:T(1,128)}', space=vmem, size = 0x12000, scoped, tag = 'internal scratch']
  %s0 = inlined_call_operand.hbm [shape: f32[2,8,32], index: 0, kind: input, shape index: {}]
  %s1 = inlined_call_operand.hbm [shape: bf16[2,8,32], index: 1, kind: input, shape index: {}]
  %s2 = inlined_call_operand.hbm [shape: bf16[32,32], index: 2, kind: input, shape index: {}]
  %s3 = inlined_call_operand.hbm [shape: f32[1,32], index: 3, kind: input, shape index: {}]
  %s4 = inlined_call_operand.hbm [shape: f32[1,32], index: 4, kind: input, shape index: {}]
  %s5 = inlined_call_operand.hbm [shape: f32[1,32], index: 5, kind: input, shape index: {}]
  %s6 = inlined_call_operand.hbm [shape: bf16[32,128], index: 6, kind: input, shape index: {}]
  %s7 = inlined_call_operand.hbm [shape: f32[1,128], index: 7, kind: input, shape index: {}]
  %s8 = inlined_call_operand.hbm [shape: bf16[128,32], index: 8, kind: input, shape index: {}]
  %s9 = inlined_call_operand.hbm [shape: f32[1,32], index: 9, kind: input, shape index: {}]
  %s10 = inlined_call_operand.hbm [shape: f32[2,8,32], index: 10, kind: output, shape index: {}]
  %s11 = sld [smem:[#allocation0]]
  $region113: #{_lambda_.5} parent=0
    _
  %s13 = ssub.s32 1, %s11
  %s14 = scalar_select 0, %s13, %s11
  $region1: #{_lambda_.5} parent=0
    #allocation2 [shape = 'u8[8192]{0}', space=vmem, size = 0x2000, scoped, tag = 'input window, operand 0']
    #allocation3 [shape = 's32[2]{0}', space=sflag, size = 0x8, scoped, tag = 'scoped memory for _lambda_.5']
    #allocation4 [shape = 's32[2]{0}', space=sflag, size = 0x8, scoped, tag = 'scoped memory for _lambda_.5']
    #allocation5 [shape = 'u8[4096]{0}', space=vmem, size = 0x1000, scoped, tag = 'input window, operand 1']
    #allocation6 [shape = 's32[2]{0}', space=sflag, size = 0x8, scoped, tag = 'scoped memory for _lambda_.5']
    #allocation7 [shape = 'u8[8192]{0}', space=vmem, size = 0x2000, scoped, tag = 'input window, operand 2, single buffered']
    #allocation8 [shape = 'u8[512]{0}', space=vmem, size = 0x400, scoped, tag = 'input window, operand 3, single buffered']
    #allocation9 [shape = 's32[1]{0}', space=sflag, size = 0x4, scoped, tag = 'scoped memory for _lambda_.5']
    #allocation10 [shape = 'u8[512]{0}', space=vmem, size = 0x400, scoped, tag = 'input window, operand 4, single buffered']
    #allocation11 [shape = 'u8[512]{0}', space=vmem, size = 0x400, scoped, tag = 'input window, operand 5, single buffered']
    #allocation12 [shape = 's32[1]{0}', space=sflag, size = 0x4, scoped, tag = 'scoped memory for _lambda_.5']
    #allocation13 [shape = 'u8[8192]{0}', space=vmem, size = 0x2000, scoped, tag = 'input window, operand 6, single buffered']
    #allocation14 [shape = 'u8[512]{0}', space=vmem, size = 0x400, scoped, tag = 'input window, operand 7, single buffered']
    #allocation15 [shape = 's32[1]{0}', space=sflag, size = 0x4, scoped, tag = 'scoped memory for _lambda_.5']
    #allocation16 [shape = 'u8[32768]{0}', space=vmem, size = 0x8000, scoped, tag = 'input window, operand 8, single buffered']
    #allocation17 [shape = 'u8[512]{0}', space=vmem, size = 0x400, scoped, tag = 'input window, operand 9, single buffered']
    #allocation18 [shape = 's32[1]{0}', space=sflag, size = 0x4, scoped, tag = 'scoped memory for _lambda_.5']
    #allocation19 [shape = 'u8[8192]{0}', space=vmem, size = 0x2000, scoped, tag = 'output window, operand 0']
    %15 = vsyncpa [#allocation3], 0
    %s16 = scalar_lea.sflag [#allocation3], 1
    %17 = vsyncpa %s16, 0
    %18 = vsyncpa [#allocation6], 0
    %s19 = scalar_lea.sflag [#allocation6], 1
    %20 = vsyncpa %s19, 0
    %21 = vsyncpa [#allocation9], 0
    %22 = vsyncpa [#allocation12], 0
    %23 = vsyncpa [#allocation15], 0
    %24 = vsyncpa [#allocation18], 0
    %25 = vsyncpa [#allocation4], 0
    %s26 = scalar_lea.sflag [#allocation4], 1
    %27 = vsyncpa %s26, 0
    loop: start=0, step=1, limit=4
    $region2: #{_lambda_.5} parent=1 // loop_pre_header
      _
    $region3: #{_lambda_.5} parent=1 // loop_header
      %s29 = sphi 0, %s33
      %p30 = scmp.ge.s32.totalorder %s29, 4
      %s36 = sphi 0, %s48
      %s37 = sphi 0, %s44
      %s38 = sphi 0, %s36
      %s39 = sphi 0, %s37
      %s40 = sphi 0, %s38
      %s41 = sphi 0, %s39
      %s53 = sphi 0, %s55
      %s56 = sphi 0, %s53
      %s57 = sphi 0, %s56
      %s73 = sphi 0, %s57
      %s81 = sphi 0, %s83
      %s84 = sphi 0, %s81
      %s85 = sphi 0, %s84
      %s101 = sphi 0, %s85
      %s105 = sphi 0, %s105
      %s107 = sphi 0, %s105
      %s108 = sphi 0, %s107
      %s122 = sphi 0, %s108
      %s126 = sphi 0, %s126
      %s128 = sphi 0, %s126
      %s129 = sphi 0, %s128
      %s143 = sphi 0, %s129
      %s147 = sphi 0, %s147
      %s149 = sphi 0, %s147
      %s150 = sphi 0, %s149
      %s164 = sphi 0, %s150
      %s168 = sphi 0, %s168
      %s170 = sphi 0, %s168
      %s171 = sphi 0, %s170
      %s185 = sphi 0, %s171
      %s189 = sphi 0, %s189
      %s191 = sphi 0, %s189
      %s192 = sphi 0, %s191
      %s206 = sphi 0, %s192
      %s210 = sphi 0, %s210
      %s212 = sphi 0, %s210
      %s213 = sphi 0, %s212
      %s227 = sphi 0, %s213
      %s231 = sphi 0, %s231
      %s233 = sphi 0, %s231
      %s234 = sphi 0, %s233
      %s248 = sphi 0, %s234
      %s252 = sphi 0, %s252
      %s254 = sphi 0, %s252
      %s255 = sphi 0, %s254
      %s269 = sphi 0, %s255
      %s277 = sphi 0, %s279
      %s280 = sphi 0, %s277
      %s281 = sphi 0, %s280
      %s297 = sphi 0, %s281
    $region4: #{_lambda_.5} parent=1 // loop_header_branch
      %32 = sbr.rel (%p30) target = $region8
    $region5: #{_lambda_.5} parent=1 // loop_body
      %s34 = ssub.s32 %s29, 1
      %s35 = ssub.s32 %s29, 2
      %s42 = sadd.s32 1, %s37
      %p43 = scmp.ge.s32.totalorder %s42, 1
      %s44 = scalar_select %p43, 0, %s42
      %s45 = sadd.s32 1, %s36
      %s46 = scalar_select %p43, %s45, %s36
      %p47 = scmp.ge.s32.totalorder %s46, 2
      %s48 = scalar_select %p47, 0, %s46
      %s49 = ssub.s32 %s36, %s48
      %s50 = ssub.s32 %s37, %s44
      %s51 = sor.u32 %s49, %s50
      %p52 = scmp.eq.s32.totalorder %s51, 0
      %s54 = sadd.s32 %s53, 1
      %s55 = scalar_select %p52, %s53, %s54
      %p58 = pneg %p52
      %p59 = scmp.eq.s32.totalorder %s29, 1
      %p60 = por %p58, %p59
      %p61 = scmp.ne.s32.totalorder %s53, %s56
      %p62 = scmp.eq.s32.totalorder %s29, 0
      %p63 = por %p61, %p62
      %p64 = scmp.ne.s32.totalorder %s53, %s56
      %p65 = scmp.eq.s32.totalorder %s34, 1
      %p66 = por %p64, %p65
      %p67 = scmp.ne.s32.totalorder %s56, %s57
      %p68 = scmp.eq.s32.totalorder %s34, 0
      %p69 = por %p67, %p68
      %p70 = scmp.ne.s32.totalorder %s56, %s57
      %p71 = scmp.eq.s32.totalorder %s35, 1
      %p72 = por %p70, %p71
      %p74 = scmp.ne.s32.totalorder %s57, %s73
      %p75 = scmp.eq.s32.totalorder %s35, 0
      %p76 = por %p74, %p75
      %s77 = ssub.s32 %s36, %s48
      %s78 = ssub.s32 %s37, %s44
      %s79 = sor.u32 %s77, %s78
      %p80 = scmp.eq.s32.totalorder %s79, 0
      %s82 = sadd.s32 %s81, 1
      %s83 = scalar_select %p80, %s81, %s82
      %p86 = pneg %p80
      %p87 = scmp.eq.s32.totalorder %s29, 1
      %p88 = por %p86, %p87
      %p89 = scmp.ne.s32.totalorder %s81, %s84
      %p90 = scmp.eq.s32.totalorder %s29, 0
      %p91 = por %p89, %p90
      %p92 = scmp.ne.s32.totalorder %s81, %s84
      %p93 = scmp.eq.s32.totalorder %s34, 1
      %p94 = por %p92, %p93
      %p95 = scmp.ne.s32.totalorder %s84, %s85
      %p96 = scmp.eq.s32.totalorder %s34, 0
      %p97 = por %p95, %p96
      %p98 = scmp.ne.s32.totalorder %s84, %s85
      %p99 = scmp.eq.s32.totalorder %s35, 1
      %p100 = por %p98, %p99
      %p102 = scmp.ne.s32.totalorder %s85, %s101
      %p103 = scmp.eq.s32.totalorder %s35, 0
      %p104 = por %p102, %p103
      %s106 = sadd.s32 %s105, 1
      %p109 = scmp.eq.s32.totalorder %s29, 1
      %p110 = scmp.ne.s32.totalorder %s105, %s107
      %p111 = scmp.eq.s32.totalorder %s29, 0
      %p112 = por %p110, %p111
      %p113 = scmp.ne.s32.totalorder %s105, %s107
      %p114 = scmp.eq.s32.totalorder %s34, 1
      %p115 = por %p113, %p114
      %p116 = scmp.ne.s32.totalorder %s107, %s108
      %p117 = scmp.eq.s32.totalorder %s34, 0
      %p118 = por %p116, %p117
      %p119 = scmp.ne.s32.totalorder %s107, %s108
      %p120 = scmp.eq.s32.totalorder %s35, 1
      %p121 = por %p119, %p120
      %p123 = scmp.ne.s32.totalorder %s108, %s122
      %p124 = scmp.eq.s32.totalorder %s35, 0
      %p125 = por %p123, %p124
      %s127 = sadd.s32 %s126, 1
      %p130 = scmp.eq.s32.totalorder %s29, 1
      %p131 = scmp.ne.s32.totalorder %s126, %s128
      %p132 = scmp.eq.s32.totalorder %s29, 0
      %p133 = por %p131, %p132
      %p134 = scmp.ne.s32.totalorder %s126, %s128
      %p135 = scmp.eq.s32.totalorder %s34, 1
      %p136 = por %p134, %p135
      %p137 = scmp.ne.s32.totalorder %s128, %s129
      %p138 = scmp.eq.s32.totalorder %s34, 0
      %p139 = por %p137, %p138
      %p140 = scmp.ne.s32.totalorder %s128, %s129
      %p141 = scmp.eq.s32.totalorder %s35, 1
      %p142 = por %p140, %p141
      %p144 = scmp.ne.s32.totalorder %s129, %s143
      %p145 = scmp.eq.s32.totalorder %s35, 0
      %p146 = por %p144, %p145
      %s148 = sadd.s32 %s147, 1
      %p151 = scmp.eq.s32.totalorder %s29, 1
      %p152 = scmp.ne.s32.totalorder %s147, %s149
      %p153 = scmp.eq.s32.totalorder %s29, 0
      %p154 = por %p152, %p153
      %p155 = scmp.ne.s32.totalorder %s147, %s149
      %p156 = scmp.eq.s32.totalorder %s34, 1
      %p157 = por %p155, %p156
      %p158 = scmp.ne.s32.totalorder %s149, %s150
      %p159 = scmp.eq.s32.totalorder %s34, 0
      %p160 = por %p158, %p159
      %p161 = scmp.ne.s32.totalorder %s149, %s150
      %p162 = scmp.eq.s32.totalorder %s35, 1
      %p163 = por %p161, %p162
      %p165 = scmp.ne.s32.totalorder %s150, %s164
      %p166 = scmp.eq.s32.totalorder %s35, 0
      %p167 = por %p165, %p166
      %s169 = sadd.s32 %s168, 1
      %p172 = scmp.eq.s32.totalorder %s29, 1
      %p173 = scmp.ne.s32.totalorder %s168, %s170
      %p174 = scmp.eq.s32.totalorder %s29, 0
      %p175 = por %p173, %p174
      %p176 = scmp.ne.s32.totalorder %s168, %s170
      %p177 = scmp.eq.s32.totalorder %s34, 1
      %p178 = por %p176, %p177
      %p179 = scmp.ne.s32.totalorder %s170, %s171
      %p180 = scmp.eq.s32.totalorder %s34, 0
      %p181 = por %p179, %p180
      %p182 = scmp.ne.s32.totalorder %s170, %s171
      %p183 = scmp.eq.s32.totalorder %s35, 1
      %p184 = por %p182, %p183
      %p186 = scmp.ne.s32.totalorder %s171, %s185
      %p187 = scmp.eq.s32.totalorder %s35, 0
      %p188 = por %p186, %p187
      %s190 = sadd.s32 %s189, 1
      %p193 = scmp.eq.s32.totalorder %s29, 1
      %p194 = scmp.ne.s32.totalorder %s189, %s191
      %p195 = scmp.eq.s32.totalorder %s29, 0
      %p196 = por %p194, %p195
      %p197 = scmp.ne.s32.totalorder %s189, %s191
      %p198 = scmp.eq.s32.totalorder %s34, 1
      %p199 = por %p197, %p198
      %p200 = scmp.ne.s32.totalorder %s191, %s192
      %p201 = scmp.eq.s32.totalorder %s34, 0
      %p202 = por %p200, %p201
      %p203 = scmp.ne.s32.totalorder %s191, %s192
      %p204 = scmp.eq.s32.totalorder %s35, 1
      %p205 = por %p203, %p204
      %p207 = scmp.ne.s32.totalorder %s192, %s206
      %p208 = scmp.eq.s32.totalorder %s35, 0
      %p209 = por %p207, %p208
      %s211 = sadd.s32 %s210, 1
      %p214 = scmp.eq.s32.totalorder %s29, 1
      %p215 = scmp.ne.s32.totalorder %s210, %s212
      %p216 = scmp.eq.s32.totalorder %s29, 0
      %p217 = por %p215, %p216
      %p218 = scmp.ne.s32.totalorder %s210, %s212
      %p219 = scmp.eq.s32.totalorder %s34, 1
      %p220 = por %p218, %p219
      %p221 = scmp.ne.s32.totalorder %s212, %s213
      %p222 = scmp.eq.s32.totalorder %s34, 0
      %p223 = por %p221, %p222
      %p224 = scmp.ne.s32.totalorder %s212, %s213
      %p225 = scmp.eq.s32.totalorder %s35, 1
      %p226 = por %p224, %p225
      %p228 = scmp.ne.s32.totalorder %s213, %s227
      %p229 = scmp.eq.s32.totalorder %s35, 0
      %p230 = por %p228, %p229
      %s232 = sadd.s32 %s231, 1
      %p235 = scmp.eq.s32.totalorder %s29, 1
      %p236 = scmp.ne.s32.totalorder %s231, %s233
      %p237 = scmp.eq.s32.totalorder %s29, 0
      %p238 = por %p236, %p237
      %p239 = scmp.ne.s32.totalorder %s231, %s233
      %p240 = scmp.eq.s32.totalorder %s34, 1
      %p241 = por %p239, %p240
      %p242 = scmp.ne.s32.totalorder %s233, %s234
      %p243 = scmp.eq.s32.totalorder %s34, 0
      %p244 = por %p242, %p243
      %p245 = scmp.ne.s32.totalorder %s233, %s234
      %p246 = scmp.eq.s32.totalorder %s35, 1
      %p247 = por %p245, %p246
      %p249 = scmp.ne.s32.totalorder %s234, %s248
      %p250 = scmp.eq.s32.totalorder %s35, 0
      %p251 = por %p249, %p250
      %s253 = sadd.s32 %s252, 1
      %p256 = scmp.eq.s32.totalorder %s29, 1
      %p257 = scmp.ne.s32.totalorder %s252, %s254
      %p258 = scmp.eq.s32.totalorder %s29, 0
      %p259 = por %p257, %p258
      %p260 = scmp.ne.s32.totalorder %s252, %s254
      %p261 = scmp.eq.s32.totalorder %s34, 1
      %p262 = por %p260, %p261
      %p263 = scmp.ne.s32.totalorder %s254, %s255
      %p264 = scmp.eq.s32.totalorder %s34, 0
      %p265 = por %p263, %p264
      %p266 = scmp.ne.s32.totalorder %s254, %s255
      %p267 = scmp.eq.s32.totalorder %s35, 1
      %p268 = por %p266, %p267
      %p270 = scmp.ne.s32.totalorder %s255, %s269
      %p271 = scmp.eq.s32.totalorder %s35, 0
      %p272 = por %p270, %p271
      %s273 = ssub.s32 %s36, %s48
      %s274 = ssub.s32 %s37, %s44
      %s275 = sor.u32 %s273, %s274
      %p276 = scmp.eq.s32.totalorder %s275, 0
      %s278 = sadd.s32 %s277, 1
      %s279 = scalar_select %p276, %s277, %s278
      %p282 = pneg %p276
      %p283 = scmp.eq.s32.totalorder %s29, 1
      %p284 = por %p282, %p283
      %p285 = scmp.ne.s32.totalorder %s277, %s280
      %p286 = scmp.eq.s32.totalorder %s29, 0
      %p287 = por %p285, %p286
      %p288 = scmp.ne.s32.totalorder %s277, %s280
      %p289 = scmp.eq.s32.totalorder %s34, 1
      %p290 = por %p288, %p289
      %p291 = scmp.ne.s32.totalorder %s280, %s281
      %p292 = scmp.eq.s32.totalorder %s34, 0
      %p293 = por %p291, %p292
      %p294 = scmp.ne.s32.totalorder %s280, %s281
      %p295 = scmp.eq.s32.totalorder %s35, 1
      %p296 = por %p294, %p295
      %p298 = scmp.ne.s32.totalorder %s281, %s297
      %p299 = scmp.eq.s32.totalorder %s35, 0
      %p300 = por %p298, %p299
      %p301 = scmp.le.s32.totalorder 1, %s29
      %p302 = scmp.lt.s32.totalorder %s29, 3
      %p303 = pnand %p301, %p302
      %p304 = pneg %p303
      // Predicated region
      $region9: #{_lambda_.5} parent=5 // pred_check
        _
      $region10: #{_lambda_.5} parent=5 // pred_check_branch
        %306 = sbr.rel (%p303) target = $region12
      $region11: #{_lambda_.5} parent=5 // pred_region
        %s307 = ssub.s32 %s29, 1
        // Predicated region
        $region13: #{_lambda_.5} parent=11 // pred_check
          %p308 = pneg %p118
        $region14: #{_lambda_.5} parent=11 // pred_check_branch
          %310 = sbr.rel (%p308) target = $region16
        $region15: #{_lambda_.5} parent=11 // pred_region
          %s312 = ssub.s32 256, 256
          %313 = vsyncadd [#allocation6], %s312
          %s314 = sshll.u32 [#allocation7], 4
          %s315 = int_to_ptr.vmem [resolvable:$true] %s314
          %320 = dma.hbm_to_vmem [thread:$0]  %s2, 256, %s315, [#allocation6], 64, 64, 4
        $region16: #{_lambda_.5} parent=11 // pred_fallthru
          _
        // Predicated region
        $region17: #{_lambda_.5} parent=11 // pred_check
          %p321 = pneg %p139
        $region18: #{_lambda_.5} parent=11 // pred_check_branch
          %323 = sbr.rel (%p321) target = $region20
        $region19: #{_lambda_.5} parent=11 // pred_region
          %s325 = ssub.s32 16, 16
          %326 = vsyncadd [#allocation9], %s325
          %s328 = sshll.u32 [#allocation8], 4
          %s329 = int_to_ptr.vmem [resolvable:$true] %s328
          %331 = dma.hbm_to_vmem [thread:$0]  %s3, 16, %s329, [#allocation9]
        $region20: #{_lambda_.5} parent=11 // pred_fallthru
          _
        // Predicated region
        $region21: #{_lambda_.5} parent=11 // pred_check
          %p332 = pneg %p160
        $region22: #{_lambda_.5} parent=11 // pred_check_branch
          %334 = sbr.rel (%p332) target = $region24
        $region23: #{_lambda_.5} parent=11 // pred_region
          %s336 = ssub.s32 16, 16
          %337 = vsyncadd [#allocation9], %s336
          %s339 = sshll.u32 [#allocation10], 4
          %s340 = int_to_ptr.vmem [resolvable:$true] %s339
          %342 = dma.hbm_to_vmem [thread:$0]  %s4, 16, %s340, [#allocation9]
        $region24: #{_lambda_.5} parent=11 // pred_fallthru
          _
        // Predicated region
        $region25: #{_lambda_.5} parent=11 // pred_check
          %p343 = pneg %p181
        $region26: #{_lambda_.5} parent=11 // pred_check_branch
          %345 = sbr.rel (%p343) target = $region28
        $region27: #{_lambda_.5} parent=11 // pred_region
          %s347 = ssub.s32 16, 16
          %348 = vsyncadd [#allocation12], %s347
          %s350 = sshll.u32 [#allocation11], 4
          %s351 = int_to_ptr.vmem [resolvable:$true] %s350
          %353 = dma.hbm_to_vmem [thread:$0]  %s5, 16, %s351, [#allocation12]
        $region28: #{_lambda_.5} parent=11 // pred_fallthru
          _
        // Predicated region
        $region29: #{_lambda_.5} parent=11 // pred_check
          %p354 = pneg %p202
        $region30: #{_lambda_.5} parent=11 // pred_check_branch
          %356 = sbr.rel (%p354) target = $region32
        $region31: #{_lambda_.5} parent=11 // pred_region
          %s358 = ssub.s32 256, 256
          %359 = vsyncadd [#allocation12], %s358
          %s360 = sshll.u32 [#allocation13], 4
          %s361 = int_to_ptr.vmem [resolvable:$true] %s360
          %366 = dma.hbm_to_vmem [thread:$0]  %s6, 256, %s361, [#allocation12], 64, 64, 4
        $region32: #{_lambda_.5} parent=11 // pred_fallthru
          _
        // Predicated region
        $region33: #{_lambda_.5} parent=11 // pred_check
          %p367 = pneg %p223
        $region34: #{_lambda_.5} parent=11 // pred_check_branch
          %369 = sbr.rel (%p367) target = $region36
        $region35: #{_lambda_.5} parent=11 // pred_region
          %s371 = ssub.s32 16, 16
          %372 = vsyncadd [#allocation15], %s371
          %s374 = sshll.u32 [#allocation14], 4
          %s375 = int_to_ptr.vmem [resolvable:$true] %s374
          %377 = dma.hbm_to_vmem [thread:$0]  %s7, 16, %s375, [#allocation15]
        $region36: #{_lambda_.5} parent=11 // pred_fallthru
          _
        // Predicated region
        $region37: #{_lambda_.5} parent=11 // pred_check
          %p378 = pneg %p244
        $region38: #{_lambda_.5} parent=11 // pred_check_branch
          %380 = sbr.rel (%p378) target = $region40
        $region39: #{_lambda_.5} parent=11 // pred_region
          %s382 = ssub.s32 1024, 1024
          %383 = vsyncadd [#allocation15], %s382
          %s384 = sshll.u32 [#allocation16], 4
          %s385 = int_to_ptr.vmem [resolvable:$true] %s384
          %390 = dma.hbm_to_vmem [thread:$0]  %s8, 1024, %s385, [#allocation15], 64, 64, 4
        $region40: #{_lambda_.5} parent=11 // pred_fallthru
          _
        // Predicated region
        $region41: #{_lambda_.5} parent=11 // pred_check
          %p391 = pneg %p265
        $region42: #{_lambda_.5} parent=11 // pred_check_branch
          %393 = sbr.rel (%p391) target = $region44
        $region43: #{_lambda_.5} parent=11 // pred_region
          %s395 = ssub.s32 16, 16
          %396 = vsyncadd [#allocation18], %s395
          %s398 = sshll.u32 [#allocation17], 4
          %s399 = int_to_ptr.vmem [resolvable:$true] %s398
          %401 = dma.hbm_to_vmem [thread:$0]  %s9, 16, %s399, [#allocation18]
        $region44: #{_lambda_.5} parent=11 // pred_fallthru
          _
      $region12: #{_lambda_.5} parent=5 // pred_fallthru
        _
      %p402 = scmp.lt.s32.totalorder %s29, 2
      // Predicated region
      $region45: #{_lambda_.5} parent=5 // pred_check
        %p403 = pneg %p402
      $region46: #{_lambda_.5} parent=5 // pred_check_branch
        %405 = sbr.rel (%p403) target = $region48
      $region47: #{_lambda_.5} parent=5 // pred_region
        // Predicated region
        $region49: #{_lambda_.5} parent=47 // pred_check
          %p406 = pneg %p63
        $region50: #{_lambda_.5} parent=47 // pred_check_branch
          %408 = sbr.rel (%p406) target = $region52
        $region51: #{_lambda_.5} parent=47 // pred_region
          %s409 = sand.u32 %s53, 1
          %s410 = scalar_lea.sflag [#allocation3], %s409
          %s411 = sand.u32 %s53, 1
          %s412 = smul.addr %s411, 8
          %s413 = scalar_lea.vmem [#allocation2], %s412
          %s415 = ssub.s32 128, 128
          %416 = vsyncadd %s410, %s415
          %s417 = sadd.s32 %s37, %s36
          %s418 = smul.addr %s417, 128
          %s419 = scalar_lea.hbm %s0, %s418
          %s421 = sshll.u32 %s413, 4
          %s422 = int_to_ptr.vmem [resolvable:$true] %s421
          %424 = dma.hbm_to_vmem [thread:$0]  %s419, 128, %s422, %s410
        $region52: #{_lambda_.5} parent=47 // pred_fallthru
          _
        // Predicated region
        $region53: #{_lambda_.5} parent=47 // pred_check
          %p425 = pneg %p91
        $region54: #{_lambda_.5} parent=47 // pred_check_branch
          %427 = sbr.rel (%p425) target = $region56
        $region55: #{_lambda_.5} parent=47 // pred_region
          %s428 = sand.u32 %s29, 1
          %s429 = scalar_lea.sflag [#allocation6], %s428
          %s430 = sand.u32 %s81, 1
          %s431 = smul.addr %s430, 4
          %s432 = scalar_lea.vmem [#allocation5], %s431
          %s434 = ssub.s32 64, 64
          %435 = vsyncadd %s429, %s434
          %s436 = sadd.s32 %s37, %s36
          %s437 = smul.addr %s436, 64
          %s438 = scalar_lea.hbm %s1, %s437
          %s440 = sshll.u32 %s432, 4
          %s441 = int_to_ptr.vmem [resolvable:$true] %s440
          %443 = dma.hbm_to_vmem [thread:$0]  %s438, 64, %s441, %s429
        $region56: #{_lambda_.5} parent=47 // pred_fallthru
          _
      $region48: #{_lambda_.5} parent=5 // pred_fallthru
        _
      %p444 = scmp.le.s32.totalorder 1, %s29
      %p445 = scmp.lt.s32.totalorder %s29, 3
      %p446 = pnand %p444, %p445
      %p447 = pneg %p446
      // Predicated region
      $region57: #{_lambda_.5} parent=5 // pred_check
        _
      $region58: #{_lambda_.5} parent=5 // pred_check_branch
        %449 = sbr.rel (%p446) target = $region60
      $region59: #{_lambda_.5} parent=5 // pred_region
        %s450 = ssub.s32 %s29, 1
        %s451 = sand.u32 %s56, 1
        %s452 = scalar_lea.sflag [#allocation3], %s451
        %s453 = sand.u32 %s56, 1
        %s454 = smul.addr %s453, 8
        %s455 = scalar_lea.vmem [#allocation2], %s454
        // Predicated region
        $region61: #{_lambda_.5} parent=59 // pred_check
          %p456 = pneg %p69
        $region62: #{_lambda_.5} parent=59 // pred_check_branch
          %458 = sbr.rel (%p456) target = $region64
        $region63: #{_lambda_.5} parent=59 // pred_region
          %459 = dma.done %s452, 128
        $region64: #{_lambda_.5} parent=59 // pred_fallthru
          _
        %s460 = sand.u32 %s34, 1
        %s461 = scalar_lea.sflag [#allocation6], %s460
        %s462 = sand.u32 %s84, 1
        %s463 = smul.addr %s462, 4
        %s464 = scalar_lea.vmem [#allocation5], %s463
        // Predicated region
        $region65: #{_lambda_.5} parent=59 // pred_check
          %p465 = pneg %p97
        $region66: #{_lambda_.5} parent=59 // pred_check_branch
          %467 = sbr.rel (%p465) target = $region68
        $region67: #{_lambda_.5} parent=59 // pred_region
          %468 = dma.done %s461, 64
        $region68: #{_lambda_.5} parent=59 // pred_fallthru
          _
        // Predicated region
        $region69: #{_lambda_.5} parent=59 // pred_check
          %p469 = pneg %p118
        $region70: #{_lambda_.5} parent=59 // pred_check_branch
          %471 = sbr.rel (%p469) target = $region72
        $region71: #{_lambda_.5} parent=59 // pred_region
          %472 = dma.done [#allocation6], 256
        $region72: #{_lambda_.5} parent=59 // pred_fallthru
          _
        // Predicated region
        $region73: #{_lambda_.5} parent=59 // pred_check
          %p473 = pneg %p139
        $region74: #{_lambda_.5} parent=59 // pred_check_branch
          %475 = sbr.rel (%p473) target = $region76
        $region75: #{_lambda_.5} parent=59 // pred_region
          %476 = dma.done [#allocation9], 16
        $region76: #{_lambda_.5} parent=59 // pred_fallthru
          _
        // Predicated region
        $region77: #{_lambda_.5} parent=59 // pred_check
          %p477 = pneg %p160
        $region78: #{_lambda_.5} parent=59 // pred_check_branch
          %479 = sbr.rel (%p477) target = $region80
        $region79: #{_lambda_.5} parent=59 // pred_region
          %480 = dma.done [#allocation9], 16
        $region80: #{_lambda_.5} parent=59 // pred_fallthru
          _
        // Predicated region
        $region81: #{_lambda_.5} parent=59 // pred_check
          %p481 = pneg %p181
        $region82: #{_lambda_.5} parent=59 // pred_check_branch
          %483 = sbr.rel (%p481) target = $region84
        $region83: #{_lambda_.5} parent=59 // pred_region
          %484 = dma.done [#allocation12], 16
        $region84: #{_lambda_.5} parent=59 // pred_fallthru
          _
        // Predicated region
        $region85: #{_lambda_.5} parent=59 // pred_check
          %p485 = pneg %p202
        $region86: #{_lambda_.5} parent=59 // pred_check_branch
          %487 = sbr.rel (%p485) target = $region88
        $region87: #{_lambda_.5} parent=59 // pred_region
          %488 = dma.done [#allocation12], 256
        $region88: #{_lambda_.5} parent=59 // pred_fallthru
          _
        // Predicated region
        $region89: #{_lambda_.5} parent=59 // pred_check
          %p489 = pneg %p223
        $region90: #{_lambda_.5} parent=59 // pred_check_branch
          %491 = sbr.rel (%p489) target = $region92
        $region91: #{_lambda_.5} parent=59 // pred_region
          %492 = dma.done [#allocation15], 16
        $region92: #{_lambda_.5} parent=59 // pred_fallthru
          _
        // Predicated region
        $region93: #{_lambda_.5} parent=59 // pred_check
          %p493 = pneg %p244
        $region94: #{_lambda_.5} parent=59 // pred_check_branch
          %495 = sbr.rel (%p493) target = $region96
        $region95: #{_lambda_.5} parent=59 // pred_region
          %496 = dma.done [#allocation15], 1024
        $region96: #{_lambda_.5} parent=59 // pred_fallthru
          _
        // Predicated region
        $region97: #{_lambda_.5} parent=59 // pred_check
          %p497 = pneg %p265
        $region98: #{_lambda_.5} parent=59 // pred_check_branch
          %499 = sbr.rel (%p497) target = $region100
        $region99: #{_lambda_.5} parent=59 // pred_region
          %500 = dma.done [#allocation18], 16
        $region100: #{_lambda_.5} parent=59 // pred_fallthru
          _
        %s501 = sand.u32 %s56, 1
        %s502 = scalar_lea.sflag [#allocation3], %s501
        %s503 = sand.u32 %s56, 1
        %s504 = smul.addr %s503, 8
        %s505 = scalar_lea.vmem [#allocation2], %s504
        %p506 = pneg %p69
        %p507 = pneg %p66
        %s508 = sand.u32 %s34, 1
        %s509 = scalar_lea.sflag [#allocation6], %s508
        %s510 = sand.u32 %s84, 1
        %s511 = smul.addr %s510, 4
        %s512 = scalar_lea.vmem [#allocation5], %s511
        %p513 = pneg %p97
        %p514 = pneg %p94
        %p515 = pneg %p118
        %p516 = pneg %p115
        %p517 = pneg %p139
        %p518 = pneg %p136
        %p519 = pneg %p160
        %p520 = pneg %p157
        %p521 = pneg %p181
        %p522 = pneg %p178
        %p523 = pneg %p202
        %p524 = pneg %p199
        %p525 = pneg %p223
        %p526 = pneg %p220
        %p527 = pneg %p244
        %p528 = pneg %p241
        %p529 = pneg %p265
        %p530 = pneg %p262
        %p531 = pneg %p293
        %p532 = pneg %p290
        %s533 = sand.u32 %s280, 1
        %s534 = scalar_lea.sflag [#allocation4], %s533
        %s535 = sand.u32 %s280, 1
        %s536 = smul.addr %s535, 8
        %s537 = scalar_lea.vmem [#allocation19], %s536
        %v539 = vld [vmem:[%s455] sm:$0xff]
        %v540 = vld [vmem:[%s464] sm:$0xf]
        %v541 = vld [vmem:[#allocation7] sm:$0xf]
        %v542 = vld [vmem:[#allocation7 + $0x4] sm:$0xf]
        %v543 = vld [vmem:[#allocation7 + $0x8] sm:$0xf]
        %v544 = vld [vmem:[#allocation7 + $0xc] sm:$0xf]
        %v545 = vld [vmem:[#allocation8] sm:$0x1]
        %v547 = vlaneseq
        %v548 = vshrl.u32 %v547, 7
        %v549 = vsub.s32 0, %v548
        %v550 = vrot.slane %v545, %v549
        %v556 = vunpack.c.l.b16 %v541
        %v557 = vunpack.c.l.b16 %v542
        %v558 = vunpack.c.l.b16 %v543
        %v559 = vunpack.c.l.b16 %v544
        %v560 = vpack.c.b16 %v557, %v556
        %v561 = vpack.c.b16 %v559, %v558
        %vm564 = vcmask 261120
        %v566 = vsel %vm564, %v540, 0
        %568 = vmatprep.subr.bf16.mxu0 0
        %569 = vmatpush1.bf16.msra.mxu0 %v560
        %570 = vmatprep.subr.bf16.mxu0 0
        %571 = vmatpush1.bf16.msra.mxu0 %v561
        %572 = vmatprep.subr.bf16.mxu0 0
        %573 = vmatpush1.bf16.msra.mxu0 0
        %574 = vmatprep.subr.bf16.mxu0 0
        %575 = vmatpush1.bf16.msra.mxu0 0
        %576 = vmatprep.subr.bf16.mxu0 0
        %577 = vmatpush1.bf16.msra.mxu0 0
        %578 = vmatprep.subr.bf16.mxu0 0
        %579 = vmatpush1.bf16.msra.mxu0 0
        %580 = vmatprep.subr.bf16.mxu0 0
        %581 = vmatpush1.bf16.msra.mxu0 0
        %582 = vmatprep.subr.bf16.mxu0 0
        %583 = vmatpush1.bf16.msra.mxu0 0
        %584 = vmatprep.subr.bf16.mxu0 0
        %585 = vmatpush1.bf16.msra.mxu0 0
        %586 = vmatprep.subr.bf16.mxu0 0
        %587 = vmatpush1.bf16.msra.mxu0 0
        %588 = vmatprep.subr.bf16.mxu0 0
        %589 = vmatpush1.bf16.msra.mxu0 0
        %590 = vmatprep.subr.bf16.mxu0 0
        %591 = vmatpush1.bf16.msra.mxu0 0
        %592 = vmatprep.subr.bf16.mxu0 0
        %593 = vmatpush1.bf16.msra.mxu0 0
        %594 = vmatprep.subr.bf16.mxu0 0
        %595 = vmatpush1.bf16.msra.mxu0 0
        %596 = vmatprep.subr.bf16.mxu0 0
        %597 = vmatpush1.bf16.msra.mxu0 0
        %598 = vmatprep.subr.bf16.mxu0 0
        %599 = vmatpush1.bf16.msra.mxu0 0
        %600 = vmatprep.mubr.bf16.mxu0 0
        %601 = vmatmul.mubr.bf16.gmra.mrb[0].mxu0 %v566
        %v602 = vpop.f32.mrb[0].mxu0
        %v603 = vadd.f32 %v550, %v602
        %v604 = vpop.f32.mrb[0].mxu0
        %v605 = vpop.f32.mrb[0].mxu0
        %v606 = vpop.f32.mrb[0].mxu0
        %607 = vdwg.mxu0
        %v608 = vadd.f32 %v539, %v603
        %v609 = vsel %vm564, %v608, 0.0
        %610 = vadd.xlane.f32.xlu0 %v609
        %v611 = vpop.xlane.xlu0 %610
        %v612 = vrcp.pop 32.0
        %v613 = vmul.f32 %v611, %v612
        %v614 = vsub.f32 %v608, %v613
        %v615 = vmul.f32 %v614, %v614
        %v616 = vsel %vm564, %v615, 0.0
        %617 = vadd.xlane.f32.xlu0 %v616
        %v618 = vpop.xlane.xlu0 %617
        %v619 = vmul.f32 %v618, %v612
        %v620 = vadd.f32 %v619, 1e-05
        %v621 = vrsqrt.pop %v620
        %v622 = vmul.f32 %v614, %v621
        %v623 = vld [vmem:[#allocation10] sm:$0x1]
        %v625 = vlaneseq
        %v626 = vshrl.u32 %v625, 7
        %v627 = vsub.s32 0, %v626
        %v628 = vrot.slane %v623, %v627
        %v630 = vmul.f32 %v622, %v628
        %v631 = vld [vmem:[#allocation11] sm:$0x1]
        %v633 = vlaneseq
        %v634 = vshrl.u32 %v633, 7
        %v635 = vsub.s32 0, %v634
        %v636 = vrot.slane %v631, %v635
        %v638 = vadd.f32 %v630, %v636
        %v639 = vpack.c.bf16 %v638, %v638
        %v640 = vld [vmem:[#allocation13] sm:$0xf]
        %v641 = vld [vmem:[#allocation13 + $0x4] sm:$0xf]
        %v642 = vld [vmem:[#allocation13 + $0x8] sm:$0xf]
        %v643 = vld [vmem:[#allocation13 + $0xc] sm:$0xf]
        %v644 = vld [vmem:[#allocation14] sm:$0x1]
        %v646 = vlaneseq
        %v647 = vshrl.u32 %v646, 7
        %v648 = vsub.s32 0, %v647
        %v649 = vrot.slane %v644, %v648
        %v655 = vunpack.c.l.b16 %v640
        %v656 = vunpack.c.l.b16 %v641
        %v657 = vunpack.c.l.b16 %v642
        %v658 = vunpack.c.l.b16 %v643
        %v659 = vpack.c.b16 %v656, %v655
        %v660 = vpack.c.b16 %v658, %v657
        %v664 = vsel %vm564, %v639, 0
        %666 = vmatprep.subr.bf16.mxu0 0
        %667 = vmatpush1.bf16.msra.mxu0 %v659
        %668 = vmatprep.subr.bf16.mxu0 0
        %669 = vmatpush1.bf16.msra.mxu0 %v660
        %670 = vmatprep.subr.bf16.mxu0 0
        %671 = vmatpush1.bf16.msra.mxu0 0
        %672 = vmatprep.subr.bf16.mxu0 0
        %673 = vmatpush1.bf16.msra.mxu0 0
        %674 = vmatprep.subr.bf16.mxu0 0
        %675 = vmatpush1.bf16.msra.mxu0 0
        %676 = vmatprep.subr.bf16.mxu0 0
        %677 = vmatpush1.bf16.msra.mxu0 0
        %678 = vmatprep.subr.bf16.mxu0 0
        %679 = vmatpush1.bf16.msra.mxu0 0
        %680 = vmatprep.subr.bf16.mxu0 0
        %681 = vmatpush1.bf16.msra.mxu0 0
        %682 = vmatprep.subr.bf16.mxu0 0
        %683 = vmatpush1.bf16.msra.mxu0 0
        %684 = vmatprep.subr.bf16.mxu0 0
        %685 = vmatpush1.bf16.msra.mxu0 0
        %686 = vmatprep.subr.bf16.mxu0 0
        %687 = vmatpush1.bf16.msra.mxu0 0
        %688 = vmatprep.subr.bf16.mxu0 0
        %689 = vmatpush1.bf16.msra.mxu0 0
        %690 = vmatprep.subr.bf16.mxu0 0
        %691 = vmatpush1.bf16.msra.mxu0 0
        %692 = vmatprep.subr.bf16.mxu0 0
        %693 = vmatpush1.bf16.msra.mxu0 0
        %694 = vmatprep.subr.bf16.mxu0 0
        %695 = vmatpush1.bf16.msra.mxu0 0
        %696 = vmatprep.subr.bf16.mxu0 0
        %697 = vmatpush1.bf16.msra.mxu0 0
        %698 = vmatprep.mubr.bf16.mxu0 0
        %699 = vmatmul.mubr.bf16.gmra.mrb[0].mxu0 %v664
        %v700 = vpop.f32.mrb[0].mxu0
        %v701 = vadd.f32 %v649, %v700
        %v702 = vpop.f32.mrb[0].mxu0
        %v703 = vpop.f32.mrb[0].mxu0
        %v704 = vpop.f32.mrb[0].mxu0
        %705 = vdwg.mxu0
        %v706 = vmul.f32 %v701, 0.5
        %v707 = vmul.f32 %v701, 0.044715
        %v708 = vmul.f32 %v707, %v701
        %v709 = vmul.f32 %v708, %v701
        %v710 = vadd.f32 %v701, %v709
        %v711 = vmul.f32 %v710, 0.7978846
        %v712 = vtanh.pop %v711
        %v713 = vadd.f32 %v712, 1.0
        %v714 = vmul.f32 %v706, %v713
        %v715 = vpack.c.bf16 %v714, %v714
        %v716 = vld [vmem:[#allocation16] sm:$0xf]
        %v717 = vld [vmem:[#allocation16 + $0x4] sm:$0xf]
        %v718 = vld [vmem:[#allocation16 + $0x8] sm:$0xf]
        %v719 = vld [vmem:[#allocation16 + $0xc] sm:$0xf]
        %v720 = vld [vmem:[#allocation16 + $0x10] sm:$0xf]
        %v721 = vld [vmem:[#allocation16 + $0x14] sm:$0xf]
        %v722 = vld [vmem:[#allocation16 + $0x18] sm:$0xf]
        %v723 = vld [vmem:[#allocation16 + $0x1c] sm:$0xf]
        %v724 = vld [vmem:[#allocation16 + $0x20] sm:$0xf]
        %v725 = vld [vmem:[#allocation16 + $0x24] sm:$0xf]
        %v726 = vld [vmem:[#allocation16 + $0x28] sm:$0xf]
        %v727 = vld [vmem:[#allocation16 + $0x2c] sm:$0xf]
        %v728 = vld [vmem:[#allocation16 + $0x30] sm:$0xf]
        %v729 = vld [vmem:[#allocation16 + $0x34] sm:$0xf]
        %v730 = vld [vmem:[#allocation16 + $0x38] sm:$0xf]
        %v731 = vld [vmem:[#allocation16 + $0x3c] sm:$0xf]
        %v732 = vld [vmem:[#allocation17] sm:$0x1]
        %v734 = vlaneseq
        %v735 = vshrl.u32 %v734, 7
        %v736 = vsub.s32 0, %v735
        %v737 = vrot.slane %v732, %v736
        %v755 = vunpack.c.l.b16 %v716
        %v756 = vunpack.c.l.b16 %v717
        %v757 = vunpack.c.l.b16 %v718
        %v758 = vunpack.c.l.b16 %v719
        %v759 = vunpack.c.l.b16 %v720
        %v760 = vunpack.c.l.b16 %v721
        %v761 = vunpack.c.l.b16 %v722
        %v762 = vunpack.c.l.b16 %v723
        %v763 = vunpack.c.l.b16 %v724
        %v764 = vunpack.c.l.b16 %v725
        %v765 = vunpack.c.l.b16 %v726
        %v766 = vunpack.c.l.b16 %v727
        %v767 = vunpack.c.l.b16 %v728
        %v768 = vunpack.c.l.b16 %v729
        %v769 = vunpack.c.l.b16 %v730
        %v770 = vunpack.c.l.b16 %v731
        %v771 = vpack.c.b16 %v756, %v755
        %v772 = vpack.c.b16 %v758, %v757
        %v773 = vpack.c.b16 %v760, %v759
        %v774 = vpack.c.b16 %v762, %v761
        %v775 = vpack.c.b16 %v764, %v763
        %v776 = vpack.c.b16 %v766, %v765
        %v777 = vpack.c.b16 %v768, %v767
        %v778 = vpack.c.b16 %v770, %v769
        %787 = vmatprep.subr.bf16.mxu0 0
        %788 = vmatpush1.bf16.msra.mxu0 %v771
        %789 = vmatprep.subr.bf16.mxu0 0
        %790 = vmatpush1.bf16.msra.mxu0 %v772
        %791 = vmatprep.subr.bf16.mxu0 0
        %792 = vmatpush1.bf16.msra.mxu0 %v773
        %793 = vmatprep.subr.bf16.mxu0 0
        %794 = vmatpush1.bf16.msra.mxu0 %v774
        %795 = vmatprep.subr.bf16.mxu0 0
        %796 = vmatpush1.bf16.msra.mxu0 %v775
        %797 = vmatprep.subr.bf16.mxu0 0
        %798 = vmatpush1.bf16.msra.mxu0 %v776
        %799 = vmatprep.subr.bf16.mxu0 0
        %800 = vmatpush1.bf16.msra.mxu0 %v777
        %801 = vmatprep.subr.bf16.mxu0 0
        %802 = vmatpush1.bf16.msra.mxu0 %v778
        %803 = vmatprep.subr.bf16.mxu0 0
        %804 = vmatpush1.bf16.msra.mxu0 0
        %805 = vmatprep.subr.bf16.mxu0 0
        %806 = vmatpush1.bf16.msra.mxu0 0
        %807 = vmatprep.subr.bf16.mxu0 0
        %808 = vmatpush1.bf16.msra.mxu0 0
        %809 = vmatprep.subr.bf16.mxu0 0
        %810 = vmatpush1.bf16.msra.mxu0 0
        %811 = vmatprep.subr.bf16.mxu0 0
        %812 = vmatpush1.bf16.msra.mxu0 0
        %813 = vmatprep.subr.bf16.mxu0 0
        %814 = vmatpush1.bf16.msra.mxu0 0
        %815 = vmatprep.subr.bf16.mxu0 0
        %816 = vmatpush1.bf16.msra.mxu0 0
        %817 = vmatprep.subr.bf16.mxu0 0
        %818 = vmatpush1.bf16.msra.mxu0 0
        %819 = vmatprep.mubr.bf16.mxu0 0
        %820 = vmatmul.mubr.bf16.gmra.mrb[0].mxu0 %v715
        %v821 = vpop.f32.mrb[0].mxu0
        %v822 = vadd.f32 %v737, %v821
        %v823 = vpop.f32.mrb[0].mxu0
        %v824 = vpop.f32.mrb[0].mxu0
        %v825 = vpop.f32.mrb[0].mxu0
        %826 = vdwg.mxu0
        %v827 = vadd.f32 %v608, %v822
        %828 = vst.msk [vmem:[%s537] sm:$0xff] %vm564, %v827
        %s829 = sand.u32 %s280, 1
        %s830 = scalar_lea.sflag [#allocation4], %s829
        %s831 = sand.u32 %s280, 1
        %s832 = smul.addr %s831, 8
        %s833 = scalar_lea.vmem [#allocation19], %s832
        // Predicated region
        $region101: #{_lambda_.5} parent=59 // pred_check
          %p834 = pneg %p290
        $region102: #{_lambda_.5} parent=59 // pred_check_branch
          %836 = sbr.rel (%p834) target = $region104
        $region103: #{_lambda_.5} parent=59 // pred_region
          %s838 = ssub.s32 128, 128
          %839 = vsyncadd %s830, %s838
          %s840 = sadd.s32 %s39, %s38
          %s841 = smul.addr %s840, 128
          %s842 = scalar_lea.hbm %s10, %s841
          %s844 = sshll.u32 %s833, 4
          %s845 = int_to_ptr.vmem [resolvable:$true] %s844
          %847 = dma.vmem_to_hbm [thread:$0]  %s845, 128, %s842, %s830
        $region104: #{_lambda_.5} parent=59 // pred_fallthru
          _
      $region60: #{_lambda_.5} parent=5 // pred_fallthru
        _
      %p848 = scmp.le.s32.totalorder 2, %s29
      // Predicated region
      $region105: #{_lambda_.5} parent=5 // pred_check
        %p849 = pneg %p848
      $region106: #{_lambda_.5} parent=5 // pred_check_branch
        %851 = sbr.rel (%p849) target = $region108
      $region107: #{_lambda_.5} parent=5 // pred_region
        %s852 = ssub.s32 %s29, 2
        // Predicated region
        $region109: #{_lambda_.5} parent=107 // pred_check
          %p853 = pneg %p296
        $region110: #{_lambda_.5} parent=107 // pred_check_branch
          %855 = sbr.rel (%p853) target = $region112
        $region111: #{_lambda_.5} parent=107 // pred_region
          %s856 = sand.u32 %s281, 1
          %s857 = scalar_lea.sflag [#allocation4], %s856
          %s858 = sand.u32 %s281, 1
          %s859 = smul.addr %s858, 8
          %s860 = scalar_lea.vmem [#allocation19], %s859
          %861 = dma.done %s857, 128
        $region112: #{_lambda_.5} parent=107 // pred_fallthru
          _
      $region108: #{_lambda_.5} parent=5 // pred_fallthru
        _
    $region6: #{_lambda_.5} parent=1 // loop_footer
      %s33 = sadd.s32 1, %s29
    $region7: #{_lambda_.5} parent=1 // loop_footer_branch
      %28 = sbr.rel target = $region3
    $region8: #{_lambda_.5} parent=1 // loop_exit
      _
    %862 = vsyncpa [#allocation3], 1
    %s863 = scalar_lea.sflag [#allocation3], 1
    %864 = vsyncpa %s863, 1
    %865 = vsyncpa [#allocation6], 1
    %s866 = scalar_lea.sflag [#allocation6], 1
    %867 = vsyncpa %s866, 1
    %868 = vsyncpa [#allocation9], 1
    %869 = vsyncpa [#allocation12], 1
    %870 = vsyncpa [#allocation15], 1
    %871 = vsyncpa [#allocation18], 1
    %872 = vsyncpa [#allocation4], 1
    %s873 = scalar_lea.sflag [#allocation4], 1
    %874 = vsyncpa %s873, 1

// kernel: _lambda_.4
$region0: #{_lambda_.4}
  #allocation0 [shape = 'u32[]', space=smem, size = 0x4, offset = 0x4, fixed_abs, tag = 'smem constant byte address 0x4 - core index']
  #allocation1 [shape = 'u32[144,128]{1,0:T(1,128)}', space=vmem, size = 0x12000, scoped, tag = 'internal scratch']
  #allocation2 [shape = 'f32[4,8,1]{2,1,0:T(8,128)}', space=vmem, size = 0x4000, scoped, tag = 'scratch operand']
  #allocation3 [shape = 'f32[4,8,1]{2,1,0:T(8,128)}', space=vmem, size = 0x4000, scoped, tag = 'scratch operand']
  #allocation4 [shape = 'f32[8,32]{1,0:T(8,128)}', space=vmem, size = 0x1000, scoped, tag = 'scratch operand']
  #allocation5 [shape = 's32[1]{0}', space=sflag, size = 0x4, scoped, tag = 'scoped memory for _lambda_.4']
  #allocation6 [shape = 's32[1]{0:T(128)S(6)}', space=smem, size = 0x200, scoped, tag = 'prefetched SMEM operand 0']
  #allocation7 [shape = 's32[1]{0:T(128)S(6)}', space=smem, size = 0x200, scoped, tag = 'prefetched SMEM operand 1']
  %s0 = inlined_call_operand.<no memory space> [shape: s32[1], index: 0, kind: input, shape index: {}, may-alias: {0,1}]
  %s1 = inlined_call_operand.<no memory space> [shape: s32[1], index: 1, kind: input, shape index: {}, may-alias: {0,1}]
  %s2 = inlined_call_operand.hbm [shape: bf16[2,8,32], index: 2, kind: input, shape index: {}]
  %s3 = inlined_call_operand.hbm [shape: bf16[2,8,32], index: 3, kind: input, shape index: {}]
  %s4 = inlined_call_operand.hbm [shape: bf16[2,8,32], index: 4, kind: input, shape index: {}]
  %s5 = inlined_call_operand.hbm [shape: bf16[2,8,32], index: 5, kind: output, shape index: {}]
  %s6 = sld [smem:[#allocation0]]
  $region69: #{_lambda_.4} parent=0
    _
  %s8 = ssub.s32 1, %s6
  %s9 = scalar_select 0, %s8, %s6
  %10 = sst [smem:[#allocation6]] %s0
  %11 = sst [smem:[#allocation7]] %s1
  $region1: #{_lambda_.4} parent=0
    #allocation8 [shape = 'u8[4096]{0}', space=vmem, size = 0x1000, scoped, tag = 'input window, operand 2']
    #allocation9 [shape = 's32[2]{0}', space=sflag, size = 0x8, scoped, tag = 'scoped memory for _lambda_.4']
    #allocation10 [shape = 's32[2]{0}', space=sflag, size = 0x8, scoped, tag = 'scoped memory for _lambda_.4']
    #allocation11 [shape = 'u8[4096]{0}', space=vmem, size = 0x1000, scoped, tag = 'input window, operand 3']
    #allocation12 [shape = 's32[2]{0}', space=sflag, size = 0x8, scoped, tag = 'scoped memory for _lambda_.4']
    #allocation13 [shape = 'u8[4096]{0}', space=vmem, size = 0x1000, scoped, tag = 'input window, operand 4']
    #allocation14 [shape = 'u8[4096]{0}', space=vmem, size = 0x1000, scoped, tag = 'output window, operand 0']
    %12 = vsyncpa [#allocation9], 0
    %s13 = scalar_lea.sflag [#allocation9], 1
    %14 = vsyncpa %s13, 0
    %15 = vsyncpa [#allocation12], 0
    %s16 = scalar_lea.sflag [#allocation12], 1
    %17 = vsyncpa %s16, 0
    %18 = vsyncpa [#allocation10], 0
    %s19 = scalar_lea.sflag [#allocation10], 1
    %20 = vsyncpa %s19, 0
    loop: start=0, step=1, limit=4
    $region2: #{_lambda_.4} parent=1 // loop_pre_header
      _
    $region3: #{_lambda_.4} parent=1 // loop_header
      %s22 = sphi 0, %s26
      %p23 = scmp.ge.s32.totalorder %s22, 4
      %s29 = sphi 0, %s48
      %s30 = sphi 0, %s44
      %s31 = sphi 0, %s40
      %s32 = sphi 0, %s29
      %s33 = sphi 0, %s30
      %s34 = sphi 0, %s31
      %s35 = sphi 0, %s32
      %s36 = sphi 0, %s33
      %s37 = sphi 0, %s34
      %s57 = sphi 0, %s59
      %s60 = sphi 0, %s57
      %s61 = sphi 0, %s60
      %s77 = sphi 0, %s61
      %s89 = sphi 0, %s91
      %s92 = sphi 0, %s89
      %s93 = sphi 0, %s92
      %s109 = sphi 0, %s93
      %s121 = sphi 0, %s123
      %s124 = sphi 0, %s121
      %s125 = sphi 0, %s124
      %s141 = sphi 0, %s125
      %s153 = sphi 0, %s155
      %s156 = sphi 0, %s153
      %s157 = sphi 0, %s156
      %s173 = sphi 0, %s157
    $region4: #{_lambda_.4} parent=1 // loop_header_branch
      %25 = sbr.rel (%p23) target = $region8
    $region5: #{_lambda_.4} parent=1 // loop_body
      %s27 = ssub.s32 %s22, 1
      %s28 = ssub.s32 %s22, 2
      %s38 = sadd.s32 1, %s31
      %p39 = scmp.ge.s32.totalorder %s38, 1
      %s40 = scalar_select %p39, 0, %s38
      %s41 = sadd.s32 1, %s30
      %s42 = scalar_select %p39, %s41, %s30
      %p43 = scmp.ge.s32.totalorder %s42, 1
      %s44 = scalar_select %p43, 0, %s42
      %s45 = sadd.s32 1, %s29
      %s46 = scalar_select %p43, %s45, %s29
      %p47 = scmp.ge.s32.totalorder %s46, 2
      %s48 = scalar_select %p47, 0, %s46
      %s49 = sld [smem:[#allocation6 + %s31]]
      %s50 = sld [smem:[#allocation6 + %s40]]
      %s51 = ssub.s32 %s29, %s48
      %s52 = ssub.s32 %s49, %s50
      %s53 = sor.u32 %s51, %s52
      %s54 = ssub.s32 %s30, %s44
      %s55 = sor.u32 %s53, %s54
      %p56 = scmp.eq.s32.totalorder %s55, 0
      %s58 = sadd.s32 %s57, 1
      %s59 = scalar_select %p56, %s57, %s58
      %p62 = pneg %p56
      %p63 = scmp.eq.s32.totalorder %s22, 1
      %p64 = por %p62, %p63
      %p65 = scmp.ne.s32.totalorder %s57, %s60
      %p66 = scmp.eq.s32.totalorder %s22, 0
      %p67 = por %p65, %p66
      %p68 = scmp.ne.s32.totalorder %s57, %s60
      %p69 = scmp.eq.s32.totalorder %s27, 1
      %p70 = por %p68, %p69
      %p71 = scmp.ne.s32.totalorder %s60, %s61
      %p72 = scmp.eq.s32.totalorder %s27, 0
      %p73 = por %p71, %p72
      %p74 = scmp.ne.s32.totalorder %s60, %s61
      %p75 = scmp.eq.s32.totalorder %s28, 1
      %p76 = por %p74, %p75
      %p78 = scmp.ne.s32.totalorder %s61, %s77
      %p79 = scmp.eq.s32.totalorder %s28, 0
      %p80 = por %p78, %p79
      %s81 = sld [smem:[#allocation7 + %s31]]
      %s82 = sld [smem:[#allocation7 + %s40]]
      %s83 = ssub.s32 %s29, %s48
      %s84 = ssub.s32 %s81, %s82
      %s85 = sor.u32 %s83, %s84
      %s86 = ssub.s32 %s30, %s44
      %s87 = sor.u32 %s85, %s86
      %p88 = scmp.eq.s32.totalorder %s87, 0
      %s90 = sadd.s32 %s89, 1
      %s91 = scalar_select %p88, %s89, %s90
      %p94 = pneg %p88
      %p95 = scmp.eq.s32.totalorder %s22, 1
      %p96 = por %p94, %p95
      %p97 = scmp.ne.s32.totalorder %s89, %s92
      %p98 = scmp.eq.s32.totalorder %s22, 0
      %p99 = por %p97, %p98
      %p100 = scmp.ne.s32.totalorder %s89, %s92
      %p101 = scmp.eq.s32.totalorder %s27, 1
      %p102 = por %p100, %p101
      %p103 = scmp.ne.s32.totalorder %s92, %s93
      %p104 = scmp.eq.s32.totalorder %s27, 0
      %p105 = por %p103, %p104
      %p106 = scmp.ne.s32.totalorder %s92, %s93
      %p107 = scmp.eq.s32.totalorder %s28, 1
      %p108 = por %p106, %p107
      %p110 = scmp.ne.s32.totalorder %s93, %s109
      %p111 = scmp.eq.s32.totalorder %s28, 0
      %p112 = por %p110, %p111
      %s113 = sld [smem:[#allocation7 + %s31]]
      %s114 = sld [smem:[#allocation7 + %s40]]
      %s115 = ssub.s32 %s29, %s48
      %s116 = ssub.s32 %s113, %s114
      %s117 = sor.u32 %s115, %s116
      %s118 = ssub.s32 %s30, %s44
      %s119 = sor.u32 %s117, %s118
      %p120 = scmp.eq.s32.totalorder %s119, 0
      %s122 = sadd.s32 %s121, 1
      %s123 = scalar_select %p120, %s121, %s122
      %p126 = pneg %p120
      %p127 = scmp.eq.s32.totalorder %s22, 1
      %p128 = por %p126, %p127
      %p129 = scmp.ne.s32.totalorder %s121, %s124
      %p130 = scmp.eq.s32.totalorder %s22, 0
      %p131 = por %p129, %p130
      %p132 = scmp.ne.s32.totalorder %s121, %s124
      %p133 = scmp.eq.s32.totalorder %s27, 1
      %p134 = por %p132, %p133
      %p135 = scmp.ne.s32.totalorder %s124, %s125
      %p136 = scmp.eq.s32.totalorder %s27, 0
      %p137 = por %p135, %p136
      %p138 = scmp.ne.s32.totalorder %s124, %s125
      %p139 = scmp.eq.s32.totalorder %s28, 1
      %p140 = por %p138, %p139
      %p142 = scmp.ne.s32.totalorder %s125, %s141
      %p143 = scmp.eq.s32.totalorder %s28, 0
      %p144 = por %p142, %p143
      %s145 = sld [smem:[#allocation6 + %s31]]
      %s146 = sld [smem:[#allocation6 + %s40]]
      %s147 = ssub.s32 %s29, %s48
      %s148 = ssub.s32 %s145, %s146
      %s149 = sor.u32 %s147, %s148
      %s150 = ssub.s32 %s30, %s44
      %s151 = sor.u32 %s149, %s150
      %p152 = scmp.eq.s32.totalorder %s151, 0
      %s154 = sadd.s32 %s153, 1
      %s155 = scalar_select %p152, %s153, %s154
      %p158 = pneg %p152
      %p159 = scmp.eq.s32.totalorder %s22, 1
      %p160 = por %p158, %p159
      %p161 = scmp.ne.s32.totalorder %s153, %s156
      %p162 = scmp.eq.s32.totalorder %s22, 0
      %p163 = por %p161, %p162
      %p164 = scmp.ne.s32.totalorder %s153, %s156
      %p165 = scmp.eq.s32.totalorder %s27, 1
      %p166 = por %p164, %p165
      %p167 = scmp.ne.s32.totalorder %s156, %s157
      %p168 = scmp.eq.s32.totalorder %s27, 0
      %p169 = por %p167, %p168
      %p170 = scmp.ne.s32.totalorder %s156, %s157
      %p171 = scmp.eq.s32.totalorder %s28, 1
      %p172 = por %p170, %p171
      %p174 = scmp.ne.s32.totalorder %s157, %s173
      %p175 = scmp.eq.s32.totalorder %s28, 0
      %p176 = por %p174, %p175
      %p177 = scmp.le.s32.totalorder 1, %s22
      %p178 = scmp.lt.s32.totalorder %s22, 3
      %p179 = pnand %p177, %p178
      %p180 = pneg %p179
      // Predicated region
      $region9: #{_lambda_.4} parent=5 // pred_check
        _
      $region10: #{_lambda_.4} parent=5 // pred_check_branch
        %182 = sbr.rel (%p179) target = $region12
      $region11: #{_lambda_.4} parent=5 // pred_region
        %s183 = ssub.s32 %s22, 1
      $region12: #{_lambda_.4} parent=5 // pred_fallthru
        _
      %p184 = scmp.lt.s32.totalorder %s22, 2
      // Predicated region
      $region13: #{_lambda_.4} parent=5 // pred_check
        %p185 = pneg %p184
      $region14: #{_lambda_.4} parent=5 // pred_check_branch
        %187 = sbr.rel (%p185) target = $region16
      $region15: #{_lambda_.4} parent=5 // pred_region
        // Predicated region
        $region17: #{_lambda_.4} parent=15 // pred_check
          %p188 = pneg %p67
        $region18: #{_lambda_.4} parent=15 // pred_check_branch
          %190 = sbr.rel (%p188) target = $region20
        $region19: #{_lambda_.4} parent=15 // pred_region
          %s191 = sand.u32 %s57, 1
          %s192 = scalar_lea.sflag [#allocation9], %s191
          %s193 = sand.u32 %s57, 1
          %s194 = smul.addr %s193, 4
          %s195 = scalar_lea.vmem [#allocation8], %s194
          %s196 = sld [smem:[#allocation6 + %s31]]
          %s198 = ssub.s32 64, 64
          %199 = vsyncadd %s192, %s198
          %s200 = sadd.s32 %s30, %s196
          %s201 = sadd.s32 %s200, %s29
          %s202 = smul.addr %s201, 64
          %s203 = scalar_lea.hbm %s2, %s202
          %s205 = sshll.u32 %s195, 4
          %s206 = int_to_ptr.vmem [resolvable:$true] %s205
          %208 = dma.hbm_to_vmem [thread:$0]  %s203, 64, %s206, %s192
        $region20: #{_lambda_.4} parent=15 // pred_fallthru
          _
        // Predicated region
        $region21: #{_lambda_.4} parent=15 // pred_check
          %p209 = pneg %p99
        $region22: #{_lambda_.4} parent=15 // pred_check_branch
          %211 = sbr.rel (%p209) target = $region24
        $region23: #{_lambda_.4} parent=15 // pred_region
          %s212 = sand.u32 %s22, 1
          %s213 = scalar_lea.sflag [#allocation12], %s212
          %s214 = sand.u32 %s89, 1
          %s215 = smul.addr %s214, 4
          %s216 = scalar_lea.vmem [#allocation11], %s215
          %s217 = sld [smem:[#allocation7 + %s31]]
          %s219 = ssub.s32 64, 64
          %220 = vsyncadd %s213, %s219
          %s221 = sadd.s32 %s30, %s217
          %s222 = sadd.s32 %s221, %s29
          %s223 = smul.addr %s222, 64
          %s224 = scalar_lea.hbm %s3, %s223
          %s226 = sshll.u32 %s216, 4
          %s227 = int_to_ptr.vmem [resolvable:$true] %s226
          %229 = dma.hbm_to_vmem [thread:$0]  %s224, 64, %s227, %s213
        $region24: #{_lambda_.4} parent=15 // pred_fallthru
          _
        // Predicated region
        $region25: #{_lambda_.4} parent=15 // pred_check
          %p230 = pneg %p131
        $region26: #{_lambda_.4} parent=15 // pred_check_branch
          %232 = sbr.rel (%p230) target = $region28
        $region27: #{_lambda_.4} parent=15 // pred_region
          %s233 = sand.u32 %s22, 1
          %s234 = scalar_lea.sflag [#allocation12], %s233
          %s235 = sand.u32 %s121, 1
          %s236 = smul.addr %s235, 4
          %s237 = scalar_lea.vmem [#allocation13], %s236
          %s238 = sld [smem:[#allocation7 + %s31]]
          %s240 = ssub.s32 64, 64
          %241 = vsyncadd %s234, %s240
          %s242 = sadd.s32 %s30, %s238
          %s243 = sadd.s32 %s242, %s29
          %s244 = smul.addr %s243, 64
          %s245 = scalar_lea.hbm %s4, %s244
          %s247 = sshll.u32 %s237, 4
          %s248 = int_to_ptr.vmem [resolvable:$true] %s247
          %250 = dma.hbm_to_vmem [thread:$0]  %s245, 64, %s248, %s234
        $region28: #{_lambda_.4} parent=15 // pred_fallthru
          _
      $region16: #{_lambda_.4} parent=5 // pred_fallthru
        _
      %p251 = scmp.le.s32.totalorder 1, %s22
      %p252 = scmp.lt.s32.totalorder %s22, 3
      %p253 = pnand %p251, %p252
      %p254 = pneg %p253
      // Predicated region
      $region29: #{_lambda_.4} parent=5 // pred_check
        _
      $region30: #{_lambda_.4} parent=5 // pred_check_branch
        %256 = sbr.rel (%p253) target = $region32
      $region31: #{_lambda_.4} parent=5 // pred_region
        %s257 = ssub.s32 %s22, 1
        %s258 = sand.u32 %s60, 1
        %s259 = scalar_lea.sflag [#allocation9], %s258
        %s260 = sand.u32 %s60, 1
        %s261 = smul.addr %s260, 4
        %s262 = scalar_lea.vmem [#allocation8], %s261
        // Predicated region
        $region33: #{_lambda_.4} parent=31 // pred_check
          %p263 = pneg %p73
        $region34: #{_lambda_.4} parent=31 // pred_check_branch
          %265 = sbr.rel (%p263) target = $region36
        $region35: #{_lambda_.4} parent=31 // pred_region
          %266 = dma.done %s259, 64
        $region36: #{_lambda_.4} parent=31 // pred_fallthru
          _
        %s267 = sand.u32 %s27, 1
        %s268 = scalar_lea.sflag [#allocation12], %s267
        %s269 = sand.u32 %s92, 1
        %s270 = smul.addr %s269, 4
        %s271 = scalar_lea.vmem [#allocation11], %s270
        // Predicated region
        $region37: #{_lambda_.4} parent=31 // pred_check
          %p272 = pneg %p105
        $region38: #{_lambda_.4} parent=31 // pred_check_branch
          %274 = sbr.rel (%p272) target = $region40
        $region39: #{_lambda_.4} parent=31 // pred_region
          %275 = dma.done %s268, 64
        $region40: #{_lambda_.4} parent=31 // pred_fallthru
          _
        %s276 = sand.u32 %s27, 1
        %s277 = scalar_lea.sflag [#allocation12], %s276
        %s278 = sand.u32 %s124, 1
        %s279 = smul.addr %s278, 4
        %s280 = scalar_lea.vmem [#allocation13], %s279
        // Predicated region
        $region41: #{_lambda_.4} parent=31 // pred_check
          %p281 = pneg %p137
        $region42: #{_lambda_.4} parent=31 // pred_check_branch
          %283 = sbr.rel (%p281) target = $region44
        $region43: #{_lambda_.4} parent=31 // pred_region
          %284 = dma.done %s277, 64
        $region44: #{_lambda_.4} parent=31 // pred_fallthru
          _
        %s285 = sand.u32 %s60, 1
        %s286 = scalar_lea.sflag [#allocation9], %s285
        %s287 = sand.u32 %s60, 1
        %s288 = smul.addr %s287, 4
        %s289 = scalar_lea.vmem [#allocation8], %s288
        %p290 = pneg %p73
        %p291 = pneg %p70
        %s292 = sand.u32 %s27, 1
        %s293 = scalar_lea.sflag [#allocation12], %s292
        %s294 = sand.u32 %s92, 1
        %s295 = smul.addr %s294, 4
        %s296 = scalar_lea.vmem [#allocation11], %s295
        %p297 = pneg %p105
        %p298 = pneg %p102
        %s299 = sand.u32 %s27, 1
        %s300 = scalar_lea.sflag [#allocation12], %s299
        %s301 = sand.u32 %s124, 1
        %s302 = smul.addr %s301, 4
        %s303 = scalar_lea.vmem [#allocation13], %s302
        %p304 = pneg %p137
        %p305 = pneg %p134
        %p306 = pneg %p169
        %p307 = pneg %p166
        %s308 = sand.u32 %s156, 1
        %s309 = scalar_lea.sflag [#allocation10], %s308
        %s310 = sand.u32 %s156, 1
        %s311 = smul.addr %s310, 4
        %s312 = scalar_lea.vmem [#allocation14], %s311
        %s313 = sld [smem:[#allocation6 + %s34]]
        %s314 = sld [smem:[#allocation7 + %s34]]
        %s315 = sld [smem:[#allocation7 + %s34]]
        %s316 = sld [smem:[#allocation6 + %s34]]
        %s318 = sld [smem:[#allocation6 + %s34]]
        %s319 = sld [smem:[#allocation7 + %s34]]
        %p320 = scmp.eq.s32.totalorder %s319, 0
        // Predicated region
        $region45: #{_lambda_.4} parent=31 // pred_check
          %p321 = pneg %p320
        $region46: #{_lambda_.4} parent=31 // pred_check_branch
          %323 = sbr.rel (%p321) target = $region48
        $region47: #{_lambda_.4} parent=31 // pred_region
          %vm324 = vcmask 7168
          %325 = vst.msk [vmem:[#allocation2] sm:$0xff] %vm324, -1e+30
          %326 = vst.msk [vmem:[#allocation2 + $0x8] sm:$0xff] %vm324, -1e+30
          %327 = vst.msk [vmem:[#allocation2 + $0x10] sm:$0xff] %vm324, -1e+30
          %328 = vst.msk [vmem:[#allocation2 + $0x18] sm:$0xff] %vm324, -1e+30
          %329 = vst.msk [vmem:[#allocation3] sm:$0xff] %vm324, 0.0
          %330 = vst.msk [vmem:[#allocation3 + $0x8] sm:$0xff] %vm324, 0.0
          %331 = vst.msk [vmem:[#allocation3 + $0x10] sm:$0xff] %vm324, 0.0
          %332 = vst.msk [vmem:[#allocation3 + $0x18] sm:$0xff] %vm324, 0.0
          %vm333 = vcmask 261120
          %334 = vst.msk [vmem:[#allocation4] sm:$0xff] %vm333, 0.0
        $region48: #{_lambda_.4} parent=31 // pred_fallthru
          _
        %p335 = scmp.lt.s32.totalorder %s319, %s318
        // Predicated region
        $region49: #{_lambda_.4} parent=31 // pred_check
          %p336 = pneg %p335
        $region50: #{_lambda_.4} parent=31 // pred_check_branch
          %338 = sbr.rel (%p336) target = $region52
        $region51: #{_lambda_.4} parent=31 // pred_region
          %v339 = vld [vmem:[%s262] sm:$0xf]
          %v340 = vld [vmem:[%s271] sm:$0xf]
          %vm341 = vcmask 64512
          %v343 = vsel %vm341, %v339, 0
          %v346 = vsel %vm341, %v340, 0
          %348 = vmatprep.subr.bf16.mxu0 0
          %349 = vmatpush1.bf16.xpose.msra.mxu0 %v346
          %350 = vmatprep.subr.bf16.mxu0 0
          %351 = vmatpush1.bf16.xpose.msra.mxu0 0
          %352 = vmatprep.subr.bf16.mxu0 0
          %353 = vmatpush1.bf16.xpose.msra.mxu0 0
          %354 = vmatprep.subr.bf16.mxu0 0
          %355 = vmatpush1.bf16.xpose.msra.mxu0 0
          %356 = vmatprep.subr.bf16.mxu0 0
          %357 = vmatpush1.bf16.xpose.msra.mxu0 0
          %358 = vmatprep.subr.bf16.mxu0 0
          %359 = vmatpush1.bf16.xpose.msra.mxu0 0
          %360 = vmatprep.subr.bf16.mxu0 0
          %361 = vmatpush1.bf16.xpose.msra.mxu0 0
          %362 = vmatprep.subr.bf16.mxu0 0
          %363 = vmatpush1.bf16.xpose.msra.mxu0 0
          %364 = vmatprep.subr.bf16.mxu0 0
          %365 = vmatpush1.bf16.xpose.msra.mxu0 0
          %366 = vmatprep.subr.bf16.mxu0 0
          %367 = vmatpush1.bf16.xpose.msra.mxu0 0
          %368 = vmatprep.subr.bf16.mxu0 0
          %369 = vmatpush1.bf16.xpose.msra.mxu0 0
          %370 = vmatprep.subr.bf16.mxu0 0
          %371 = vmatpush1.bf16.xpose.msra.mxu0 0
          %372 = vmatprep.subr.bf16.mxu0 0
          %373 = vmatpush1.bf16.xpose.msra.mxu0 0
          %374 = vmatprep.subr.bf16.mxu0 0
          %375 = vmatpush1.bf16.xpose.msra.mxu0 0
          %376 = vmatprep.subr.bf16.mxu0 0
          %377 = vmatpush1.bf16.xpose.msra.mxu0 0
          %378 = vmatprep.subr.bf16.mxu0 0
          %379 = vmatpush1.bf16.xpose.msra.mxu0 0
          %380 = vmatprep.mubr.bf16.mxu0 0
          %381 = vmatmul.mubr.bf16.gmra.mrb[0].mxu0 %v343
          %v382 = vpop.f32.mrb[0].mxu0
          %v383 = vadd.f32 0.0, %v382
          %v384 = vpop.f32.mrb[0].mxu0
          %v385 = vpop.f32.mrb[0].mxu0
          %v386 = vpop.f32.mrb[0].mxu0
          %387 = vdwg.mxu0
          %v388 = vld [vmem:[#allocation2] sm:$0xff]
          %v389 = vsel %vm341, %v383, -inf
          %390 = vmax.xlane.f32.xlu0 %v389
          %v391 = vpop.xlane.xlu0 %390
          %v392 = vmax.f32 %v388, %v391
          %v393 = vsub.f32 %v388, %v392
          %v394 = vmul.f32 %v393, 1.442695
          %v395 = vpow.pop %v394
          %397 = vset.pattern.permute.xlu0 0
          %398 = vperm.xlu0 %397, %v392
          %v399 = vpop.permute.xlu0 %398
          %v401 = vsub.f32 %v383, %v399
          %v402 = vmul.f32 %v401, 1.442695
          %v403 = vpow.pop %v402
          %v404 = vld [vmem:[#allocation3] sm:$0xff]
          %v405 = vmul.f32 %v395, %v404
          %v406 = vsel %vm341, %v403, 0.0
          %407 = vadd.xlane.f32.xlu0 %v406
          %v408 = vpop.xlane.xlu0 %407
          %v409 = vadd.f32 %v405, %v408
          %vm410 = vcmask 7168
          %411 = vst.msk [vmem:[#allocation3] sm:$0xff] %vm410, %v409
          %v412 = vld [vmem:[#allocation4] sm:$0xff]
          %414 = vset.pattern.permute.xlu0 0
          %415 = vperm.xlu0 %414, %v395
          %v416 = vpop.permute.xlu0 %415
          %v418 = vmul.f32 %v416, %v412
          %v419 = vpack.c.bf16 %v403, %v403
          %v420 = vld [vmem:[%s280] sm:$0xf]
          %v422 = vsel %vm341, %v419, 0
          %vm424 = vcmask 1043456
          %v426 = vsel %vm424, %v420, 0
          %428 = vmatprep.subr.bf16.mxu0 0
          %429 = vmatpush1.bf16.msra.mxu0 %v426
          %430 = vmatprep.subr.bf16.mxu0 0
          %431 = vmatpush1.bf16.msra.mxu0 0
          %432 = vmatprep.subr.bf16.mxu0 0
          %433 = vmatpush1.bf16.msra.mxu0 0
          %434 = vmatprep.subr.bf16.mxu0 0
          %435 = vmatpush1.bf16.msra.mxu0 0
          %436 = vmatprep.subr.bf16.mxu0 0
          %437 = vmatpush1.bf16.msra.mxu0 0
          %438 = vmatprep.subr.bf16.mxu0 0
          %439 = vmatpush1.bf16.msra.mxu0 0
          %440 = vmatprep.subr.bf16.mxu0 0
          %441 = vmatpush1.bf16.msra.mxu0 0
          %442 = vmatprep.subr.bf16.mxu0 0
          %443 = vmatpush1.bf16.msra.mxu0 0
          %444 = vmatprep.subr.bf16.mxu0 0
          %445 = vmatpush1.bf16.msra.mxu0 0
          %446 = vmatprep.subr.bf16.mxu0 0
          %447 = vmatpush1.bf16.msra.mxu0 0
          %448 = vmatprep.subr.bf16.mxu0 0
          %449 = vmatpush1.bf16.msra.mxu0 0
          %450 = vmatprep.subr.bf16.mxu0 0
          %451 = vmatpush1.bf16.msra.mxu0 0
          %452 = vmatprep.subr.bf16.mxu0 0
          %453 = vmatpush1.bf16.msra.mxu0 0
          %454 = vmatprep.subr.bf16.mxu0 0
          %455 = vmatpush1.bf16.msra.mxu0 0
          %456 = vmatprep.subr.bf16.mxu0 0
          %457 = vmatpush1.bf16.msra.mxu0 0
          %458 = vmatprep.subr.bf16.mxu0 0
          %459 = vmatpush1.bf16.msra.mxu0 0
          %460 = vmatprep.mubr.bf16.mxu0 0
          %461 = vmatmul.mubr.bf16.gmra.mrb[0].mxu0 %v422
          %v462 = vpop.f32.mrb[0].mxu0
          %v463 = vadd.f32 0.0, %v462
          %v464 = vpop.f32.mrb[0].mxu0
          %v465 = vpop.f32.mrb[0].mxu0
          %v466 = vpop.f32.mrb[0].mxu0
          %467 = vdwg.mxu0
          %v468 = vadd.f32 %v418, %v463
          %469 = vst.msk [vmem:[#allocation4] sm:$0xff] %vm341, %v468
          %470 = vst.msk [vmem:[#allocation2] sm:$0xff] %vm410, %v392
          %v471 = vld [vmem:[%s262] sm:$0xf]
          %v472 = vld [vmem:[%s271] sm:$0xf]
          %v474 = vunpack.c.l.b16 %v471
          %v475 = vpack.c.b16 %v474, %v474
          %476 = vrot.lane.b32.xlu0 %v475, 120
          %v477 = vpop.permute.xlu0 %476
          %v479 = vunpack.c.l.b16 %v472
          %v480 = vpack.c.b16 %v479, %v479
          %481 = vrot.lane.b32.xlu0 %v480, 120
          %v482 = vpop.permute.xlu0 %481
          %v484 = vsel %vm341, %v477, 0
          %v487 = vsel %vm341, %v482, 0
          %489 = vmatprep.subr.bf16.mxu0 0
          %490 = vmatpush1.bf16.xpose.msra.mxu0 %v487
          %491 = vmatprep.subr.bf16.mxu0 0
          %492 = vmatpush1.bf16.xpose.msra.mxu0 0
          %493 = vmatprep.subr.bf16.mxu0 0
          %494 = vmatpush1.bf16.xpose.msra.mxu0 0
          %495 = vmatprep.subr.bf16.mxu0 0
          %496 = vmatpush1.bf16.xpose.msra.mxu0 0
          %497 = vmatprep.subr.bf16.mxu0 0
          %498 = vmatpush1.bf16.xpose.msra.mxu0 0
          %499 = vmatprep.subr.bf16.mxu0 0
          %500 = vmatpush1.bf16.xpose.msra.mxu0 0
          %501 = vmatprep.subr.bf16.mxu0 0
          %502 = vmatpush1.bf16.xpose.msra.mxu0 0
          %503 = vmatprep.subr.bf16.mxu0 0
          %504 = vmatpush1.bf16.xpose.msra.mxu0 0
          %505 = vmatprep.subr.bf16.mxu0 0
          %506 = vmatpush1.bf16.xpose.msra.mxu0 0
          %507 = vmatprep.subr.bf16.mxu0 0
          %508 = vmatpush1.bf16.xpose.msra.mxu0 0
          %509 = vmatprep.subr.bf16.mxu0 0
          %510 = vmatpush1.bf16.xpose.msra.mxu0 0
          %511 = vmatprep.subr.bf16.mxu0 0
          %512 = vmatpush1.bf16.xpose.msra.mxu0 0
          %513 = vmatprep.subr.bf16.mxu0 0
          %514 = vmatpush1.bf16.xpose.msra.mxu0 0
          %515 = vmatprep.subr.bf16.mxu0 0
          %516 = vmatpush1.bf16.xpose.msra.mxu0 0
          %517 = vmatprep.subr.bf16.mxu0 0
          %518 = vmatpush1.bf16.xpose.msra.mxu0 0
          %519 = vmatprep.subr.bf16.mxu0 0
          %520 = vmatpush1.bf16.xpose.msra.mxu0 0
          %521 = vmatprep.mubr.bf16.mxu0 0
          %522 = vmatmul.mubr.bf16.gmra.mrb[0].mxu0 %v484
          %v523 = vpop.f32.mrb[0].mxu0
          %v524 = vadd.f32 0.0, %v523
          %v525 = vpop.f32.mrb[0].mxu0
          %v526 = vpop.f32.mrb[0].mxu0
          %v527 = vpop.f32.mrb[0].mxu0
          %528 = vdwg.mxu0
          %s529 = scalar_lea.vmem [#allocation2], 8
          %v530 = vld [vmem:[%s529] sm:$0xff]
          %v531 = vsel %vm341, %v524, -inf
          %532 = vmax.xlane.f32.xlu0 %v531
          %v533 = vpop.xlane.xlu0 %532
          %v534 = vmax.f32 %v530, %v533
          %v535 = vsub.f32 %v530, %v534
          %v536 = vmul.f32 %v535, 1.442695
          %v537 = vpow.pop %v536
          %539 = vset.pattern.permute.xlu0 0
          %540 = vperm.xlu0 %539, %v534
          %v541 = vpop.permute.xlu0 %540
          %v543 = vsub.f32 %v524, %v541
          %v544 = vmul.f32 %v543, 1.442695
          %v545 = vpow.pop %v544
          %s546 = scalar_lea.vmem [#allocation3], 8
          %v547 = vld [vmem:[%s546] sm:$0xff]
          %v548 = vmul.f32 %v537, %v547
          %v549 = vsel %vm341, %v545, 0.0
          %550 = vadd.xlane.f32.xlu0 %v549
          %v551 = vpop.xlane.xlu0 %550
          %v552 = vadd.f32 %v548, %v551
          %553 = vst.msk [vmem:[%s546] sm:$0xff] %vm410, %v552
          %v554 = vld [vmem:[#allocation4] sm:$0xff]
          %556 = vset.pattern.permute.xlu0 0
          %557 = vperm.xlu0 %556, %v537
          %v558 = vpop.permute.xlu0 %557
          %v560 = vmul.f32 %v558, %v554
          %v561 = vpack.c.bf16 %v545, %v545
          %v562 = vld [vmem:[%s280] sm:$0xf]
          %v564 = vunpack.c.l.b16 %v562
          %v565 = vpack.c.b16 %v564, %v564
          %566 = vrot.lane.b32.xlu0 %v565, 120
          %v567 = vpop.permute.xlu0 %566
          %v569 = vsel %vm341, %v561, 0
          %v572 = vsel %vm424, %v567, 0
          %574 = vmatprep.subr.bf16.mxu0 0
          %575 = vmatpush1.bf16.msra.mxu0 %v572
          %576 = vmatprep.subr.bf16.mxu0 0
          %577 = vmatpush1.bf16.msra.mxu0 0
          %578 = vmatprep.subr.bf16.mxu0 0
          %579 = vmatpush1.bf16.msra.mxu0 0
          %580 = vmatprep.subr.bf16.mxu0 0
          %581 = vmatpush1.bf16.msra.mxu0 0
          %582 = vmatprep.subr.bf16.mxu0 0
          %583 = vmatpush1.bf16.msra.mxu0 0
          %584 = vmatprep.subr.bf16.mxu0 0
          %585 = vmatpush1.bf16.msra.mxu0 0
          %586 = vmatprep.subr.bf16.mxu0 0
          %587 = vmatpush1.bf16.msra.mxu0 0
          %588 = vmatprep.subr.bf16.mxu0 0
          %589 = vmatpush1.bf16.msra.mxu0 0
          %590 = vmatprep.subr.bf16.mxu0 0
          %591 = vmatpush1.bf16.msra.mxu0 0
          %592 = vmatprep.subr.bf16.mxu0 0
          %593 = vmatpush1.bf16.msra.mxu0 0
          %594 = vmatprep.subr.bf16.mxu0 0
          %595 = vmatpush1.bf16.msra.mxu0 0
          %596 = vmatprep.subr.bf16.mxu0 0
          %597 = vmatpush1.bf16.msra.mxu0 0
          %598 = vmatprep.subr.bf16.mxu0 0
          %599 = vmatpush1.bf16.msra.mxu0 0
          %600 = vmatprep.subr.bf16.mxu0 0
          %601 = vmatpush1.bf16.msra.mxu0 0
          %602 = vmatprep.subr.bf16.mxu0 0
          %603 = vmatpush1.bf16.msra.mxu0 0
          %604 = vmatprep.subr.bf16.mxu0 0
          %605 = vmatpush1.bf16.msra.mxu0 0
          %606 = vmatprep.mubr.bf16.mxu0 0
          %607 = vmatmul.mubr.bf16.gmra.mrb[0].mxu0 %v569
          %v608 = vpop.f32.mrb[0].mxu0
          %v609 = vadd.f32 0.0, %v608
          %v610 = vpop.f32.mrb[0].mxu0
          %v611 = vpop.f32.mrb[0].mxu0
          %v612 = vpop.f32.mrb[0].mxu0
          %613 = vdwg.mxu0
          %615 = vrot.lane.b32.xlu0 %v609, 8
          %v616 = vpop.permute.xlu0 %615
          %v618 = vadd.f32 %v560, %v616
          %vm619 = vcmask 130112
          %620 = vst.msk [vmem:[#allocation4] sm:$0xff] %vm619, %v618
          %621 = vst.msk [vmem:[%s529] sm:$0xff] %vm410, %v534
          %v622 = vld [vmem:[%s262] sm:$0xf]
          %v623 = vld [vmem:[%s271] sm:$0xf]
          %v625 = vunpack.c.l.b16 %v622
          %v626 = vpack.c.b16 %v625, %v625
          %627 = vrot.lane.b32.xlu0 %v626, 112
          %v628 = vpop.permute.xlu0 %627
          %v630 = vunpack.c.l.b16 %v623
          %v631 = vpack.c.b16 %v630, %v630
          %632 = vrot.lane.b32.xlu0 %v631, 112
          %v633 = vpop.permute.xlu0 %632
          %v635 = vsel %vm341, %v628, 0
          %v638 = vsel %vm341, %v633, 0
          %640 = vmatprep.subr.bf16.mxu0 0
          %641 = vmatpush1.bf16.xpose.msra.mxu0 %v638
          %642 = vmatprep.subr.bf16.mxu0 0
          %643 = vmatpush1.bf16.xpose.msra.mxu0 0
          %644 = vmatprep.subr.bf16.mxu0 0
          %645 = vmatpush1.bf16.xpose.msra.mxu0 0
          %646 = vmatprep.subr.bf16.mxu0 0
          %647 = vmatpush1.bf16.xpose.msra.mxu0 0
          %648 = vmatprep.subr.bf16.mxu0 0
          %649 = vmatpush1.bf16.xpose.msra.mxu0 0
          %650 = vmatprep.subr.bf16.mxu0 0
          %651 = vmatpush1.bf16.xpose.msra.mxu0 0
          %652 = vmatprep.subr.bf16.mxu0 0
          %653 = vmatpush1.bf16.xpose.msra.mxu0 0
          %654 = vmatprep.subr.bf16.mxu0 0
          %655 = vmatpush1.bf16.xpose.msra.mxu0 0
          %656 = vmatprep.subr.bf16.mxu0 0
          %657 = vmatpush1.bf16.xpose.msra.mxu0 0
          %658 = vmatprep.subr.bf16.mxu0 0
          %659 = vmatpush1.bf16.xpose.msra.mxu0 0
          %660 = vmatprep.subr.bf16.mxu0 0
          %661 = vmatpush1.bf16.xpose.msra.mxu0 0
          %662 = vmatprep.subr.bf16.mxu0 0
          %663 = vmatpush1.bf16.xpose.msra.mxu0 0
          %664 = vmatprep.subr.bf16.mxu0 0
          %665 = vmatpush1.bf16.xpose.msra.mxu0 0
          %666 = vmatprep.subr.bf16.mxu0 0
          %667 = vmatpush1.bf16.xpose.msra.mxu0 0
          %668 = vmatprep.subr.bf16.mxu0 0
          %669 = vmatpush1.bf16.xpose.msra.mxu0 0
          %670 = vmatprep.subr.bf16.mxu0 0
          %671 = vmatpush1.bf16.xpose.msra.mxu0 0
          %672 = vmatprep.mubr.bf16.mxu0 0
          %673 = vmatmul.mubr.bf16.gmra.mrb[0].mxu0 %v635
          %v674 = vpop.f32.mrb[0].mxu0
          %v675 = vadd.f32 0.0, %v674
          %v676 = vpop.f32.mrb[0].mxu0
          %v677 = vpop.f32.mrb[0].mxu0
          %v678 = vpop.f32.mrb[0].mxu0
          %679 = vdwg.mxu0
          %s680 = scalar_lea.vmem [#allocation2], 16
          %v681 = vld [vmem:[%s680] sm:$0xff]
          %v682 = vsel %vm341, %v675, -inf
          %683 = vmax.xlane.f32.xlu0 %v682
          %v684 = vpop.xlane.xlu0 %683
          %v685 = vmax.f32 %v681, %v684
          %v686 = vsub.f32 %v681, %v685
          %v687 = vmul.f32 %v686, 1.442695
          %v688 = vpow.pop %v687
          %690 = vset.pattern.permute.xlu0 0
          %691 = vperm.xlu0 %690, %v685
          %v692 = vpop.permute.xlu0 %691
          %v694 = vsub.f32 %v675, %v692
          %v695 = vmul.f32 %v694, 1.442695
          %v696 = vpow.pop %v695
          %s697 = scalar_lea.vmem [#allocation3], 16
          %v698 = vld [vmem:[%s697] sm:$0xff]
          %v699 = vmul.f32 %v688, %v698
          %v700 = vsel %vm341, %v696, 0.0
          %701 = vadd.xlane.f32.xlu0 %v700
          %v702 = vpop.xlane.xlu0 %701
          %v703 = vadd.f32 %v699, %v702
          %704 = vst.msk [vmem:[%s697] sm:$0xff] %vm410, %v703
          %v705 = vld [vmem:[#allocation4] sm:$0xff]
          %707 = vset.pattern.permute.xlu0 0
          %708 = vperm.xlu0 %707, %v688
          %v709 = vpop.permute.xlu0 %708
          %v711 = vmul.f32 %v709, %v705
          %v712 = vpack.c.bf16 %v696, %v696
          %v713 = vld [vmem:[%s280] sm:$0xf]
          %v715 = vunpack.c.l.b16 %v713
          %v716 = vpack.c.b16 %v715, %v715
          %717 = vrot.lane.b32.xlu0 %v716, 112
          %v718 = vpop.permute.xlu0 %717
          %v720 = vsel %vm341, %v712, 0
          %v723 = vsel %vm424, %v718, 0
          %725 = vmatprep.subr.bf16.mxu0 0
          %726 = vmatpush1.bf16.msra.mxu0 %v723
          %727 = vmatprep.subr.bf16.mxu0 0
          %728 = vmatpush1.bf16.msra.mxu0 0
          %729 = vmatprep.subr.bf16.mxu0 0
          %730 = vmatpush1.bf16.msra.mxu0 0
          %731 = vmatprep.subr.bf16.mxu0 0
          %732 = vmatpush1.bf16.msra.mxu0 0
          %733 = vmatprep.subr.bf16.mxu0 0
          %734 = vmatpush1.bf16.msra.mxu0 0
          %735 = vmatprep.subr.bf16.mxu0 0
          %736 = vmatpush1.bf16.msra.mxu0 0
          %737 = vmatprep.subr.bf16.mxu0 0
          %738 = vmatpush1.bf16.msra.mxu0 0
          %739 = vmatprep.subr.bf16.mxu0 0
          %740 = vmatpush1.bf16.msra.mxu0 0
          %741 = vmatprep.subr.bf16.mxu0 0
          %742 = vmatpush1.bf16.msra.mxu0 0
          %743 = vmatprep.subr.bf16.mxu0 0
          %744 = vmatpush1.bf16.msra.mxu0 0
          %745 = vmatprep.subr.bf16.mxu0 0
          %746 = vmatpush1.bf16.msra.mxu0 0
          %747 = vmatprep.subr.bf16.mxu0 0
          %748 = vmatpush1.bf16.msra.mxu0 0
          %749 = vmatprep.subr.bf16.mxu0 0
          %750 = vmatpush1.bf16.msra.mxu0 0
          %751 = vmatprep.subr.bf16.mxu0 0
          %752 = vmatpush1.bf16.msra.mxu0 0
          %753 = vmatprep.subr.bf16.mxu0 0
          %754 = vmatpush1.bf16.msra.mxu0 0
          %755 = vmatprep.subr.bf16.mxu0 0
          %756 = vmatpush1.bf16.msra.mxu0 0
          %757 = vmatprep.mubr.bf16.mxu0 0
          %758 = vmatmul.mubr.bf16.gmra.mrb[0].mxu0 %v720
          %v759 = vpop.f32.mrb[0].mxu0
          %v760 = vadd.f32 0.0, %v759
          %v761 = vpop.f32.mrb[0].mxu0
          %v762 = vpop.f32.mrb[0].mxu0
          %v763 = vpop.f32.mrb[0].mxu0
          %764 = vdwg.mxu0
          %766 = vrot.lane.b32.xlu0 %v760, 16
          %v767 = vpop.permute.xlu0 %766
          %v769 = vadd.f32 %v711, %v767
          %vm770 = vcmask 195712
          %771 = vst.msk [vmem:[#allocation4] sm:$0xff] %vm770, %v769
          %772 = vst.msk [vmem:[%s680] sm:$0xff] %vm410, %v685
          %v773 = vld [vmem:[%s262] sm:$0xf]
          %v774 = vld [vmem:[%s271] sm:$0xf]
          %v776 = vunpack.c.l.b16 %v773
          %v777 = vpack.c.b16 %v776, %v776
          %778 = vrot.lane.b32.xlu0 %v777, 104
          %v779 = vpop.permute.xlu0 %778
          %v781 = vunpack.c.l.b16 %v774
          %v782 = vpack.c.b16 %v781, %v781
          %783 = vrot.lane.b32.xlu0 %v782, 104
          %v784 = vpop.permute.xlu0 %783
          %v786 = vsel %vm341, %v779, 0
          %v789 = vsel %vm341, %v784, 0
          %791 = vmatprep.subr.bf16.mxu0 0
          %792 = vmatpush1.bf16.xpose.msra.mxu0 %v789
          %793 = vmatprep.subr.bf16.mxu0 0
          %794 = vmatpush1.bf16.xpose.msra.mxu0 0
          %795 = vmatprep.subr.bf16.mxu0 0
          %796 = vmatpush1.bf16.xpose.msra.mxu0 0
          %797 = vmatprep.subr.bf16.mxu0 0
          %798 = vmatpush1.bf16.xpose.msra.mxu0 0
          %799 = vmatprep.subr.bf16.mxu0 0
          %800 = vmatpush1.bf16.xpose.msra.mxu0 0
          %801 = vmatprep.subr.bf16.mxu0 0
          %802 = vmatpush1.bf16.xpose.msra.mxu0 0
          %803 = vmatprep.subr.bf16.mxu0 0
          %804 = vmatpush1.bf16.xpose.msra.mxu0 0
          %805 = vmatprep.subr.bf16.mxu0 0
          %806 = vmatpush1.bf16.xpose.msra.mxu0 0
          %807 = vmatprep.subr.bf16.mxu0 0
          %808 = vmatpush1.bf16.xpose.msra.mxu0 0
          %809 = vmatprep.subr.bf16.mxu0 0
          %810 = vmatpush1.bf16.xpose.msra.mxu0 0
          %811 = vmatprep.subr.bf16.mxu0 0
          %812 = vmatpush1.bf16.xpose.msra.mxu0 0
          %813 = vmatprep.subr.bf16.mxu0 0
          %814 = vmatpush1.bf16.xpose.msra.mxu0 0
          %815 = vmatprep.subr.bf16.mxu0 0
          %816 = vmatpush1.bf16.xpose.msra.mxu0 0
          %817 = vmatprep.subr.bf16.mxu0 0
          %818 = vmatpush1.bf16.xpose.msra.mxu0 0
          %819 = vmatprep.subr.bf16.mxu0 0
          %820 = vmatpush1.bf16.xpose.msra.mxu0 0
          %821 = vmatprep.subr.bf16.mxu0 0
          %822 = vmatpush1.bf16.xpose.msra.mxu0 0
          %823 = vmatprep.mubr.bf16.mxu0 0
          %824 = vmatmul.mubr.bf16.gmra.mrb[0].mxu0 %v786
          %v825 = vpop.f32.mrb[0].mxu0
          %v826 = vadd.f32 0.0, %v825
          %v827 = vpop.f32.mrb[0].mxu0
          %v828 = vpop.f32.mrb[0].mxu0
          %v829 = vpop.f32.mrb[0].mxu0
          %830 = vdwg.mxu0
          %s831 = scalar_lea.vmem [#allocation2], 24
          %v832 = vld [vmem:[%s831] sm:$0xff]
          %v833 = vsel %vm341, %v826, -inf
          %834 = vmax.xlane.f32.xlu0 %v833
          %v835 = vpop.xlane.xlu0 %834
          %v836 = vmax.f32 %v832, %v835
          %v837 = vsub.f32 %v832, %v836
          %v838 = vmul.f32 %v837, 1.442695
          %v839 = vpow.pop %v838
          %841 = vset.pattern.permute.xlu0 0
          %842 = vperm.xlu0 %841, %v836
          %v843 = vpop.permute.xlu0 %842
          %v845 = vsub.f32 %v826, %v843
          %v846 = vmul.f32 %v845, 1.442695
          %v847 = vpow.pop %v846
          %s848 = scalar_lea.vmem [#allocation3], 24
          %v849 = vld [vmem:[%s848] sm:$0xff]
          %v850 = vmul.f32 %v839, %v849
          %v851 = vsel %vm341, %v847, 0.0
          %852 = vadd.xlane.f32.xlu0 %v851
          %v853 = vpop.xlane.xlu0 %852
          %v854 = vadd.f32 %v850, %v853
          %855 = vst.msk [vmem:[%s848] sm:$0xff] %vm410, %v854
          %v856 = vld [vmem:[#allocation4] sm:$0xff]
          %858 = vset.pattern.permute.xlu0 0
          %859 = vperm.xlu0 %858, %v839
          %v860 = vpop.permute.xlu0 %859
          %v862 = vmul.f32 %v860, %v856
          %v863 = vpack.c.bf16 %v847, %v847
          %v864 = vld [vmem:[%s280] sm:$0xf]
          %v866 = vunpack.c.l.b16 %v864
          %v867 = vpack.c.b16 %v866, %v866
          %868 = vrot.lane.b32.xlu0 %v867, 104
          %v869 = vpop.permute.xlu0 %868
          %v871 = vsel %vm341, %v863, 0
          %v874 = vsel %vm424, %v869, 0
          %876 = vmatprep.subr.bf16.mxu0 0
          %877 = vmatpush1.bf16.msra.mxu0 %v874
          %878 = vmatprep.subr.bf16.mxu0 0
          %879 = vmatpush1.bf16.msra.mxu0 0
          %880 = vmatprep.subr.bf16.mxu0 0
          %881 = vmatpush1.bf16.msra.mxu0 0
          %882 = vmatprep.subr.bf16.mxu0 0
          %883 = vmatpush1.bf16.msra.mxu0 0
          %884 = vmatprep.subr.bf16.mxu0 0
          %885 = vmatpush1.bf16.msra.mxu0 0
          %886 = vmatprep.subr.bf16.mxu0 0
          %887 = vmatpush1.bf16.msra.mxu0 0
          %888 = vmatprep.subr.bf16.mxu0 0
          %889 = vmatpush1.bf16.msra.mxu0 0
          %890 = vmatprep.subr.bf16.mxu0 0
          %891 = vmatpush1.bf16.msra.mxu0 0
          %892 = vmatprep.subr.bf16.mxu0 0
          %893 = vmatpush1.bf16.msra.mxu0 0
          %894 = vmatprep.subr.bf16.mxu0 0
          %895 = vmatpush1.bf16.msra.mxu0 0
          %896 = vmatprep.subr.bf16.mxu0 0
          %897 = vmatpush1.bf16.msra.mxu0 0
          %898 = vmatprep.subr.bf16.mxu0 0
          %899 = vmatpush1.bf16.msra.mxu0 0
          %900 = vmatprep.subr.bf16.mxu0 0
          %901 = vmatpush1.bf16.msra.mxu0 0
          %902 = vmatprep.subr.bf16.mxu0 0
          %903 = vmatpush1.bf16.msra.mxu0 0
          %904 = vmatprep.subr.bf16.mxu0 0
          %905 = vmatpush1.bf16.msra.mxu0 0
          %906 = vmatprep.subr.bf16.mxu0 0
          %907 = vmatpush1.bf16.msra.mxu0 0
          %908 = vmatprep.mubr.bf16.mxu0 0
          %909 = vmatmul.mubr.bf16.gmra.mrb[0].mxu0 %v871
          %v910 = vpop.f32.mrb[0].mxu0
          %v911 = vadd.f32 0.0, %v910
          %v912 = vpop.f32.mrb[0].mxu0
          %v913 = vpop.f32.mrb[0].mxu0
          %v914 = vpop.f32.mrb[0].mxu0
          %915 = vdwg.mxu0
          %917 = vrot.lane.b32.xlu0 %v911, 24
          %v918 = vpop.permute.xlu0 %917
          %v920 = vadd.f32 %v862, %v918
          %vm921 = vcmask 261312
          %922 = vst.msk [vmem:[#allocation4] sm:$0xff] %vm921, %v920
          %923 = vst.msk [vmem:[%s831] sm:$0xff] %vm410, %v836
        $region52: #{_lambda_.4} parent=31 // pred_fallthru
          _
        %p924 = scmp.eq.s32.totalorder %s319, %s318
        // Predicated region
        $region53: #{_lambda_.4} parent=31 // pred_check
          %p925 = pneg %p924
        $region54: #{_lambda_.4} parent=31 // pred_check_branch
          %927 = sbr.rel (%p925) target = $region56
        $region55: #{_lambda_.4} parent=31 // pred_region
          %v928 = vlaneseq
          %v929 = vshrl.u32 %v928, 7
          %v930 = vlaneseq
          %v931 = vand.u32 %v930, 127
          %vm932 = vcmp.le.s32.totalorder %v931, %v929
          %v933 = vld [vmem:[%s262] sm:$0xf]
          %v934 = vld [vmem:[%s271] sm:$0xf]
          %vm935 = vcmask 64512
          %v937 = vsel %vm935, %v933, 0
          %v940 = vsel %vm935, %v934, 0
          %942 = vmatprep.subr.bf16.mxu0 0
          %943 = vmatpush1.bf16.xpose.msra.mxu0 %v940
          %944 = vmatprep.subr.bf16.mxu0 0
          %945 = vmatpush1.bf16.xpose.msra.mxu0 0
          %946 = vmatprep.subr.bf16.mxu0 0
          %947 = vmatpush1.bf16.xpose.msra.mxu0 0
          %948 = vmatprep.subr.bf16.mxu0 0
          %949 = vmatpush1.bf16.xpose.msra.mxu0 0
          %950 = vmatprep.subr.bf16.mxu0 0
          %951 = vmatpush1.bf16.xpose.msra.mxu0 0
          %952 = vmatprep.subr.bf16.mxu0 0
          %953 = vmatpush1.bf16.xpose.msra.mxu0 0
          %954 = vmatprep.subr.bf16.mxu0 0
          %955 = vmatpush1.bf16.xpose.msra.mxu0 0
          %956 = vmatprep.subr.bf16.mxu0 0
          %957 = vmatpush1.bf16.xpose.msra.mxu0 0
          %958 = vmatprep.subr.bf16.mxu0 0
          %959 = vmatpush1.bf16.xpose.msra.mxu0 0
          %960 = vmatprep.subr.bf16.mxu0 0
          %961 = vmatpush1.bf16.xpose.msra.mxu0 0
          %962 = vmatprep.subr.bf16.mxu0 0
          %963 = vmatpush1.bf16.xpose.msra.mxu0 0
          %964 = vmatprep.subr.bf16.mxu0 0
          %965 = vmatpush1.bf16.xpose.msra.mxu0 0
          %966 = vmatprep.subr.bf16.mxu0 0
          %967 = vmatpush1.bf16.xpose.msra.mxu0 0
          %968 = vmatprep.subr.bf16.mxu0 0
          %969 = vmatpush1.bf16.xpose.msra.mxu0 0
          %970 = vmatprep.subr.bf16.mxu0 0
          %971 = vmatpush1.bf16.xpose.msra.mxu0 0
          %972 = vmatprep.subr.bf16.mxu0 0
          %973 = vmatpush1.bf16.xpose.msra.mxu0 0
          %974 = vmatprep.mubr.bf16.mxu0 0
          %975 = vmatmul.mubr.bf16.gmra.mrb[0].mxu0 %v937
          %v976 = vpop.f32.mrb[0].mxu0
          %v977 = vadd.f32 0.0, %v976
          %v978 = vpop.f32.mrb[0].mxu0
          %v979 = vpop.f32.mrb[0].mxu0
          %v980 = vpop.f32.mrb[0].mxu0
          %981 = vdwg.mxu0
          %v982 = vsel %vm932, %v977, -1e+30
          %v983 = vld [vmem:[#allocation2] sm:$0xff]
          %v984 = vsel %vm935, %v982, -inf
          %985 = vmax.xlane.f32.xlu0 %v984
          %v986 = vpop.xlane.xlu0 %985
          %v987 = vmax.f32 %v983, %v986
          %v988 = vsub.f32 %v983, %v987
          %v989 = vmul.f32 %v988, 1.442695
          %v990 = vpow.pop %v989
          %992 = vset.pattern.permute.xlu0 0
          %993 = vperm.xlu0 %992, %v987
          %v994 = vpop.permute.xlu0 %993
          %v996 = vsub.f32 %v982, %v994
          %v997 = vmul.f32 %v996, 1.442695
          %v998 = vpow.pop %v997
          %v999 = vld [vmem:[#allocation3] sm:$0xff]
          %v1000 = vmul.f32 %v990, %v999
          %v1001 = vsel %vm935, %v998, 0.0
          %1002 = vadd.xlane.f32.xlu0 %v1001
          %v1003 = vpop.xlane.xlu0 %1002
          %v1004 = vadd.f32 %v1000, %v1003
          %vm1005 = vcmask 7168
          %1006 = vst.msk [vmem:[#allocation3] sm:$0xff] %vm1005, %v1004
          %v1007 = vld [vmem:[#allocation4] sm:$0xff]
          %1009 = vset.pattern.permute.xlu0 0
          %1010 = vperm.xlu0 %1009, %v990
          %v1011 = vpop.permute.xlu0 %1010
          %v1013 = vmul.f32 %v1011, %v1007
          %v1014 = vpack.c.bf16 %v998, %v998
          %v1015 = vld [vmem:[%s280] sm:$0xf]
          %v1017 = vsel %vm935, %v1014, 0
          %vm1019 = vcmask 1043456
          %v1021 = vsel %vm1019, %v1015, 0
          %1023 = vmatprep.subr.bf16.mxu0 0
          %1024 = vmatpush1.bf16.msra.mxu0 %v1021
          %1025 = vmatprep.subr.bf16.mxu0 0
          %1026 = vmatpush1.bf16.msra.mxu0 0
          %1027 = vmatprep.subr.bf16.mxu0 0
          %1028 = vmatpush1.bf16.msra.mxu0 0
          %1029 = vmatprep.subr.bf16.mxu0 0
          %1030 = vmatpush1.bf16.msra.mxu0 0
          %1031 = vmatprep.subr.bf16.mxu0 0
          %1032 = vmatpush1.bf16.msra.mxu0 0
          %1033 = vmatprep.subr.bf16.mxu0 0
          %1034 = vmatpush1.bf16.msra.mxu0 0
          %1035 = vmatprep.subr.bf16.mxu0 0
          %1036 = vmatpush1.bf16.msra.mxu0 0
          %1037 = vmatprep.subr.bf16.mxu0 0
          %1038 = vmatpush1.bf16.msra.mxu0 0
          %1039 = vmatprep.subr.bf16.mxu0 0
          %1040 = vmatpush1.bf16.msra.mxu0 0
          %1041 = vmatprep.subr.bf16.mxu0 0
          %1042 = vmatpush1.bf16.msra.mxu0 0
          %1043 = vmatprep.subr.bf16.mxu0 0
          %1044 = vmatpush1.bf16.msra.mxu0 0
          %1045 = vmatprep.subr.bf16.mxu0 0
          %1046 = vmatpush1.bf16.msra.mxu0 0
          %1047 = vmatprep.subr.bf16.mxu0 0
          %1048 = vmatpush1.bf16.msra.mxu0 0
          %1049 = vmatprep.subr.bf16.mxu0 0
          %1050 = vmatpush1.bf16.msra.mxu0 0
          %1051 = vmatprep.subr.bf16.mxu0 0
          %1052 = vmatpush1.bf16.msra.mxu0 0
          %1053 = vmatprep.subr.bf16.mxu0 0
          %1054 = vmatpush1.bf16.msra.mxu0 0
          %1055 = vmatprep.mubr.bf16.mxu0 0
          %1056 = vmatmul.mubr.bf16.gmra.mrb[0].mxu0 %v1017
          %v1057 = vpop.f32.mrb[0].mxu0
          %v1058 = vadd.f32 0.0, %v1057
          %v1059 = vpop.f32.mrb[0].mxu0
          %v1060 = vpop.f32.mrb[0].mxu0
          %v1061 = vpop.f32.mrb[0].mxu0
          %1062 = vdwg.mxu0
          %v1063 = vadd.f32 %v1013, %v1058
          %1064 = vst.msk [vmem:[#allocation4] sm:$0xff] %vm935, %v1063
          %1065 = vst.msk [vmem:[#allocation2] sm:$0xff] %vm1005, %v987
          %v1066 = vld [vmem:[%s262] sm:$0xf]
          %v1067 = vld [vmem:[%s271] sm:$0xf]
          %v1069 = vunpack.c.l.b16 %v1066
          %v1070 = vpack.c.b16 %v1069, %v1069
          %1071 = vrot.lane.b32.xlu0 %v1070, 120
          %v1072 = vpop.permute.xlu0 %1071
          %v1074 = vunpack.c.l.b16 %v1067
          %v1075 = vpack.c.b16 %v1074, %v1074
          %1076 = vrot.lane.b32.xlu0 %v1075, 120
          %v1077 = vpop.permute.xlu0 %1076
          %v1079 = vsel %vm935, %v1072, 0
          %v1082 = vsel %vm935, %v1077, 0
          %1084 = vmatprep.subr.bf16.mxu0 0
          %1085 = vmatpush1.bf16.xpose.msra.mxu0 %v1082
          %1086 = vmatprep.subr.bf16.mxu0 0
          %1087 = vmatpush1.bf16.xpose.msra.mxu0 0
          %1088 = vmatprep.subr.bf16.mxu0 0
          %1089 = vmatpush1.bf16.xpose.msra.mxu0 0
          %1090 = vmatprep.subr.bf16.mxu0 0
          %1091 = vmatpush1.bf16.xpose.msra.mxu0 0
          %1092 = vmatprep.subr.bf16.mxu0 0
          %1093 = vmatpush1.bf16.xpose.msra.mxu0 0
          %1094 = vmatprep.subr.bf16.mxu0 0
          %1095 = vmatpush1.bf16.xpose.msra.mxu0 0
          %1096 = vmatprep.subr.bf16.mxu0 0
          %1097 = vmatpush1.bf16.xpose.msra.mxu0 0
          %1098 = vmatprep.subr.bf16.mxu0 0
          %1099 = vmatpush1.bf16.xpose.msra.mxu0 0
          %1100 = vmatprep.subr.bf16.mxu0 0
          %1101 = vmatpush1.bf16.xpose.msra.mxu0 0
          %1102 = vmatprep.subr.bf16.mxu0 0
          %1103 = vmatpush1.bf16.xpose.msra.mxu0 0
          %1104 = vmatprep.subr.bf16.mxu0 0
          %1105 = vmatpush1.bf16.xpose.msra.mxu0 0
          %1106 = vmatprep.subr.bf16.mxu0 0
          %1107 = vmatpush1.bf16.xpose.msra.mxu0 0
          %1108 = vmatprep.subr.bf16.mxu0 0
          %1109 = vmatpush1.bf16.xpose.msra.mxu0 0
          %1110 = vmatprep.subr.bf16.mxu0 0
          %1111 = vmatpush1.bf16.xpose.msra.mxu0 0
          %1112 = vmatprep.subr.bf16.mxu0 0
          %1113 = vmatpush1.bf16.xpose.msra.mxu0 0
          %1114 = vmatprep.subr.bf16.mxu0 0
          %1115 = vmatpush1.bf16.xpose.msra.mxu0 0
          %1116 = vmatprep.mubr.bf16.mxu0 0
          %1117 = vmatmul.mubr.bf16.gmra.mrb[0].mxu0 %v1079
          %v1118 = vpop.f32.mrb[0].mxu0
          %v1119 = vadd.f32 0.0, %v1118
          %v1120 = vpop.f32.mrb[0].mxu0
          %v1121 = vpop.f32.mrb[0].mxu0
          %v1122 = vpop.f32.mrb[0].mxu0
          %1123 = vdwg.mxu0
          %v1124 = vsel %vm932, %v1119, -1e+30
          %s1125 = scalar_lea.vmem [#allocation2], 8
          %v1126 = vld [vmem:[%s1125] sm:$0xff]
          %v1127 = vsel %vm935, %v1124, -inf
          %1128 = vmax.xlane.f32.xlu0 %v1127
          %v1129 = vpop.xlane.xlu0 %1128
          %v1130 = vmax.f32 %v1126, %v1129
          %v1131 = vsub.f32 %v1126, %v1130
          %v1132 = vmul.f32 %v1131, 1.442695
          %v1133 = vpow.pop %v1132
          %1135 = vset.pattern.permute.xlu0 0
          %1136 = vperm.xlu0 %1135, %v1130
          %v1137 = vpop.permute.xlu0 %1136
          %v1139 = vsub.f32 %v1124, %v1137
          %v1140 = vmul.f32 %v1139, 1.442695
          %v1141 = vpow.pop %v1140
          %s1142 = scalar_lea.vmem [#allocation3], 8
          %v1143 = vld [vmem:[%s1142] sm:$0xff]
          %v1144 = vmul.f32 %v1133, %v1143
          %v1145 = vsel %vm935, %v1141, 0.0
          %1146 = vadd.xlane.f32.xlu0 %v1145
          %v1147 = vpop.xlane.xlu0 %1146
          %v1148 = vadd.f32 %v1144, %v1147
          %1149 = vst.msk [vmem:[%s1142] sm:$0xff] %vm1005, %v1148
          %v1150 = vld [vmem:[#allocation4] sm:$0xff]
          %1152 = vset.pattern.permute.xlu0 0
          %1153 = vperm.xlu0 %1152, %v1133
          %v1154 = vpop.permute.xlu0 %1153
          %v1156 = vmul.f32 %v1154, %v1150
          %v1157 = vpack.c.bf16 %v1141, %v1141
          %v1158 = vld [vmem:[%s280] sm:$0xf]
          %v1160 = vunpack.c.l.b16 %v1158
          %v1161 = vpack.c.b16 %v1160, %v1160
          %1162 = vrot.lane.b32.xlu0 %v1161, 120
          %v1163 = vpop.permute.xlu0 %1162
          %v1165 = vsel %vm935, %v1157, 0
          %v1168 = vsel %vm1019, %v1163, 0
          %1170 = vmatprep.subr.bf16.mxu0 0
          %1171 = vmatpush1.bf16.msra.mxu0 %v1168
          %1172 = vmatprep.subr.bf16.mxu0 0
          %1173 = vmatpush1.bf16.msra.mxu0 0
          %1174 = vmatprep.subr.bf16.mxu0 0
          %1175 = vmatpush1.bf16.msra.mxu0 0
          %1176 = vmatprep.subr.bf16.mxu0 0
          %1177 = vmatpush1.bf16.msra.mxu0 0
          %1178 = vmatprep.subr.bf16.mxu0 0
          %1179 = vmatpush1.bf16.msra.mxu0 0
          %1180 = vmatprep.subr.bf16.mxu0 0
          %1181 = vmatpush1.bf16.msra.mxu0 0
          %1182 = vmatprep.subr.bf16.mxu0 0
          %1183 = vmatpush1.bf16.msra.mxu0 0
          %1184 = vmatprep.subr.bf16.mxu0 0
          %1185 = vmatpush1.bf16.msra.mxu0 0
          %1186 = vmatprep.subr.bf16.mxu0 0
          %1187 = vmatpush1.bf16.msra.mxu0 0
          %1188 = vmatprep.subr.bf16.mxu0 0
          %1189 = vmatpush1.bf16.msra.mxu0 0
          %1190 = vmatprep.subr.bf16.mxu0 0
          %1191 = vmatpush1.bf16.msra.mxu0 0
          %1192 = vmatprep.subr.bf16.mxu0 0
          %1193 = vmatpush1.bf16.msra.mxu0 0
          %1194 = vmatprep.subr.bf16.mxu0 0
          %1195 = vmatpush1.bf16.msra.mxu0 0
          %1196 = vmatprep.subr.bf16.mxu0 0
          %1197 = vmatpush1.bf16.msra.mxu0 0
          %1198 = vmatprep.subr.bf16.mxu0 0
          %1199 = vmatpush1.bf16.msra.mxu0 0
          %1200 = vmatprep.subr.bf16.mxu0 0
          %1201 = vmatpush1.bf16.msra.mxu0 0
          %1202 = vmatprep.mubr.bf16.mxu0 0
          %1203 = vmatmul.mubr.bf16.gmra.mrb[0].mxu0 %v1165
          %v1204 = vpop.f32.mrb[0].mxu0
          %v1205 = vadd.f32 0.0, %v1204
          %v1206 = vpop.f32.mrb[0].mxu0
          %v1207 = vpop.f32.mrb[0].mxu0
          %v1208 = vpop.f32.mrb[0].mxu0
          %1209 = vdwg.mxu0
          %1211 = vrot.lane.b32.xlu0 %v1205, 8
          %v1212 = vpop.permute.xlu0 %1211
          %v1214 = vadd.f32 %v1156, %v1212
          %vm1215 = vcmask 130112
          %1216 = vst.msk [vmem:[#allocation4] sm:$0xff] %vm1215, %v1214
          %1217 = vst.msk [vmem:[%s1125] sm:$0xff] %vm1005, %v1130
          %v1218 = vld [vmem:[%s262] sm:$0xf]
          %v1219 = vld [vmem:[%s271] sm:$0xf]
          %v1221 = vunpack.c.l.b16 %v1218
          %v1222 = vpack.c.b16 %v1221, %v1221
          %1223 = vrot.lane.b32.xlu0 %v1222, 112
          %v1224 = vpop.permute.xlu0 %1223
          %v1226 = vunpack.c.l.b16 %v1219
          %v1227 = vpack.c.b16 %v1226, %v1226
          %1228 = vrot.lane.b32.xlu0 %v1227, 112
          %v1229 = vpop.permute.xlu0 %1228
          %v1231 = vsel %vm935, %v1224, 0
          %v1234 = vsel %vm935, %v1229, 0
          %1236 = vmatprep.subr.bf16.mxu0 0
          %1237 = vmatpush1.bf16.xpose.msra.mxu0 %v1234
          %1238 = vmatprep.subr.bf16.mxu0 0
          %1239 = vmatpush1.bf16.xpose.msra.mxu0 0
          %1240 = vmatprep.subr.bf16.mxu0 0
          %1241 = vmatpush1.bf16.xpose.msra.mxu0 0
          %1242 = vmatprep.subr.bf16.mxu0 0
          %1243 = vmatpush1.bf16.xpose.msra.mxu0 0
          %1244 = vmatprep.subr.bf16.mxu0 0
          %1245 = vmatpush1.bf16.xpose.msra.mxu0 0
          %1246 = vmatprep.subr.bf16.mxu0 0
          %1247 = vmatpush1.bf16.xpose.msra.mxu0 0
          %1248 = vmatprep.subr.bf16.mxu0 0
          %1249 = vmatpush1.bf16.xpose.msra.mxu0 0
          %1250 = vmatprep.subr.bf16.mxu0 0
          %1251 = vmatpush1.bf16.xpose.msra.mxu0 0
          %1252 = vmatprep.subr.bf16.mxu0 0
          %1253 = vmatpush1.bf16.xpose.msra.mxu0 0
          %1254 = vmatprep.subr.bf16.mxu0 0
          %1255 = vmatpush1.bf16.xpose.msra.mxu0 0
          %1256 = vmatprep.subr.bf16.mxu0 0
          %1257 = vmatpush1.bf16.xpose.msra.mxu0 0
          %1258 = vmatprep.subr.bf16.mxu0 0
          %1259 = vmatpush1.bf16.xpose.msra.mxu0 0
          %1260 = vmatprep.subr.bf16.mxu0 0
          %1261 = vmatpush1.bf16.xpose.msra.mxu0 0
          %1262 = vmatprep.subr.bf16.mxu0 0
          %1263 = vmatpush1.bf16.xpose.msra.mxu0 0
          %1264 = vmatprep.subr.bf16.mxu0 0
          %1265 = vmatpush1.bf16.xpose.msra.mxu0 0
          %1266 = vmatprep.subr.bf16.mxu0 0
          %1267 = vmatpush1.bf16.xpose.msra.mxu0 0
          %1268 = vmatprep.mubr.bf16.mxu0 0
          %1269 = vmatmul.mubr.bf16.gmra.mrb[0].mxu0 %v1231
          %v1270 = vpop.f32.mrb[0].mxu0
          %v1271 = vadd.f32 0.0, %v1270
          %v1272 = vpop.f32.mrb[0].mxu0
          %v1273 = vpop.f32.mrb[0].mxu0
          %v1274 = vpop.f32.mrb[0].mxu0
          %1275 = vdwg.mxu0
          %v1276 = vsel %vm932, %v1271, -1e+30
          %s1277 = scalar_lea.vmem [#allocation2], 16
          %v1278 = vld [vmem:[%s1277] sm:$0xff]
          %v1279 = vsel %vm935, %v1276, -inf
          %1280 = vmax.xlane.f32.xlu0 %v1279
          %v1281 = vpop.xlane.xlu0 %1280
          %v1282 = vmax.f32 %v1278, %v1281
          %v1283 = vsub.f32 %v1278, %v1282
          %v1284 = vmul.f32 %v1283, 1.442695
          %v1285 = vpow.pop %v1284
          %1287 = vset.pattern.permute.xlu0 0
          %1288 = vperm.xlu0 %1287, %v1282
          %v1289 = vpop.permute.xlu0 %1288
          %v1291 = vsub.f32 %v1276, %v1289
          %v1292 = vmul.f32 %v1291, 1.442695
          %v1293 = vpow.pop %v1292
          %s1294 = scalar_lea.vmem [#allocation3], 16
          %v1295 = vld [vmem:[%s1294] sm:$0xff]
          %v1296 = vmul.f32 %v1285, %v1295
          %v1297 = vsel %vm935, %v1293, 0.0
          %1298 = vadd.xlane.f32.xlu0 %v1297
          %v1299 = vpop.xlane.xlu0 %1298
          %v1300 = vadd.f32 %v1296, %v1299
          %1301 = vst.msk [vmem:[%s1294] sm:$0xff] %vm1005, %v1300
          %v1302 = vld [vmem:[#allocation4] sm:$0xff]
          %1304 = vset.pattern.permute.xlu0 0
          %1305 = vperm.xlu0 %1304, %v1285
          %v1306 = vpop.permute.xlu0 %1305
          %v1308 = vmul.f32 %v1306, %v1302
          %v1309 = vpack.c.bf16 %v1293, %v1293
          %v1310 = vld [vmem:[%s280] sm:$0xf]
          %v1312 = vunpack.c.l.b16 %v1310
          %v1313 = vpack.c.b16 %v1312, %v1312
          %1314 = vrot.lane.b32.xlu0 %v1313, 112
          %v1315 = vpop.permute.xlu0 %1314
          %v1317 = vsel %vm935, %v1309, 0
          %v1320 = vsel %vm1019, %v1315, 0
          %1322 = vmatprep.subr.bf16.mxu0 0
          %1323 = vmatpush1.bf16.msra.mxu0 %v1320
          %1324 = vmatprep.subr.bf16.mxu0 0
          %1325 = vmatpush1.bf16.msra.mxu0 0
          %1326 = vmatprep.subr.bf16.mxu0 0
          %1327 = vmatpush1.bf16.msra.mxu0 0
          %1328 = vmatprep.subr.bf16.mxu0 0
          %1329 = vmatpush1.bf16.msra.mxu0 0
          %1330 = vmatprep.subr.bf16.mxu0 0
          %1331 = vmatpush1.bf16.msra.mxu0 0
          %1332 = vmatprep.subr.bf16.mxu0 0
          %1333 = vmatpush1.bf16.msra.mxu0 0
          %1334 = vmatprep.subr.bf16.mxu0 0
          %1335 = vmatpush1.bf16.msra.mxu0 0
          %1336 = vmatprep.subr.bf16.mxu0 0
          %1337 = vmatpush1.bf16.msra.mxu0 0
          %1338 = vmatprep.subr.bf16.mxu0 0
          %1339 = vmatpush1.bf16.msra.mxu0 0
          %1340 = vmatprep.subr.bf16.mxu0 0
          %1341 = vmatpush1.bf16.msra.mxu0 0
          %1342 = vmatprep.subr.bf16.mxu0 0
          %1343 = vmatpush1.bf16.msra.mxu0 0
          %1344 = vmatprep.subr.bf16.mxu0 0
          %1345 = vmatpush1.bf16.msra.mxu0 0
          %1346 = vmatprep.subr.bf16.mxu0 0
          %1347 = vmatpush1.bf16.msra.mxu0 0
          %1348 = vmatprep.subr.bf16.mxu0 0
          %1349 = vmatpush1.bf16.msra.mxu0 0
          %1350 = vmatprep.subr.bf16.mxu0 0
          %1351 = vmatpush1.bf16.msra.mxu0 0
          %1352 = vmatprep.subr.bf16.mxu0 0
          %1353 = vmatpush1.bf16.msra.mxu0 0
          %1354 = vmatprep.mubr.bf16.mxu0 0
          %1355 = vmatmul.mubr.bf16.gmra.mrb[0].mxu0 %v1317
          %v1356 = vpop.f32.mrb[0].mxu0
          %v1357 = vadd.f32 0.0, %v1356
          %v1358 = vpop.f32.mrb[0].mxu0
          %v1359 = vpop.f32.mrb[0].mxu0
          %v1360 = vpop.f32.mrb[0].mxu0
          %1361 = vdwg.mxu0
          %1363 = vrot.lane.b32.xlu0 %v1357, 16
          %v1364 = vpop.permute.xlu0 %1363
          %v1366 = vadd.f32 %v1308, %v1364
          %vm1367 = vcmask 195712
          %1368 = vst.msk [vmem:[#allocation4] sm:$0xff] %vm1367, %v1366
          %1369 = vst.msk [vmem:[%s1277] sm:$0xff] %vm1005, %v1282
          %v1370 = vld [vmem:[%s262] sm:$0xf]
          %v1371 = vld [vmem:[%s271] sm:$0xf]
          %v1373 = vunpack.c.l.b16 %v1370
          %v1374 = vpack.c.b16 %v1373, %v1373
          %1375 = vrot.lane.b32.xlu0 %v1374, 104
          %v1376 = vpop.permute.xlu0 %1375
          %v1378 = vunpack.c.l.b16 %v1371
          %v1379 = vpack.c.b16 %v1378, %v1378
          %1380 = vrot.lane.b32.xlu0 %v1379, 104
          %v1381 = vpop.permute.xlu0 %1380
          %v1383 = vsel %vm935, %v1376, 0
          %v1386 = vsel %vm935, %v1381, 0
          %1388 = vmatprep.subr.bf16.mxu0 0
          %1389 = vmatpush1.bf16.xpose.msra.mxu0 %v1386
          %1390 = vmatprep.subr.bf16.mxu0 0
          %1391 = vmatpush1.bf16.xpose.msra.mxu0 0
          %1392 = vmatprep.subr.bf16.mxu0 0
          %1393 = vmatpush1.bf16.xpose.msra.mxu0 0
          %1394 = vmatprep.subr.bf16.mxu0 0
          %1395 = vmatpush1.bf16.xpose.msra.mxu0 0
          %1396 = vmatprep.subr.bf16.mxu0 0
          %1397 = vmatpush1.bf16.xpose.msra.mxu0 0
          %1398 = vmatprep.subr.bf16.mxu0 0
          %1399 = vmatpush1.bf16.xpose.msra.mxu0 0
          %1400 = vmatprep.subr.bf16.mxu0 0
          %1401 = vmatpush1.bf16.xpose.msra.mxu0 0
          %1402 = vmatprep.subr.bf16.mxu0 0
          %1403 = vmatpush1.bf16.xpose.msra.mxu0 0
          %1404 = vmatprep.subr.bf16.mxu0 0
          %1405 = vmatpush1.bf16.xpose.msra.mxu0 0
          %1406 = vmatprep.subr.bf16.mxu0 0
          %1407 = vmatpush1.bf16.xpose.msra.mxu0 0
          %1408 = vmatprep.subr.bf16.mxu0 0
          %1409 = vmatpush1.bf16.xpose.msra.mxu0 0
          %1410 = vmatprep.subr.bf16.mxu0 0
          %1411 = vmatpush1.bf16.xpose.msra.mxu0 0
          %1412 = vmatprep.subr.bf16.mxu0 0
          %1413 = vmatpush1.bf16.xpose.msra.mxu0 0
          %1414 = vmatprep.subr.bf16.mxu0 0
          %1415 = vmatpush1.bf16.xpose.msra.mxu0 0
          %1416 = vmatprep.subr.bf16.mxu0 0
          %1417 = vmatpush1.bf16.xpose.msra.mxu0 0
          %1418 = vmatprep.subr.bf16.mxu0 0
          %1419 = vmatpush1.bf16.xpose.msra.mxu0 0
          %1420 = vmatprep.mubr.bf16.mxu0 0
          %1421 = vmatmul.mubr.bf16.gmra.mrb[0].mxu0 %v1383
          %v1422 = vpop.f32.mrb[0].mxu0
          %v1423 = vadd.f32 0.0, %v1422
          %v1424 = vpop.f32.mrb[0].mxu0
          %v1425 = vpop.f32.mrb[0].mxu0
          %v1426 = vpop.f32.mrb[0].mxu0
          %1427 = vdwg.mxu0
          %v1428 = vsel %vm932, %v1423, -1e+30
          %s1429 = scalar_lea.vmem [#allocation2], 24
          %v1430 = vld [vmem:[%s1429] sm:$0xff]
          %v1431 = vsel %vm935, %v1428, -inf
          %1432 = vmax.xlane.f32.xlu0 %v1431
          %v1433 = vpop.xlane.xlu0 %1432
          %v1434 = vmax.f32 %v1430, %v1433
          %v1435 = vsub.f32 %v1430, %v1434
          %v1436 = vmul.f32 %v1435, 1.442695
          %v1437 = vpow.pop %v1436
          %1439 = vset.pattern.permute.xlu0 0
          %1440 = vperm.xlu0 %1439, %v1434
          %v1441 = vpop.permute.xlu0 %1440
          %v1443 = vsub.f32 %v1428, %v1441
          %v1444 = vmul.f32 %v1443, 1.442695
          %v1445 = vpow.pop %v1444
          %s1446 = scalar_lea.vmem [#allocation3], 24
          %v1447 = vld [vmem:[%s1446] sm:$0xff]
          %v1448 = vmul.f32 %v1437, %v1447
          %v1449 = vsel %vm935, %v1445, 0.0
          %1450 = vadd.xlane.f32.xlu0 %v1449
          %v1451 = vpop.xlane.xlu0 %1450
          %v1452 = vadd.f32 %v1448, %v1451
          %1453 = vst.msk [vmem:[%s1446] sm:$0xff] %vm1005, %v1452
          %v1454 = vld [vmem:[#allocation4] sm:$0xff]
          %1456 = vset.pattern.permute.xlu0 0
          %1457 = vperm.xlu0 %1456, %v1437
          %v1458 = vpop.permute.xlu0 %1457
          %v1460 = vmul.f32 %v1458, %v1454
          %v1461 = vpack.c.bf16 %v1445, %v1445
          %v1462 = vld [vmem:[%s280] sm:$0xf]
          %v1464 = vunpack.c.l.b16 %v1462
          %v1465 = vpack.c.b16 %v1464, %v1464
          %1466 = vrot.lane.b32.xlu0 %v1465, 104
          %v1467 = vpop.permute.xlu0 %1466
          %v1469 = vsel %vm935, %v1461, 0
          %v1472 = vsel %vm1019, %v1467, 0
          %1474 = vmatprep.subr.bf16.mxu0 0
          %1475 = vmatpush1.bf16.msra.mxu0 %v1472
          %1476 = vmatprep.subr.bf16.mxu0 0
          %1477 = vmatpush1.bf16.msra.mxu0 0
          %1478 = vmatprep.subr.bf16.mxu0 0
          %1479 = vmatpush1.bf16.msra.mxu0 0
          %1480 = vmatprep.subr.bf16.mxu0 0
          %1481 = vmatpush1.bf16.msra.mxu0 0
          %1482 = vmatprep.subr.bf16.mxu0 0
          %1483 = vmatpush1.bf16.msra.mxu0 0
          %1484 = vmatprep.subr.bf16.mxu0 0
          %1485 = vmatpush1.bf16.msra.mxu0 0
          %1486 = vmatprep.subr.bf16.mxu0 0
          %1487 = vmatpush1.bf16.msra.mxu0 0
          %1488 = vmatprep.subr.bf16.mxu0 0
          %1489 = vmatpush1.bf16.msra.mxu0 0
          %1490 = vmatprep.subr.bf16.mxu0 0
          %1491 = vmatpush1.bf16.msra.mxu0 0
          %1492 = vmatprep.subr.bf16.mxu0 0
          %1493 = vmatpush1.bf16.msra.mxu0 0
          %1494 = vmatprep.subr.bf16.mxu0 0
          %1495 = vmatpush1.bf16.msra.mxu0 0
          %1496 = vmatprep.subr.bf16.mxu0 0
          %1497 = vmatpush1.bf16.msra.mxu0 0
          %1498 = vmatprep.subr.bf16.mxu0 0
          %1499 = vmatpush1.bf16.msra.mxu0 0
          %1500 = vmatprep.subr.bf16.mxu0 0
          %1501 = vmatpush1.bf16.msra.mxu0 0
          %1502 = vmatprep.subr.bf16.mxu0 0
          %1503 = vmatpush1.bf16.msra.mxu0 0
          %1504 = vmatprep.subr.bf16.mxu0 0
          %1505 = vmatpush1.bf16.msra.mxu0 0
          %1506 = vmatprep.mubr.bf16.mxu0 0
          %1507 = vmatmul.mubr.bf16.gmra.mrb[0].mxu0 %v1469
          %v1508 = vpop.f32.mrb[0].mxu0
          %v1509 = vadd.f32 0.0, %v1508
          %v1510 = vpop.f32.mrb[0].mxu0
          %v1511 = vpop.f32.mrb[0].mxu0
          %v1512 = vpop.f32.mrb[0].mxu0
          %1513 = vdwg.mxu0
          %1515 = vrot.lane.b32.xlu0 %v1509, 24
          %v1516 = vpop.permute.xlu0 %1515
          %v1518 = vadd.f32 %v1460, %v1516
          %vm1519 = vcmask 261312
          %1520 = vst.msk [vmem:[#allocation4] sm:$0xff] %vm1519, %v1518
          %1521 = vst.msk [vmem:[%s1429] sm:$0xff] %vm1005, %v1434
          %v1522 = vld [vmem:[#allocation3] sm:$0xff]
          %v1523 = vrcp.pop %v1522
          %v1524 = vld [vmem:[#allocation4] sm:$0xff]
          %1526 = vset.pattern.permute.xlu0 0
          %1527 = vperm.xlu0 %1526, %v1523
          %v1528 = vpop.permute.xlu0 %1527
          %v1530 = vmul.f32 %v1524, %v1528
          %v1531 = vld [vmem:[%s1142] sm:$0xff]
          %v1532 = vrcp.pop %v1531
          %1534 = vset.pattern.permute.xlu0 0
          %1535 = vperm.xlu0 %1534, %v1532
          %v1536 = vpop.permute.xlu0 %1535
          %v1538 = vmul.f32 %v1524, %v1536
          %v1539 = vld [vmem:[%s1294] sm:$0xff]
          %v1540 = vrcp.pop %v1539
          %1542 = vset.pattern.permute.xlu0 0
          %1543 = vperm.xlu0 %1542, %v1540
          %v1544 = vpop.permute.xlu0 %1543
          %v1546 = vmul.f32 %v1524, %v1544
          %v1547 = vld [vmem:[%s1446] sm:$0xff]
          %v1548 = vrcp.pop %v1547
          %1550 = vset.pattern.permute.xlu0 0
          %1551 = vperm.xlu0 %1550, %v1548
          %v1552 = vpop.permute.xlu0 %1551
          %v1554 = vmul.f32 %v1524, %v1552
          %v1555 = vsel %vm935, %v1530, %v1538
          %vm1556 = vcmask 130048
          %v1557 = vsel %vm1556, %v1555, %v1546
          %vm1558 = vcmask 195584
          %v1559 = vsel %vm1558, %v1557, %v1554
          %v1560 = vpack.c.bf16 %v1559, %v1559
          %vm1561 = vcmask 257024
          %1562 = vst.msk [vmem:[%s312] sm:$0xf] %vm1561, %v1560
        $region56: #{_lambda_.4} parent=31 // pred_fallthru
          _
        %s1563 = sand.u32 %s156, 1
        %s1564 = scalar_lea.sflag [#allocation10], %s1563
        %s1565 = sand.u32 %s156, 1
        %s1566 = smul.addr %s1565, 4
        %s1567 = scalar_lea.vmem [#allocation14], %s1566
        // Predicated region
        $region57: #{_lambda_.4} parent=31 // pred_check
          %p1568 = pneg %p166
        $region58: #{_lambda_.4} parent=31 // pred_check_branch
          %1570 = sbr.rel (%p1568) target = $region60
        $region59: #{_lambda_.4} parent=31 // pred_region
          %s1571 = sld [smem:[#allocation6 + %s34]]
          %s1573 = ssub.s32 64, 64
          %1574 = vsyncadd %s1564, %s1573
          %s1575 = sadd.s32 %s33, %s1571
          %s1576 = sadd.s32 %s1575, %s32
          %s1577 = smul.addr %s1576, 64
          %s1578 = scalar_lea.hbm %s5, %s1577
          %s1580 = sshll.u32 %s1567, 4
          %s1581 = int_to_ptr.vmem [resolvable:$true] %s1580
          %1583 = dma.vmem_to_hbm [thread:$0]  %s1581, 64, %s1578, %s1564
        $region60: #{_lambda_.4} parent=31 // pred_fallthru
          _
      $region32: #{_lambda_.4} parent=5 // pred_fallthru
        _
      %p1584 = scmp.le.s32.totalorder 2, %s22
      // Predicated region
      $region61: #{_lambda_.4} parent=5 // pred_check
        %p1585 = pneg %p1584
      $region62: #{_lambda_.4} parent=5 // pred_check_branch
        %1587 = sbr.rel (%p1585) target = $region64
      $region63: #{_lambda_.4} parent=5 // pred_region
        %s1588 = ssub.s32 %s22, 2
        // Predicated region
        $region65: #{_lambda_.4} parent=63 // pred_check
          %p1589 = pneg %p172
        $region66: #{_lambda_.4} parent=63 // pred_check_branch
          %1591 = sbr.rel (%p1589) target = $region68
        $region67: #{_lambda_.4} parent=63 // pred_region
          %s1592 = sand.u32 %s157, 1
          %s1593 = scalar_lea.sflag [#allocation10], %s1592
          %s1594 = sand.u32 %s157, 1
          %s1595 = smul.addr %s1594, 4
          %s1596 = scalar_lea.vmem [#allocation14], %s1595
          %1597 = dma.done %s1593, 64
        $region68: #{_lambda_.4} parent=63 // pred_fallthru
          _
      $region64: #{_lambda_.4} parent=5 // pred_fallthru
        _
    $region6: #{_lambda_.4} parent=1 // loop_footer
      %s26 = sadd.s32 1, %s22
    $region7: #{_lambda_.4} parent=1 // loop_footer_branch
      %21 = sbr.rel target = $region3
    $region8: #{_lambda_.4} parent=1 // loop_exit
      _
    %1598 = vsyncpa [#allocation9], 1
    %s1599 = scalar_lea.sflag [#allocation9], 1
    %1600 = vsyncpa %s1599, 1
    %1601 = vsyncpa [#allocation12], 1
    %s1602 = scalar_lea.sflag [#allocation12], 1
    %1603 = vsyncpa %s1602, 1
    %1604 = vsyncpa [#allocation10], 1
    %s1605 = scalar_lea.sflag [#allocation10], 1
    %1606 = vsyncpa %s1605, 1

</llo_original>
